<compile_context>
chip_gen: v7x
topology: tpu7x:2x2x1
jax: 0.10.0
libtpu: 0.0.40
codegen_flags: <defaults>
</compile_context>

<pallas_src>
import numpy as np
import jax
import jax.numpy as jnp
from jax.experimental import pallas as pl
from jax.experimental.pallas import tpu as pltpu


def spectral_norm_scaling(W: np.ndarray, rho_desired: float) -> np.ndarray:
    """Rescale W so its spectral radius equals rho_desired (matches RON reference impl)."""
    e = np.linalg.eigvals(W)
    rho_curr = np.max(np.abs(e))
    return W * (rho_desired / rho_curr)


def _round_up(x: int, m: int) -> int:
    return ((x + m - 1) // m) * m


def _choose_batch_block(B: int, max_rows: int = 256) -> int:
    """Largest divisor of B <= max_rows, preferring multiples of 8 (MXU M-rows).
    On v7x one would additionally want B // BB == 2 so each TensorCore gets a block."""
    divs = [b for b in range(1, B + 1) if B % b == 0 and b <= max_rows]
    mult8 = [b for b in divs if b % 8 == 0]
    return max(mult8) if mult8 else max(divs)


def _choose_time_chunk(T: int, BB: int, H_pad: int,
                       tile_budget_bytes: int = 2 << 20) -> int:
    """Largest divisor of T whose f32 u-tile fits the budget.  TC must be a multiple of
    16 (sublane tiling of the packed bf16 spike output) or equal to the full extent T."""
    divisors = [c for c in range(1, T + 1) if T % c == 0]
    ok = [c for c in divisors if (c % 16 == 0 or c == T)]
    fits = [c for c in ok if BB * c * H_pad * 4 <= tile_budget_bytes]
    return max(fits) if fits else min(ok)


def make_liquid_ron_kernel(beta: float, threshold: float, bias: float,
                           time_chunk: int, matmul_dtype, spike_dtype):
    """Per-(batch-block, time-chunk) Pallas kernel body."""

    def kernel(x_ref, x2h_ref, h2h_ref, u_out_ref, spk_out_ref, u_scr):
        # Reset the membrane carry at the start of each batch block's time sweep.
        # (Correct only because the time axis is the innermost, sequential grid axis.)
        @pl.when(pl.program_id(1) == 0)
        def _():
            u_scr[...] = jnp.zeros_like(u_scr)

        x2h = x2h_ref[...]          # (n_inp, H_pad)  matmul_dtype, resident in VMEM
        h2h = h2h_ref[...]          # (H_pad, H_pad)  matmul_dtype, resident in VMEM
        u = u_scr[...]              # (BB, H_pad)     f32 membrane carry

        # Fully unrolled time-chunk loop (static indices -> straight-line code).
        # For very large BB*H_pad replace with lax.fori_loop(..., unroll=k) to bound
        # live ranges and avoid vreg spills.
        for i in range(time_chunk):
            # Input projection: depends only on x -> off the recurrent chain.
            ix = jnp.dot(x_ref[:, i, :].astype(matmul_dtype), x2h,
                         preferred_element_type=jnp.float32)
            # Recurrent projection: bf16 operands, f32 accumulation (MXU-native).
            uh = jnp.dot(u.astype(matmul_dtype), h2h,
                         preferred_element_type=jnp.float32)
            ic = ix + uh + bias
            # reset-to-zero based on PREVIOUS membrane; membrane update stays in f32.
            u = jnp.where(u > threshold, 0.0, beta * u + ic)
            u_out_ref[:, i, :] = u

        u_scr[...] = u

        # Chunk-end spike epilogue: one full-vreg, unmasked compare+store pass instead
        # of a masked single-sublane store per step; narrow (bf16) output dtype.
        spk_out_ref[...] = (u_out_ref[...] > threshold).astype(spike_dtype)

    return kernel


def liquid_ron_forward(x_bti, x2h, h2h, *, dt, rc, threshold, bias,
                       time_chunk=None, batch_block=None,
                       matmul_dtype=jnp.bfloat16, spike_dtype=jnp.bfloat16,
                       single_buffer_weights=False):
    """x_bti: (B, T, n_inp) float32. Returns (u, spk), each (B, T, n_hid) float32."""
    B, T, n_inp = x_bti.shape
    n_hid = x2h.shape[1]
    beta = float(np.clip(1.0 - dt / rc, 0.0, 1.0))

    H_pad = _round_up(n_hid, 128)
    BB = _choose_batch_block(B) if batch_block is None else int(batch_block)
    assert B % BB == 0, "batch_block must divide B"
    TC = _choose_time_chunk(T, BB, H_pad) if time_chunk is None else int(time_chunk)
    assert T % TC == 0, "time_chunk must divide T"
    # Output tiling constraints: f32 u needs TC % 8 == 0 (or full extent); the packed
    # spike dtype needs TC to be a multiple of 8 * (4 // itemsize) (or full extent).
    spk_pack = max(1, 4 // jnp.dtype(spike_dtype).itemsize)
    assert TC % 8 == 0 or TC == T, "time_chunk must be a multiple of 8 or equal T"
    assert TC % (8 * spk_pack) == 0 or TC == T, (
        "time_chunk must be a multiple of %d (spike dtype sublane tiling) or equal T"
        % (8 * spk_pack))

    x = x_bti.astype(jnp.float32)

    # Pad weights so the kernel-side hidden dim is lane-dense (multiple of 128).
    # Padded rows/cols of h2h (and padded cols of x2h) are ZERO => padded membrane
    # lanes never feed back into real lanes; padded outputs are sliced off below.
    x2h_p = jnp.pad(x2h.astype(jnp.float32),
                    ((0, 0), (0, H_pad - n_hid))).astype(matmul_dtype)
    h2h_p = jnp.pad(h2h.astype(jnp.float32),
                    ((0, H_pad - n_hid), (0, H_pad - n_hid))).astype(matmul_dtype)

    kernel = make_liquid_ron_kernel(beta, float(threshold), float(bias), TC,
                                    matmul_dtype, spike_dtype)

    # Grid-invariant weights: constant index_map -> DMA'd once, revisited thereafter.
    # single_buffer_weights adds Buffered(1) to drop the redundant second pipeline
    # buffer (v7x VMEM-discipline knob for large reservoirs).
    def _weight_spec(shape):
        if single_buffer_weights:
            return pl.BlockSpec(shape, lambda b, tc: (0, 0),
                                pipeline_mode=pl.Buffered(1))
        return pl.BlockSpec(shape, lambda b, tc: (0, 0))

    grid_spec = pltpu.PrefetchScalarGridSpec(
        num_scalar_prefetch=0,
        grid=(B // BB, T // TC),
        in_specs=[
            # Raw inputs: (batch-block, time-chunk, n_inp) tile (n_inp is tiny; the
            # big ix tensor is never materialized in HBM).
            pl.BlockSpec((BB, TC, n_inp), lambda b, tc: (b, tc, 0)),
            _weight_spec((n_inp, H_pad)),
            _weight_spec((H_pad, H_pad)),
        ],
        out_specs=[
            pl.BlockSpec((BB, TC, H_pad), lambda b, tc: (b, tc, 0)),
            pl.BlockSpec((BB, TC, H_pad), lambda b, tc: (b, tc, 0)),
        ],
        scratch_shapes=[pltpu.VMEM((BB, H_pad), jnp.float32)],   # recurrent membrane u
    )

    # Explicit scoped-VMEM budget: double-buffered x/u/spk tiles + resident weights
    # + scratch, with generous margin; clamped below v7x's 64 MiB physical ceiling.
    mm_isz = jnp.dtype(matmul_dtype).itemsize
    spk_isz = jnp.dtype(spike_dtype).itemsize
    tile_bytes = BB * TC * (n_inp * 4 + H_pad * 4 + H_pad * spk_isz)
    weight_bytes = (H_pad * H_pad + n_inp * H_pad) * mm_isz
    est = 2 * tile_bytes + 2 * weight_bytes + BB * H_pad * 4
    vmem_limit = int(min(max(2 * est + (4 << 20), 32 << 20), 48 << 20))

    u_pad, spk_pad = pl.pallas_call(
        kernel,
        grid_spec=grid_spec,
        out_shape=(
            jax.ShapeDtypeStruct((B, T, H_pad), jnp.float32),
            jax.ShapeDtypeStruct((B, T, H_pad), spike_dtype),
        ),
        compiler_params=pltpu.CompilerParams(
            # Batch blocks are independent (v7x shards them across its 2 TCs); the
            # time axis carries the recurrence and MUST stay sequential ("arbitrary")
            # and innermost, or the VMEM scratch carry would be corrupted.
            dimension_semantics=("parallel", "arbitrary"),
            vmem_limit_bytes=vmem_limit,
        ),
    )(x, x2h_p, h2h_p)

    u = u_pad[..., :n_hid] if H_pad != n_hid else u_pad
    spk = spk_pad[..., :n_hid] if H_pad != n_hid else spk_pad
    # Module parity: return f32 spikes (0/1 are exact in bf16, so this is lossless).
    return u, spk.astype(jnp.float32)


def liquid_ron_reference(x_bti, x2h, h2h, *, dt, rc, threshold, bias,
                         matmul_dtype=jnp.bfloat16):
    """Pure-JAX reference (lax.scan) mirroring the PyTorch loop and the kernel's
    bf16-operand / f32-accumulate matmul casts, so the self-test compares like vs like."""
    B, T, _ = x_bti.shape
    n_hid = x2h.shape[1]
    beta = float(np.clip(1.0 - dt / rc, 0.0, 1.0))
    x2h_m = x2h.astype(matmul_dtype)
    h2h_m = h2h.astype(matmul_dtype)
    u0 = jnp.zeros((B, n_hid), jnp.float32)

    def step(u, x_t):
        ix = jnp.dot(x_t.astype(matmul_dtype), x2h_m, preferred_element_type=jnp.float32)
        uh = jnp.dot(u.astype(matmul_dtype), h2h_m, preferred_element_type=jnp.float32)
        ic = ix + uh + bias
        u_new = jnp.where(u > threshold, 0.0, beta * u + ic)
        spk = (u_new > threshold).astype(jnp.float32)
        return u_new, (u_new, spk)

    _, (us, spks) = jax.lax.scan(step, u0, jnp.transpose(x_bti, (1, 0, 2)))
    return jnp.transpose(us, (1, 0, 2)), jnp.transpose(spks, (1, 0, 2))


def build_params(n_inp, n_hid, Ne, Ni, *, w_e, w_i, win_e, win_i, rho, seed=1234):
    """Deterministic synthetic parameter init matching LiquidRON.__init__ shapes."""
    rng = np.random.RandomState(seed)
    h2h = np.concatenate(
        (w_e * rng.rand(Ne + Ni, Ne), -w_i * rng.rand(Ne + Ni, Ni)), axis=1
    ).astype(np.float32)
    h2h = spectral_norm_scaling(h2h, rho).astype(np.float32)

    input_scaling_values = np.concatenate(
        (win_e * np.ones(Ne), win_i * np.ones(Ni))
    ).astype(np.float32)
    x2h = (rng.rand(n_inp, n_hid).astype(np.float32) * input_scaling_values).astype(
        np.float32
    )
    return jnp.asarray(x2h), jnp.asarray(h2h)


if __name__ == "__main__":
    # Small shapes consistent with the module's forward: x is (batch, seq, n_inp).
    B, T, n_inp = 4, 32, 4
    Ne, Ni = 24, 8
    n_hid = Ne + Ni  # 32

    # Hyperparameters
    dt, rc = 0.1, 1.0            # beta = 1 - dt/rc = 0.9
    threshold = 1.0
    bias = 0.1
    rho = 0.9
    w_e, w_i = 0.5, 0.3
    win_e, win_i = 2.0, 1.0

    x2h, h2h = build_params(
        n_inp, n_hid, Ne, Ni, w_e=w_e, w_i=w_i, win_e=win_e, win_i=win_i, rho=rho
    )

    key = jax.random.PRNGKey(0)
    x = jax.random.normal(key, (B, T, n_inp), dtype=jnp.float32)

    # batch_block=2 -> 2 independent batch blocks (exercises the "parallel" batch axis,
    # the v7x 2-TensorCore split shape); time_chunk=16 -> 2 sequential time chunks
    # (exercises the carried VMEM membrane state across grid steps).
    u_k, spk_k = liquid_ron_forward(
        x, x2h, h2h, dt=dt, rc=rc, threshold=threshold, bias=bias,
        time_chunk=16, batch_block=2,
        matmul_dtype=jnp.bfloat16, spike_dtype=jnp.bfloat16,
    )
    u_k, spk_k = jax.block_until_ready((u_k, spk_k))

    u_r, spk_r = liquid_ron_reference(
        x, x2h, h2h, dt=dt, rc=rc, threshold=threshold, bias=bias,
        matmul_dtype=jnp.bfloat16,
    )

    assert u_k.shape == (B, T, n_hid) and spk_k.shape == (B, T, n_hid)
    np.testing.assert_allclose(np.asarray(u_k), np.asarray(u_r), rtol=1e-3, atol=1e-3)

    # Spikes must match exactly except (at most) where the membrane sits inside a tiny
    # tolerance band around the threshold (review's suggested guard for bf16 rounding).
    spk_k_np, spk_r_np = np.asarray(spk_k), np.asarray(spk_r)
    near_thr = np.abs(np.asarray(u_r) - threshold) < 1e-3
    assert not np.any((spk_k_np != spk_r_np) & ~near_thr), \
        "spike mismatch away from threshold"

    print("KERNEL_OK")
</pallas_src>

<mosaic_0001>
module attributes {stable_mosaic.version = 11 : i64} {
  func.func @kernel(%arg0: i32, %arg1: i32, %arg2: memref<2x16x4xf32, #tpu.memory_space<vmem>>, %arg3: memref<4x128xbf16, #tpu.memory_space<vmem>>, %arg4: memref<128x128xbf16, #tpu.memory_space<vmem>>, %arg5: memref<2x16x128xf32, #tpu.memory_space<vmem>>, %arg6: memref<2x16x128xbf16, #tpu.memory_space<vmem>>, %arg7: memref<2x128xf32, #tpu.memory_space<vmem>>) attributes {dimension_semantics = [#tpu.dimension_semantics<parallel>, #tpu.dimension_semantics<arbitrary>], iteration_bounds = array<i64: 2, 2>, scalar_prefetch = 0 : i64, scratch_operands = 1 : i64, tpu.core_type = #tpu.core_type<tc>, window_params = [{transform_indices = @transform_0, window_bounds = array<i64: 2, 16, 4>}, {pipeline_mode = #tpu.pipeline_mode<synchronous>, transform_indices = @transform_1, window_bounds = array<i64: 4, 128>}, {pipeline_mode = #tpu.pipeline_mode<synchronous>, transform_indices = @transform_2, window_bounds = array<i64: 128, 128>}, {transform_indices = @transform_3, window_bounds = array<i64: 2, 16, 128>}, {transform_indices = @transform_4, window_bounds = array<i64: 2, 16, 128>}]} {
    %c0_i32 = arith.constant 0 : i32
    %0 = arith.cmpi eq, %arg1, %c0_i32 : i32
    %1 = arith.extui %0 : i1 to i32
    %c0_i32_0 = arith.constant 0 : i32
    %2 = arith.cmpi ne, %1, %c0_i32_0 : i32
    scf.if %2 {
      %cst_191 = arith.constant 0.000000e+00 : f32
      %318 = vector.broadcast %cst_191 : f32 to vector<2x128xf32>
      %c0_192 = arith.constant 0 : index
      %c0_193 = arith.constant 0 : index
      %319 = vector.load %arg7[%c0_192, %c0_193] : memref<2x128xf32, #tpu.memory_space<vmem>>, vector<2x128xf32>
      tpu.vector_store %arg7[%c0_192, %c0_193], %318 {strides = array<i32>} : memref<2x128xf32, #tpu.memory_space<vmem>>, vector<2x128xf32>,
    } else {
    }
    %c0 = arith.constant 0 : index
    %c0_1 = arith.constant 0 : index
    %3 = vector.load %arg3[%c0, %c0_1] : memref<4x128xbf16, #tpu.memory_space<vmem>>, vector<4x128xbf16>
    %c0_2 = arith.constant 0 : index
    %c0_3 = arith.constant 0 : index
    %4 = vector.load %arg4[%c0_2, %c0_3] : memref<128x128xbf16, #tpu.memory_space<vmem>>, vector<128x128xbf16>
    %c0_4 = arith.constant 0 : index
    %c0_5 = arith.constant 0 : index
    %5 = vector.load %arg7[%c0_4, %c0_5] : memref<2x128xf32, #tpu.memory_space<vmem>>, vector<2x128xf32>
    %c0_6 = arith.constant 0 : index
    %c0_7 = arith.constant 0 : index
    %c0_8 = arith.constant 0 : index
    %6 = vector.load %arg2[%c0_6, %c0_7, %c0_8] : memref<2x16x4xf32, #tpu.memory_space<vmem>>, vector<2x1x4xf32>
    %7 = vector.shape_cast %6 : vector<2x1x4xf32> to vector<2x4xf32>
    %8 = arith.truncf %7 : vector<2x4xf32> to vector<2x4xbf16>
    %cst = arith.constant dense<0.000000e+00> : vector<2x128xf32>
    %9 = tpu.matmul %8, %3, %cst {dimension_numbers = #tpu.dot_dimension_numbers<[1], [0], [0], [1], [0, 0, 1, 1], [], []>} : vector<2x4xbf16>, vector<4x128xbf16>, vector<2x128xf32> -> vector<2x128xf32>
    %10 = arith.truncf %5 : vector<2x128xf32> to vector<2x128xbf16>
    %cst_9 = arith.constant dense<0.000000e+00> : vector<2x128xf32>
    %11 = tpu.matmul %10, %4, %cst_9 {dimension_numbers = #tpu.dot_dimension_numbers<[1], [0], [0], [1], [0, 0, 1, 1], [], []>} : vector<2x128xbf16>, vector<128x128xbf16>, vector<2x128xf32> -> vector<2x128xf32>
    %12 = arith.addf %9, %11 : vector<2x128xf32>
    %cst_10 = arith.constant 1.000000e-01 : f32
    %13 = vector.broadcast %cst_10 : f32 to vector<2x128xf32>
    %14 = arith.addf %12, %13 : vector<2x128xf32>
    %cst_11 = arith.constant 1.000000e+00 : f32
    %15 = vector.broadcast %cst_11 : f32 to vector<2x128xf32>
    %16 = arith.cmpf ogt, %5, %15 : vector<2x128xf32>
    %cst_12 = arith.constant 0.899999976 : f32
    %17 = vector.broadcast %cst_12 : f32 to vector<2x128xf32>
    %18 = arith.mulf %17, %5 : vector<2x128xf32>
    %19 = arith.addf %18, %14 : vector<2x128xf32>
    %cst_13 = arith.constant 0.000000e+00 : f32
    %20 = vector.broadcast %cst_13 : f32 to vector<2x128xf32>
    %21 = arith.select %16, %20, %19 : vector<2x128xi1>, vector<2x128xf32>
    %c0_14 = arith.constant 0 : index
    %c0_15 = arith.constant 0 : index
    %c0_16 = arith.constant 0 : index
    %22 = vector.load %arg5[%c0_14, %c0_15, %c0_16] : memref<2x16x128xf32, #tpu.memory_space<vmem>>, vector<2x1x128xf32>
    %23 = vector.shape_cast %22 : vector<2x1x128xf32> to vector<2x128xf32>
    %24 = vector.shape_cast %21 : vector<2x128xf32> to vector<2x1x128xf32>
    tpu.vector_store %arg5[%c0_14, %c0_15, %c0_16], %24 {strides = array<i32>} : memref<2x16x128xf32, #tpu.memory_space<vmem>>, vector<2x1x128xf32>,
    %c0_17 = arith.constant 0 : index
    %c1 = arith.constant 1 : index
    %c0_18 = arith.constant 0 : index
    %25 = vector.load %arg2[%c0_17, %c1, %c0_18] : memref<2x16x4xf32, #tpu.memory_space<vmem>>, vector<2x1x4xf32>
    %26 = vector.shape_cast %25 : vector<2x1x4xf32> to vector<2x4xf32>
    %27 = arith.truncf %26 : vector<2x4xf32> to vector<2x4xbf16>
    %cst_19 = arith.constant dense<0.000000e+00> : vector<2x128xf32>
    %28 = tpu.matmul %27, %3, %cst_19 {dimension_numbers = #tpu.dot_dimension_numbers<[1], [0], [0], [1], [0, 0, 1, 1], [], []>} : vector<2x4xbf16>, vector<4x128xbf16>, vector<2x128xf32> -> vector<2x128xf32>
    %29 = arith.truncf %21 : vector<2x128xf32> to vector<2x128xbf16>
    %cst_20 = arith.constant dense<0.000000e+00> : vector<2x128xf32>
    %30 = tpu.matmul %29, %4, %cst_20 {dimension_numbers = #tpu.dot_dimension_numbers<[1], [0], [0], [1], [0, 0, 1, 1], [], []>} : vector<2x128xbf16>, vector<128x128xbf16>, vector<2x128xf32> -> vector<2x128xf32>
    %31 = arith.addf %28, %30 : vector<2x128xf32>
    %cst_21 = arith.constant 1.000000e-01 : f32
    %32 = vector.broadcast %cst_21 : f32 to vector<2x128xf32>
    %33 = arith.addf %31, %32 : vector<2x128xf32>
    %cst_22 = arith.constant 1.000000e+00 : f32
    %34 = vector.broadcast %cst_22 : f32 to vector<2x128xf32>
    %35 = arith.cmpf ogt, %21, %34 : vector<2x128xf32>
    %cst_23 = arith.constant 0.899999976 : f32
    %36 = vector.broadcast %cst_23 : f32 to vector<2x128xf32>
    %37 = arith.mulf %36, %21 : vector<2x128xf32>
    %38 = arith.addf %37, %33 : vector<2x128xf32>
    %cst_24 = arith.constant 0.000000e+00 : f32
    %39 = vector.broadcast %cst_24 : f32 to vector<2x128xf32>
    %40 = arith.select %35, %39, %38 : vector<2x128xi1>, vector<2x128xf32>
    %c0_25 = arith.constant 0 : index
    %c1_26 = arith.constant 1 : index
    %c0_27 = arith.constant 0 : index
    %41 = vector.load %arg5[%c0_25, %c1_26, %c0_27] : memref<2x16x128xf32, #tpu.memory_space<vmem>>, vector<2x1x128xf32>
    %42 = vector.shape_cast %41 : vector<2x1x128xf32> to vector<2x128xf32>
    %43 = vector.shape_cast %40 : vector<2x128xf32> to vector<2x1x128xf32>
    tpu.vector_store %arg5[%c0_25, %c1_26, %c0_27], %43 {strides = array<i32>} : memref<2x16x128xf32, #tpu.memory_space<vmem>>, vector<2x1x128xf32>,
    %c0_28 = arith.constant 0 : index
    %c2 = arith.constant 2 : index
    %c0_29 = arith.constant 0 : index
    %44 = vector.load %arg2[%c0_28, %c2, %c0_29] : memref<2x16x4xf32, #tpu.memory_space<vmem>>, vector<2x1x4xf32>
    %45 = vector.shape_cast %44 : vector<2x1x4xf32> to vector<2x4xf32>
    %46 = arith.truncf %45 : vector<2x4xf32> to vector<2x4xbf16>
    %cst_30 = arith.constant dense<0.000000e+00> : vector<2x128xf32>
    %47 = tpu.matmul %46, %3, %cst_30 {dimension_numbers = #tpu.dot_dimension_numbers<[1], [0], [0], [1], [0, 0, 1, 1], [], []>} : vector<2x4xbf16>, vector<4x128xbf16>, vector<2x128xf32> -> vector<2x128xf32>
    %48 = arith.truncf %40 : vector<2x128xf32> to vector<2x128xbf16>
    %cst_31 = arith.constant dense<0.000000e+00> : vector<2x128xf32>
    %49 = tpu.matmul %48, %4, %cst_31 {dimension_numbers = #tpu.dot_dimension_numbers<[1], [0], [0], [1], [0, 0, 1, 1], [], []>} : vector<2x128xbf16>, vector<128x128xbf16>, vector<2x128xf32> -> vector<2x128xf32>
    %50 = arith.addf %47, %49 : vector<2x128xf32>
    %cst_32 = arith.constant 1.000000e-01 : f32
    %51 = vector.broadcast %cst_32 : f32 to vector<2x128xf32>
    %52 = arith.addf %50, %51 : vector<2x128xf32>
    %cst_33 = arith.constant 1.000000e+00 : f32
    %53 = vector.broadcast %cst_33 : f32 to vector<2x128xf32>
    %54 = arith.cmpf ogt, %40, %53 : vector<2x128xf32>
    %cst_34 = arith.constant 0.899999976 : f32
    %55 = vector.broadcast %cst_34 : f32 to vector<2x128xf32>
    %56 = arith.mulf %55, %40 : vector<2x128xf32>
    %57 = arith.addf %56, %52 : vector<2x128xf32>
    %cst_35 = arith.constant 0.000000e+00 : f32
    %58 = vector.broadcast %cst_35 : f32 to vector<2x128xf32>
    %59 = arith.select %54, %58, %57 : vector<2x128xi1>, vector<2x128xf32>
    %c0_36 = arith.constant 0 : index
    %c2_37 = arith.constant 2 : index
    %c0_38 = arith.constant 0 : index
    %60 = vector.load %arg5[%c0_36, %c2_37, %c0_38] : memref<2x16x128xf32, #tpu.memory_space<vmem>>, vector<2x1x128xf32>
    %61 = vector.shape_cast %60 : vector<2x1x128xf32> to vector<2x128xf32>
    %62 = vector.shape_cast %59 : vector<2x128xf32> to vector<2x1x128xf32>
    tpu.vector_store %arg5[%c0_36, %c2_37, %c0_38], %62 {strides = array<i32>} : memref<2x16x128xf32, #tpu.memory_space<vmem>>, vector<2x1x128xf32>,
    %c0_39 = arith.constant 0 : index
    %c3 = arith.constant 3 : index
    %c0_40 = arith.constant 0 : index
    %63 = vector.load %arg2[%c0_39, %c3, %c0_40] : memref<2x16x4xf32, #tpu.memory_space<vmem>>, vector<2x1x4xf32>
    %64 = vector.shape_cast %63 : vector<2x1x4xf32> to vector<2x4xf32>
    %65 = arith.truncf %64 : vector<2x4xf32> to vector<2x4xbf16>
    %cst_41 = arith.constant dense<0.000000e+00> : vector<2x128xf32>
    %66 = tpu.matmul %65, %3, %cst_41 {dimension_numbers = #tpu.dot_dimension_numbers<[1], [0], [0], [1], [0, 0, 1, 1], [], []>} : vector<2x4xbf16>, vector<4x128xbf16>, vector<2x128xf32> -> vector<2x128xf32>
    %67 = arith.truncf %59 : vector<2x128xf32> to vector<2x128xbf16>
    %cst_42 = arith.constant dense<0.000000e+00> : vector<2x128xf32>
    %68 = tpu.matmul %67, %4, %cst_42 {dimension_numbers = #tpu.dot_dimension_numbers<[1], [0], [0], [1], [0, 0, 1, 1], [], []>} : vector<2x128xbf16>, vector<128x128xbf16>, vector<2x128xf32> -> vector<2x128xf32>
    %69 = arith.addf %66, %68 : vector<2x128xf32>
    %cst_43 = arith.constant 1.000000e-01 : f32
    %70 = vector.broadcast %cst_43 : f32 to vector<2x128xf32>
    %71 = arith.addf %69, %70 : vector<2x128xf32>
    %cst_44 = arith.constant 1.000000e+00 : f32
    %72 = vector.broadcast %cst_44 : f32 to vector<2x128xf32>
    %73 = arith.cmpf ogt, %59, %72 : vector<2x128xf32>
    %cst_45 = arith.constant 0.899999976 : f32
    %74 = vector.broadcast %cst_45 : f32 to vector<2x128xf32>
    %75 = arith.mulf %74, %59 : vector<2x128xf32>
    %76 = arith.addf %75, %71 : vector<2x128xf32>
    %cst_46 = arith.constant 0.000000e+00 : f32
    %77 = vector.broadcast %cst_46 : f32 to vector<2x128xf32>
    %78 = arith.select %73, %77, %76 : vector<2x128xi1>, vector<2x128xf32>
    %c0_47 = arith.constant 0 : index
    %c3_48 = arith.constant 3 : index
    %c0_49 = arith.constant 0 : index
    %79 = vector.load %arg5[%c0_47, %c3_48, %c0_49] : memref<2x16x128xf32, #tpu.memory_space<vmem>>, vector<2x1x128xf32>
    %80 = vector.shape_cast %79 : vector<2x1x128xf32> to vector<2x128xf32>
    %81 = vector.shape_cast %78 : vector<2x128xf32> to vector<2x1x128xf32>
    tpu.vector_store %arg5[%c0_47, %c3_48, %c0_49], %81 {strides = array<i32>} : memref<2x16x128xf32, #tpu.memory_space<vmem>>, vector<2x1x128xf32>,
    %c0_50 = arith.constant 0 : index
    %c4 = arith.constant 4 : index
    %c0_51 = arith.constant 0 : index
    %82 = vector.load %arg2[%c0_50, %c4, %c0_51] : memref<2x16x4xf32, #tpu.memory_space<vmem>>, vector<2x1x4xf32>
    %83 = vector.shape_cast %82 : vector<2x1x4xf32> to vector<2x4xf32>
    %84 = arith.truncf %83 : vector<2x4xf32> to vector<2x4xbf16>
    %cst_52 = arith.constant dense<0.000000e+00> : vector<2x128xf32>
    %85 = tpu.matmul %84, %3, %cst_52 {dimension_numbers = #tpu.dot_dimension_numbers<[1], [0], [0], [1], [0, 0, 1, 1], [], []>} : vector<2x4xbf16>, vector<4x128xbf16>, vector<2x128xf32> -> vector<2x128xf32>
    %86 = arith.truncf %78 : vector<2x128xf32> to vector<2x128xbf16>
    %cst_53 = arith.constant dense<0.000000e+00> : vector<2x128xf32>
    %87 = tpu.matmul %86, %4, %cst_53 {dimension_numbers = #tpu.dot_dimension_numbers<[1], [0], [0], [1], [0, 0, 1, 1], [], []>} : vector<2x128xbf16>, vector<128x128xbf16>, vector<2x128xf32> -> vector<2x128xf32>
    %88 = arith.addf %85, %87 : vector<2x128xf32>
    %cst_54 = arith.constant 1.000000e-01 : f32
    %89 = vector.broadcast %cst_54 : f32 to vector<2x128xf32>
    %90 = arith.addf %88, %89 : vector<2x128xf32>
    %cst_55 = arith.constant 1.000000e+00 : f32
    %91 = vector.broadcast %cst_55 : f32 to vector<2x128xf32>
    %92 = arith.cmpf ogt, %78, %91 : vector<2x128xf32>
    %cst_56 = arith.constant 0.899999976 : f32
    %93 = vector.broadcast %cst_56 : f32 to vector<2x128xf32>
    %94 = arith.mulf %93, %78 : vector<2x128xf32>
    %95 = arith.addf %94, %90 : vector<2x128xf32>
    %cst_57 = arith.constant 0.000000e+00 : f32
    %96 = vector.broadcast %cst_57 : f32 to vector<2x128xf32>
    %97 = arith.select %92, %96, %95 : vector<2x128xi1>, vector<2x128xf32>
    %c0_58 = arith.constant 0 : index
    %c4_59 = arith.constant 4 : index
    %c0_60 = arith.constant 0 : index
    %98 = vector.load %arg5[%c0_58, %c4_59, %c0_60] : memref<2x16x128xf32, #tpu.memory_space<vmem>>, vector<2x1x128xf32>
    %99 = vector.shape_cast %98 : vector<2x1x128xf32> to vector<2x128xf32>
    %100 = vector.shape_cast %97 : vector<2x128xf32> to vector<2x1x128xf32>
    tpu.vector_store %arg5[%c0_58, %c4_59, %c0_60], %100 {strides = array<i32>} : memref<2x16x128xf32, #tpu.memory_space<vmem>>, vector<2x1x128xf32>,
    %c0_61 = arith.constant 0 : index
    %c5 = arith.constant 5 : index
    %c0_62 = arith.constant 0 : index
    %101 = vector.load %arg2[%c0_61, %c5, %c0_62] : memref<2x16x4xf32, #tpu.memory_space<vmem>>, vector<2x1x4xf32>
    %102 = vector.shape_cast %101 : vector<2x1x4xf32> to vector<2x4xf32>
    %103 = arith.truncf %102 : vector<2x4xf32> to vector<2x4xbf16>
    %cst_63 = arith.constant dense<0.000000e+00> : vector<2x128xf32>
    %104 = tpu.matmul %103, %3, %cst_63 {dimension_numbers = #tpu.dot_dimension_numbers<[1], [0], [0], [1], [0, 0, 1, 1], [], []>} : vector<2x4xbf16>, vector<4x128xbf16>, vector<2x128xf32> -> vector<2x128xf32>
    %105 = arith.truncf %97 : vector<2x128xf32> to vector<2x128xbf16>
    %cst_64 = arith.constant dense<0.000000e+00> : vector<2x128xf32>
    %106 = tpu.matmul %105, %4, %cst_64 {dimension_numbers = #tpu.dot_dimension_numbers<[1], [0], [0], [1], [0, 0, 1, 1], [], []>} : vector<2x128xbf16>, vector<128x128xbf16>, vector<2x128xf32> -> vector<2x128xf32>
    %107 = arith.addf %104, %106 : vector<2x128xf32>
    %cst_65 = arith.constant 1.000000e-01 : f32
    %108 = vector.broadcast %cst_65 : f32 to vector<2x128xf32>
    %109 = arith.addf %107, %108 : vector<2x128xf32>
    %cst_66 = arith.constant 1.000000e+00 : f32
    %110 = vector.broadcast %cst_66 : f32 to vector<2x128xf32>
    %111 = arith.cmpf ogt, %97, %110 : vector<2x128xf32>
    %cst_67 = arith.constant 0.899999976 : f32
    %112 = vector.broadcast %cst_67 : f32 to vector<2x128xf32>
    %113 = arith.mulf %112, %97 : vector<2x128xf32>
    %114 = arith.addf %113, %109 : vector<2x128xf32>
    %cst_68 = arith.constant 0.000000e+00 : f32
    %115 = vector.broadcast %cst_68 : f32 to vector<2x128xf32>
    %116 = arith.select %111, %115, %114 : vector<2x128xi1>, vector<2x128xf32>
    %c0_69 = arith.constant 0 : index
    %c5_70 = arith.constant 5 : index
    %c0_71 = arith.constant 0 : index
    %117 = vector.load %arg5[%c0_69, %c5_70, %c0_71] : memref<2x16x128xf32, #tpu.memory_space<vmem>>, vector<2x1x128xf32>
    %118 = vector.shape_cast %117 : vector<2x1x128xf32> to vector<2x128xf32>
    %119 = vector.shape_cast %116 : vector<2x128xf32> to vector<2x1x128xf32>
    tpu.vector_store %arg5[%c0_69, %c5_70, %c0_71], %119 {strides = array<i32>} : memref<2x16x128xf32, #tpu.memory_space<vmem>>, vector<2x1x128xf32>,
    %c0_72 = arith.constant 0 : index
    %c6 = arith.constant 6 : index
    %c0_73 = arith.constant 0 : index
    %120 = vector.load %arg2[%c0_72, %c6, %c0_73] : memref<2x16x4xf32, #tpu.memory_space<vmem>>, vector<2x1x4xf32>
    %121 = vector.shape_cast %120 : vector<2x1x4xf32> to vector<2x4xf32>
    %122 = arith.truncf %121 : vector<2x4xf32> to vector<2x4xbf16>
    %cst_74 = arith.constant dense<0.000000e+00> : vector<2x128xf32>
    %123 = tpu.matmul %122, %3, %cst_74 {dimension_numbers = #tpu.dot_dimension_numbers<[1], [0], [0], [1], [0, 0, 1, 1], [], []>} : vector<2x4xbf16>, vector<4x128xbf16>, vector<2x128xf32> -> vector<2x128xf32>
    %124 = arith.truncf %116 : vector<2x128xf32> to vector<2x128xbf16>
    %cst_75 = arith.constant dense<0.000000e+00> : vector<2x128xf32>
    %125 = tpu.matmul %124, %4, %cst_75 {dimension_numbers = #tpu.dot_dimension_numbers<[1], [0], [0], [1], [0, 0, 1, 1], [], []>} : vector<2x128xbf16>, vector<128x128xbf16>, vector<2x128xf32> -> vector<2x128xf32>
    %126 = arith.addf %123, %125 : vector<2x128xf32>
    %cst_76 = arith.constant 1.000000e-01 : f32
    %127 = vector.broadcast %cst_76 : f32 to vector<2x128xf32>
    %128 = arith.addf %126, %127 : vector<2x128xf32>
    %cst_77 = arith.constant 1.000000e+00 : f32
    %129 = vector.broadcast %cst_77 : f32 to vector<2x128xf32>
    %130 = arith.cmpf ogt, %116, %129 : vector<2x128xf32>
    %cst_78 = arith.constant 0.899999976 : f32
    %131 = vector.broadcast %cst_78 : f32 to vector<2x128xf32>
    %132 = arith.mulf %131, %116 : vector<2x128xf32>
    %133 = arith.addf %132, %128 : vector<2x128xf32>
    %cst_79 = arith.constant 0.000000e+00 : f32
    %134 = vector.broadcast %cst_79 : f32 to vector<2x128xf32>
    %135 = arith.select %130, %134, %133 : vector<2x128xi1>, vector<2x128xf32>
    %c0_80 = arith.constant 0 : index
    %c6_81 = arith.constant 6 : index
    %c0_82 = arith.constant 0 : index
    %136 = vector.load %arg5[%c0_80, %c6_81, %c0_82] : memref<2x16x128xf32, #tpu.memory_space<vmem>>, vector<2x1x128xf32>
    %137 = vector.shape_cast %136 : vector<2x1x128xf32> to vector<2x128xf32>
    %138 = vector.shape_cast %135 : vector<2x128xf32> to vector<2x1x128xf32>
    tpu.vector_store %arg5[%c0_80, %c6_81, %c0_82], %138 {strides = array<i32>} : memref<2x16x128xf32, #tpu.memory_space<vmem>>, vector<2x1x128xf32>,
    %c0_83 = arith.constant 0 : index
    %c7 = arith.constant 7 : index
    %c0_84 = arith.constant 0 : index
    %139 = vector.load %arg2[%c0_83, %c7, %c0_84] : memref<2x16x4xf32, #tpu.memory_space<vmem>>, vector<2x1x4xf32>
    %140 = vector.shape_cast %139 : vector<2x1x4xf32> to vector<2x4xf32>
    %141 = arith.truncf %140 : vector<2x4xf32> to vector<2x4xbf16>
    %cst_85 = arith.constant dense<0.000000e+00> : vector<2x128xf32>
    %142 = tpu.matmul %141, %3, %cst_85 {dimension_numbers = #tpu.dot_dimension_numbers<[1], [0], [0], [1], [0, 0, 1, 1], [], []>} : vector<2x4xbf16>, vector<4x128xbf16>, vector<2x128xf32> -> vector<2x128xf32>
    %143 = arith.truncf %135 : vector<2x128xf32> to vector<2x128xbf16>
    %cst_86 = arith.constant dense<0.000000e+00> : vector<2x128xf32>
    %144 = tpu.matmul %143, %4, %cst_86 {dimension_numbers = #tpu.dot_dimension_numbers<[1], [0], [0], [1], [0, 0, 1, 1], [], []>} : vector<2x128xbf16>, vector<128x128xbf16>, vector<2x128xf32> -> vector<2x128xf32>
    %145 = arith.addf %142, %144 : vector<2x128xf32>
    %cst_87 = arith.constant 1.000000e-01 : f32
    %146 = vector.broadcast %cst_87 : f32 to vector<2x128xf32>
    %147 = arith.addf %145, %146 : vector<2x128xf32>
    %cst_88 = arith.constant 1.000000e+00 : f32
    %148 = vector.broadcast %cst_88 : f32 to vector<2x128xf32>
    %149 = arith.cmpf ogt, %135, %148 : vector<2x128xf32>
    %cst_89 = arith.constant 0.899999976 : f32
    %150 = vector.broadcast %cst_89 : f32 to vector<2x128xf32>
    %151 = arith.mulf %150, %135 : vector<2x128xf32>
    %152 = arith.addf %151, %147 : vector<2x128xf32>
    %cst_90 = arith.constant 0.000000e+00 : f32
    %153 = vector.broadcast %cst_90 : f32 to vector<2x128xf32>
    %154 = arith.select %149, %153, %152 : vector<2x128xi1>, vector<2x128xf32>
    %c0_91 = arith.constant 0 : index
    %c7_92 = arith.constant 7 : index
    %c0_93 = arith.constant 0 : index
    %155 = vector.load %arg5[%c0_91, %c7_92, %c0_93] : memref<2x16x128xf32, #tpu.memory_space<vmem>>, vector<2x1x128xf32>
    %156 = vector.shape_cast %155 : vector<2x1x128xf32> to vector<2x128xf32>
    %157 = vector.shape_cast %154 : vector<2x128xf32> to vector<2x1x128xf32>
    tpu.vector_store %arg5[%c0_91, %c7_92, %c0_93], %157 {strides = array<i32>} : memref<2x16x128xf32, #tpu.memory_space<vmem>>, vector<2x1x128xf32>,
    %c0_94 = arith.constant 0 : index
    %c8 = arith.constant 8 : index
    %c0_95 = arith.constant 0 : index
    %158 = vector.load %arg2[%c0_94, %c8, %c0_95] : memref<2x16x4xf32, #tpu.memory_space<vmem>>, vector<2x1x4xf32>
    %159 = vector.shape_cast %158 : vector<2x1x4xf32> to vector<2x4xf32>
    %160 = arith.truncf %159 : vector<2x4xf32> to vector<2x4xbf16>
    %cst_96 = arith.constant dense<0.000000e+00> : vector<2x128xf32>
    %161 = tpu.matmul %160, %3, %cst_96 {dimension_numbers = #tpu.dot_dimension_numbers<[1], [0], [0], [1], [0, 0, 1, 1], [], []>} : vector<2x4xbf16>, vector<4x128xbf16>, vector<2x128xf32> -> vector<2x128xf32>
    %162 = arith.truncf %154 : vector<2x128xf32> to vector<2x128xbf16>
    %cst_97 = arith.constant dense<0.000000e+00> : vector<2x128xf32>
    %163 = tpu.matmul %162, %4, %cst_97 {dimension_numbers = #tpu.dot_dimension_numbers<[1], [0], [0], [1], [0, 0, 1, 1], [], []>} : vector<2x128xbf16>, vector<128x128xbf16>, vector<2x128xf32> -> vector<2x128xf32>
    %164 = arith.addf %161, %163 : vector<2x128xf32>
    %cst_98 = arith.constant 1.000000e-01 : f32
    %165 = vector.broadcast %cst_98 : f32 to vector<2x128xf32>
    %166 = arith.addf %164, %165 : vector<2x128xf32>
    %cst_99 = arith.constant 1.000000e+00 : f32
    %167 = vector.broadcast %cst_99 : f32 to vector<2x128xf32>
    %168 = arith.cmpf ogt, %154, %167 : vector<2x128xf32>
    %cst_100 = arith.constant 0.899999976 : f32
    %169 = vector.broadcast %cst_100 : f32 to vector<2x128xf32>
    %170 = arith.mulf %169, %154 : vector<2x128xf32>
    %171 = arith.addf %170, %166 : vector<2x128xf32>
    %cst_101 = arith.constant 0.000000e+00 : f32
    %172 = vector.broadcast %cst_101 : f32 to vector<2x128xf32>
    %173 = arith.select %168, %172, %171 : vector<2x128xi1>, vector<2x128xf32>
    %c0_102 = arith.constant 0 : index
    %c8_103 = arith.constant 8 : index
    %c0_104 = arith.constant 0 : index
    %174 = vector.load %arg5[%c0_102, %c8_103, %c0_104] : memref<2x16x128xf32, #tpu.memory_space<vmem>>, vector<2x1x128xf32>
    %175 = vector.shape_cast %174 : vector<2x1x128xf32> to vector<2x128xf32>
    %176 = vector.shape_cast %173 : vector<2x128xf32> to vector<2x1x128xf32>
    tpu.vector_store %arg5[%c0_102, %c8_103, %c0_104], %176 {strides = array<i32>} : memref<2x16x128xf32, #tpu.memory_space<vmem>>, vector<2x1x128xf32>,
    %c0_105 = arith.constant 0 : index
    %c9 = arith.constant 9 : index
    %c0_106 = arith.constant 0 : index
    %177 = vector.load %arg2[%c0_105, %c9, %c0_106] : memref<2x16x4xf32, #tpu.memory_space<vmem>>, vector<2x1x4xf32>
    %178 = vector.shape_cast %177 : vector<2x1x4xf32> to vector<2x4xf32>
    %179 = arith.truncf %178 : vector<2x4xf32> to vector<2x4xbf16>
    %cst_107 = arith.constant dense<0.000000e+00> : vector<2x128xf32>
    %180 = tpu.matmul %179, %3, %cst_107 {dimension_numbers = #tpu.dot_dimension_numbers<[1], [0], [0], [1], [0, 0, 1, 1], [], []>} : vector<2x4xbf16>, vector<4x128xbf16>, vector<2x128xf32> -> vector<2x128xf32>
    %181 = arith.truncf %173 : vector<2x128xf32> to vector<2x128xbf16>
    %cst_108 = arith.constant dense<0.000000e+00> : vector<2x128xf32>
    %182 = tpu.matmul %181, %4, %cst_108 {dimension_numbers = #tpu.dot_dimension_numbers<[1], [0], [0], [1], [0, 0, 1, 1], [], []>} : vector<2x128xbf16>, vector<128x128xbf16>, vector<2x128xf32> -> vector<2x128xf32>
    %183 = arith.addf %180, %182 : vector<2x128xf32>
    %cst_109 = arith.constant 1.000000e-01 : f32
    %184 = vector.broadcast %cst_109 : f32 to vector<2x128xf32>
    %185 = arith.addf %183, %184 : vector<2x128xf32>
    %cst_110 = arith.constant 1.000000e+00 : f32
    %186 = vector.broadcast %cst_110 : f32 to vector<2x128xf32>
    %187 = arith.cmpf ogt, %173, %186 : vector<2x128xf32>
    %cst_111 = arith.constant 0.899999976 : f32
    %188 = vector.broadcast %cst_111 : f32 to vector<2x128xf32>
    %189 = arith.mulf %188, %173 : vector<2x128xf32>
    %190 = arith.addf %189, %185 : vector<2x128xf32>
    %cst_112 = arith.constant 0.000000e+00 : f32
    %191 = vector.broadcast %cst_112 : f32 to vector<2x128xf32>
    %192 = arith.select %187, %191, %190 : vector<2x128xi1>, vector<2x128xf32>
    %c0_113 = arith.constant 0 : index
    %c9_114 = arith.constant 9 : index
    %c0_115 = arith.constant 0 : index
    %193 = vector.load %arg5[%c0_113, %c9_114, %c0_115] : memref<2x16x128xf32, #tpu.memory_space<vmem>>, vector<2x1x128xf32>
    %194 = vector.shape_cast %193 : vector<2x1x128xf32> to vector<2x128xf32>
    %195 = vector.shape_cast %192 : vector<2x128xf32> to vector<2x1x128xf32>
    tpu.vector_store %arg5[%c0_113, %c9_114, %c0_115], %195 {strides = array<i32>} : memref<2x16x128xf32, #tpu.memory_space<vmem>>, vector<2x1x128xf32>,
    %c0_116 = arith.constant 0 : index
    %c10 = arith.constant 10 : index
    %c0_117 = arith.constant 0 : index
    %196 = vector.load %arg2[%c0_116, %c10, %c0_117] : memref<2x16x4xf32, #tpu.memory_space<vmem>>, vector<2x1x4xf32>
    %197 = vector.shape_cast %196 : vector<2x1x4xf32> to vector<2x4xf32>
    %198 = arith.truncf %197 : vector<2x4xf32> to vector<2x4xbf16>
    %cst_118 = arith.constant dense<0.000000e+00> : vector<2x128xf32>
    %199 = tpu.matmul %198, %3, %cst_118 {dimension_numbers = #tpu.dot_dimension_numbers<[1], [0], [0], [1], [0, 0, 1, 1], [], []>} : vector<2x4xbf16>, vector<4x128xbf16>, vector<2x128xf32> -> vector<2x128xf32>
    %200 = arith.truncf %192 : vector<2x128xf32> to vector<2x128xbf16>
    %cst_119 = arith.constant dense<0.000000e+00> : vector<2x128xf32>
    %201 = tpu.matmul %200, %4, %cst_119 {dimension_numbers = #tpu.dot_dimension_numbers<[1], [0], [0], [1], [0, 0, 1, 1], [], []>} : vector<2x128xbf16>, vector<128x128xbf16>, vector<2x128xf32> -> vector<2x128xf32>
    %202 = arith.addf %199, %201 : vector<2x128xf32>
    %cst_120 = arith.constant 1.000000e-01 : f32
    %203 = vector.broadcast %cst_120 : f32 to vector<2x128xf32>
    %204 = arith.addf %202, %203 : vector<2x128xf32>
    %cst_121 = arith.constant 1.000000e+00 : f32
    %205 = vector.broadcast %cst_121 : f32 to vector<2x128xf32>
    %206 = arith.cmpf ogt, %192, %205 : vector<2x128xf32>
    %cst_122 = arith.constant 0.899999976 : f32
    %207 = vector.broadcast %cst_122 : f32 to vector<2x128xf32>
    %208 = arith.mulf %207, %192 : vector<2x128xf32>
    %209 = arith.addf %208, %204 : vector<2x128xf32>
    %cst_123 = arith.constant 0.000000e+00 : f32
    %210 = vector.broadcast %cst_123 : f32 to vector<2x128xf32>
    %211 = arith.select %206, %210, %209 : vector<2x128xi1>, vector<2x128xf32>
    %c0_124 = arith.constant 0 : index
    %c10_125 = arith.constant 10 : index
    %c0_126 = arith.constant 0 : index
    %212 = vector.load %arg5[%c0_124, %c10_125, %c0_126] : memref<2x16x128xf32, #tpu.memory_space<vmem>>, vector<2x1x128xf32>
    %213 = vector.shape_cast %212 : vector<2x1x128xf32> to vector<2x128xf32>
    %214 = vector.shape_cast %211 : vector<2x128xf32> to vector<2x1x128xf32>
    tpu.vector_store %arg5[%c0_124, %c10_125, %c0_126], %214 {strides = array<i32>} : memref<2x16x128xf32, #tpu.memory_space<vmem>>, vector<2x1x128xf32>,
    %c0_127 = arith.constant 0 : index
    %c11 = arith.constant 11 : index
    %c0_128 = arith.constant 0 : index
    %215 = vector.load %arg2[%c0_127, %c11, %c0_128] : memref<2x16x4xf32, #tpu.memory_space<vmem>>, vector<2x1x4xf32>
    %216 = vector.shape_cast %215 : vector<2x1x4xf32> to vector<2x4xf32>
    %217 = arith.truncf %216 : vector<2x4xf32> to vector<2x4xbf16>
    %cst_129 = arith.constant dense<0.000000e+00> : vector<2x128xf32>
    %218 = tpu.matmul %217, %3, %cst_129 {dimension_numbers = #tpu.dot_dimension_numbers<[1], [0], [0], [1], [0, 0, 1, 1], [], []>} : vector<2x4xbf16>, vector<4x128xbf16>, vector<2x128xf32> -> vector<2x128xf32>
    %219 = arith.truncf %211 : vector<2x128xf32> to vector<2x128xbf16>
    %cst_130 = arith.constant dense<0.000000e+00> : vector<2x128xf32>
    %220 = tpu.matmul %219, %4, %cst_130 {dimension_numbers = #tpu.dot_dimension_numbers<[1], [0], [0], [1], [0, 0, 1, 1], [], []>} : vector<2x128xbf16>, vector<128x128xbf16>, vector<2x128xf32> -> vector<2x128xf32>
    %221 = arith.addf %218, %220 : vector<2x128xf32>
    %cst_131 = arith.constant 1.000000e-01 : f32
    %222 = vector.broadcast %cst_131 : f32 to vector<2x128xf32>
    %223 = arith.addf %221, %222 : vector<2x128xf32>
    %cst_132 = arith.constant 1.000000e+00 : f32
    %224 = vector.broadcast %cst_132 : f32 to vector<2x128xf32>
    %225 = arith.cmpf ogt, %211, %224 : vector<2x128xf32>
    %cst_133 = arith.constant 0.899999976 : f32
    %226 = vector.broadcast %cst_133 : f32 to vector<2x128xf32>
    %227 = arith.mulf %226, %211 : vector<2x128xf32>
    %228 = arith.addf %227, %223 : vector<2x128xf32>
    %cst_134 = arith.constant 0.000000e+00 : f32
    %229 = vector.broadcast %cst_134 : f32 to vector<2x128xf32>
    %230 = arith.select %225, %229, %228 : vector<2x128xi1>, vector<2x128xf32>
    %c0_135 = arith.constant 0 : index
    %c11_136 = arith.constant 11 : index
    %c0_137 = arith.constant 0 : index
    %231 = vector.load %arg5[%c0_135, %c11_136, %c0_137] : memref<2x16x128xf32, #tpu.memory_space<vmem>>, vector<2x1x128xf32>
    %232 = vector.shape_cast %231 : vector<2x1x128xf32> to vector<2x128xf32>
    %233 = vector.shape_cast %230 : vector<2x128xf32> to vector<2x1x128xf32>
    tpu.vector_store %arg5[%c0_135, %c11_136, %c0_137], %233 {strides = array<i32>} : memref<2x16x128xf32, #tpu.memory_space<vmem>>, vector<2x1x128xf32>,
    %c0_138 = arith.constant 0 : index
    %c12 = arith.constant 12 : index
    %c0_139 = arith.constant 0 : index
    %234 = vector.load %arg2[%c0_138, %c12, %c0_139] : memref<2x16x4xf32, #tpu.memory_space<vmem>>, vector<2x1x4xf32>
    %235 = vector.shape_cast %234 : vector<2x1x4xf32> to vector<2x4xf32>
    %236 = arith.truncf %235 : vector<2x4xf32> to vector<2x4xbf16>
    %cst_140 = arith.constant dense<0.000000e+00> : vector<2x128xf32>
    %237 = tpu.matmul %236, %3, %cst_140 {dimension_numbers = #tpu.dot_dimension_numbers<[1], [0], [0], [1], [0, 0, 1, 1], [], []>} : vector<2x4xbf16>, vector<4x128xbf16>, vector<2x128xf32> -> vector<2x128xf32>
    %238 = arith.truncf %230 : vector<2x128xf32> to vector<2x128xbf16>
    %cst_141 = arith.constant dense<0.000000e+00> : vector<2x128xf32>
    %239 = tpu.matmul %238, %4, %cst_141 {dimension_numbers = #tpu.dot_dimension_numbers<[1], [0], [0], [1], [0, 0, 1, 1], [], []>} : vector<2x128xbf16>, vector<128x128xbf16>, vector<2x128xf32> -> vector<2x128xf32>
    %240 = arith.addf %237, %239 : vector<2x128xf32>
    %cst_142 = arith.constant 1.000000e-01 : f32
    %241 = vector.broadcast %cst_142 : f32 to vector<2x128xf32>
    %242 = arith.addf %240, %241 : vector<2x128xf32>
    %cst_143 = arith.constant 1.000000e+00 : f32
    %243 = vector.broadcast %cst_143 : f32 to vector<2x128xf32>
    %244 = arith.cmpf ogt, %230, %243 : vector<2x128xf32>
    %cst_144 = arith.constant 0.899999976 : f32
    %245 = vector.broadcast %cst_144 : f32 to vector<2x128xf32>
    %246 = arith.mulf %245, %230 : vector<2x128xf32>
    %247 = arith.addf %246, %242 : vector<2x128xf32>
    %cst_145 = arith.constant 0.000000e+00 : f32
    %248 = vector.broadcast %cst_145 : f32 to vector<2x128xf32>
    %249 = arith.select %244, %248, %247 : vector<2x128xi1>, vector<2x128xf32>
    %c0_146 = arith.constant 0 : index
    %c12_147 = arith.constant 12 : index
    %c0_148 = arith.constant 0 : index
    %250 = vector.load %arg5[%c0_146, %c12_147, %c0_148] : memref<2x16x128xf32, #tpu.memory_space<vmem>>, vector<2x1x128xf32>
    %251 = vector.shape_cast %250 : vector<2x1x128xf32> to vector<2x128xf32>
    %252 = vector.shape_cast %249 : vector<2x128xf32> to vector<2x1x128xf32>
    tpu.vector_store %arg5[%c0_146, %c12_147, %c0_148], %252 {strides = array<i32>} : memref<2x16x128xf32, #tpu.memory_space<vmem>>, vector<2x1x128xf32>,
    %c0_149 = arith.constant 0 : index
    %c13 = arith.constant 13 : index
    %c0_150 = arith.constant 0 : index
    %253 = vector.load %arg2[%c0_149, %c13, %c0_150] : memref<2x16x4xf32, #tpu.memory_space<vmem>>, vector<2x1x4xf32>
    %254 = vector.shape_cast %253 : vector<2x1x4xf32> to vector<2x4xf32>
    %255 = arith.truncf %254 : vector<2x4xf32> to vector<2x4xbf16>
    %cst_151 = arith.constant dense<0.000000e+00> : vector<2x128xf32>
    %256 = tpu.matmul %255, %3, %cst_151 {dimension_numbers = #tpu.dot_dimension_numbers<[1], [0], [0], [1], [0, 0, 1, 1], [], []>} : vector<2x4xbf16>, vector<4x128xbf16>, vector<2x128xf32> -> vector<2x128xf32>
    %257 = arith.truncf %249 : vector<2x128xf32> to vector<2x128xbf16>
    %cst_152 = arith.constant dense<0.000000e+00> : vector<2x128xf32>
    %258 = tpu.matmul %257, %4, %cst_152 {dimension_numbers = #tpu.dot_dimension_numbers<[1], [0], [0], [1], [0, 0, 1, 1], [], []>} : vector<2x128xbf16>, vector<128x128xbf16>, vector<2x128xf32> -> vector<2x128xf32>
    %259 = arith.addf %256, %258 : vector<2x128xf32>
    %cst_153 = arith.constant 1.000000e-01 : f32
    %260 = vector.broadcast %cst_153 : f32 to vector<2x128xf32>
    %261 = arith.addf %259, %260 : vector<2x128xf32>
    %cst_154 = arith.constant 1.000000e+00 : f32
    %262 = vector.broadcast %cst_154 : f32 to vector<2x128xf32>
    %263 = arith.cmpf ogt, %249, %262 : vector<2x128xf32>
    %cst_155 = arith.constant 0.899999976 : f32
    %264 = vector.broadcast %cst_155 : f32 to vector<2x128xf32>
    %265 = arith.mulf %264, %249 : vector<2x128xf32>
    %266 = arith.addf %265, %261 : vector<2x128xf32>
    %cst_156 = arith.constant 0.000000e+00 : f32
    %267 = vector.broadcast %cst_156 : f32 to vector<2x128xf32>
    %268 = arith.select %263, %267, %266 : vector<2x128xi1>, vector<2x128xf32>
    %c0_157 = arith.constant 0 : index
    %c13_158 = arith.constant 13 : index
    %c0_159 = arith.constant 0 : index
    %269 = vector.load %arg5[%c0_157, %c13_158, %c0_159] : memref<2x16x128xf32, #tpu.memory_space<vmem>>, vector<2x1x128xf32>
    %270 = vector.shape_cast %269 : vector<2x1x128xf32> to vector<2x128xf32>
    %271 = vector.shape_cast %268 : vector<2x128xf32> to vector<2x1x128xf32>
    tpu.vector_store %arg5[%c0_157, %c13_158, %c0_159], %271 {strides = array<i32>} : memref<2x16x128xf32, #tpu.memory_space<vmem>>, vector<2x1x128xf32>,
    %c0_160 = arith.constant 0 : index
    %c14 = arith.constant 14 : index
    %c0_161 = arith.constant 0 : index
    %272 = vector.load %arg2[%c0_160, %c14, %c0_161] : memref<2x16x4xf32, #tpu.memory_space<vmem>>, vector<2x1x4xf32>
    %273 = vector.shape_cast %272 : vector<2x1x4xf32> to vector<2x4xf32>
    %274 = arith.truncf %273 : vector<2x4xf32> to vector<2x4xbf16>
    %cst_162 = arith.constant dense<0.000000e+00> : vector<2x128xf32>
    %275 = tpu.matmul %274, %3, %cst_162 {dimension_numbers = #tpu.dot_dimension_numbers<[1], [0], [0], [1], [0, 0, 1, 1], [], []>} : vector<2x4xbf16>, vector<4x128xbf16>, vector<2x128xf32> -> vector<2x128xf32>
    %276 = arith.truncf %268 : vector<2x128xf32> to vector<2x128xbf16>
    %cst_163 = arith.constant dense<0.000000e+00> : vector<2x128xf32>
    %277 = tpu.matmul %276, %4, %cst_163 {dimension_numbers = #tpu.dot_dimension_numbers<[1], [0], [0], [1], [0, 0, 1, 1], [], []>} : vector<2x128xbf16>, vector<128x128xbf16>, vector<2x128xf32> -> vector<2x128xf32>
    %278 = arith.addf %275, %277 : vector<2x128xf32>
    %cst_164 = arith.constant 1.000000e-01 : f32
    %279 = vector.broadcast %cst_164 : f32 to vector<2x128xf32>
    %280 = arith.addf %278, %279 : vector<2x128xf32>
    %cst_165 = arith.constant 1.000000e+00 : f32
    %281 = vector.broadcast %cst_165 : f32 to vector<2x128xf32>
    %282 = arith.cmpf ogt, %268, %281 : vector<2x128xf32>
    %cst_166 = arith.constant 0.899999976 : f32
    %283 = vector.broadcast %cst_166 : f32 to vector<2x128xf32>
    %284 = arith.mulf %283, %268 : vector<2x128xf32>
    %285 = arith.addf %284, %280 : vector<2x128xf32>
    %cst_167 = arith.constant 0.000000e+00 : f32
    %286 = vector.broadcast %cst_167 : f32 to vector<2x128xf32>
    %287 = arith.select %282, %286, %285 : vector<2x128xi1>, vector<2x128xf32>
    %c0_168 = arith.constant 0 : index
    %c14_169 = arith.constant 14 : index
    %c0_170 = arith.constant 0 : index
    %288 = vector.load %arg5[%c0_168, %c14_169, %c0_170] : memref<2x16x128xf32, #tpu.memory_space<vmem>>, vector<2x1x128xf32>
    %289 = vector.shape_cast %288 : vector<2x1x128xf32> to vector<2x128xf32>
    %290 = vector.shape_cast %287 : vector<2x128xf32> to vector<2x1x128xf32>
    tpu.vector_store %arg5[%c0_168, %c14_169, %c0_170], %290 {strides = array<i32>} : memref<2x16x128xf32, #tpu.memory_space<vmem>>, vector<2x1x128xf32>,
    %c0_171 = arith.constant 0 : index
    %c15 = arith.constant 15 : index
    %c0_172 = arith.constant 0 : index
    %291 = vector.load %arg2[%c0_171, %c15, %c0_172] : memref<2x16x4xf32, #tpu.memory_space<vmem>>, vector<2x1x4xf32>
    %292 = vector.shape_cast %291 : vector<2x1x4xf32> to vector<2x4xf32>
    %293 = arith.truncf %292 : vector<2x4xf32> to vector<2x4xbf16>
    %cst_173 = arith.constant dense<0.000000e+00> : vector<2x128xf32>
    %294 = tpu.matmul %293, %3, %cst_173 {dimension_numbers = #tpu.dot_dimension_numbers<[1], [0], [0], [1], [0, 0, 1, 1], [], []>} : vector<2x4xbf16>, vector<4x128xbf16>, vector<2x128xf32> -> vector<2x128xf32>
    %295 = arith.truncf %287 : vector<2x128xf32> to vector<2x128xbf16>
    %cst_174 = arith.constant dense<0.000000e+00> : vector<2x128xf32>
    %296 = tpu.matmul %295, %4, %cst_174 {dimension_numbers = #tpu.dot_dimension_numbers<[1], [0], [0], [1], [0, 0, 1, 1], [], []>} : vector<2x128xbf16>, vector<128x128xbf16>, vector<2x128xf32> -> vector<2x128xf32>
    %297 = arith.addf %294, %296 : vector<2x128xf32>
    %cst_175 = arith.constant 1.000000e-01 : f32
    %298 = vector.broadcast %cst_175 : f32 to vector<2x128xf32>
    %299 = arith.addf %297, %298 : vector<2x128xf32>
    %cst_176 = arith.constant 1.000000e+00 : f32
    %300 = vector.broadcast %cst_176 : f32 to vector<2x128xf32>
    %301 = arith.cmpf ogt, %287, %300 : vector<2x128xf32>
    %cst_177 = arith.constant 0.899999976 : f32
    %302 = vector.broadcast %cst_177 : f32 to vector<2x128xf32>
    %303 = arith.mulf %302, %287 : vector<2x128xf32>
    %304 = arith.addf %303, %299 : vector<2x128xf32>
    %cst_178 = arith.constant 0.000000e+00 : f32
    %305 = vector.broadcast %cst_178 : f32 to vector<2x128xf32>
    %306 = arith.select %301, %305, %304 : vector<2x128xi1>, vector<2x128xf32>
    %c0_179 = arith.constant 0 : index
    %c15_180 = arith.constant 15 : index
    %c0_181 = arith.constant 0 : index
    %307 = vector.load %arg5[%c0_179, %c15_180, %c0_181] : memref<2x16x128xf32, #tpu.memory_space<vmem>>, vector<2x1x128xf32>
    %308 = vector.shape_cast %307 : vector<2x1x128xf32> to vector<2x128xf32>
    %309 = vector.shape_cast %306 : vector<2x128xf32> to vector<2x1x128xf32>
    tpu.vector_store %arg5[%c0_179, %c15_180, %c0_181], %309 {strides = array<i32>} : memref<2x16x128xf32, #tpu.memory_space<vmem>>, vector<2x1x128xf32>,
    %c0_182 = arith.constant 0 : index
    %c0_183 = arith.constant 0 : index
    %310 = vector.load %arg7[%c0_182, %c0_183] : memref<2x128xf32, #tpu.memory_space<vmem>>, vector<2x128xf32>
    tpu.vector_store %arg7[%c0_182, %c0_183], %306 {strides = array<i32>} : memref<2x128xf32, #tpu.memory_space<vmem>>, vector<2x128xf32>,
    %c0_184 = arith.constant 0 : index
    %c0_185 = arith.constant 0 : index
    %c0_186 = arith.constant 0 : index
    %311 = vector.load %arg5[%c0_184, %c0_185, %c0_186] : memref<2x16x128xf32, #tpu.memory_space<vmem>>, vector<2x16x128xf32>
    %cst_187 = arith.constant 1.000000e+00 : f32
    %312 = vector.broadcast %cst_187 : f32 to vector<2x16x128xf32>
    %313 = arith.cmpf ogt, %311, %312 : vector<2x16x128xf32>
    %314 = arith.extui %313 : vector<2x16x128xi1> to vector<2x16x128xi32>
    %315 = arith.sitofp %314 : vector<2x16x128xi32> to vector<2x16x128xf32>
    %316 = arith.truncf %315 : vector<2x16x128xf32> to vector<2x16x128xbf16>
    %c0_188 = arith.constant 0 : index
    %c0_189 = arith.constant 0 : index
    %c0_190 = arith.constant 0 : index
    %317 = vector.load %arg6[%c0_188, %c0_189, %c0_190] : memref<2x16x128xbf16, #tpu.memory_space<vmem>>, vector<2x16x128xbf16>
    tpu.vector_store %arg6[%c0_188, %c0_189, %c0_190], %316 {strides = array<i32>} : memref<2x16x128xbf16, #tpu.memory_space<vmem>>, vector<2x16x128xbf16>,
    return
  }
  func.func @transform_0(%arg0: i32, %arg1: i32) -> (i32, i32, i32) {
    %c0_i32 = arith.constant 0 : i32
    %c0_i32_0 = arith.constant 0 : i32
    return %arg0, %arg1, %c0_i32 : i32, i32, i32
  }
  func.func @transform_1(%arg0: i32, %arg1: i32) -> (i32, i32) {
    %c0_i32 = arith.constant 0 : i32
    %c0_i32_0 = arith.constant 0 : i32
    %c0_i32_1 = arith.constant 0 : i32
    return %c0_i32, %c0_i32_0 : i32, i32
  }
  func.func @transform_2(%arg0: i32, %arg1: i32) -> (i32, i32) {
    %c0_i32 = arith.constant 0 : i32
    %c0_i32_0 = arith.constant 0 : i32
    %c0_i32_1 = arith.constant 0 : i32
    return %c0_i32, %c0_i32_0 : i32, i32
  }
  func.func @transform_3(%arg0: i32, %arg1: i32) -> (i32, i32, i32) {
    %c0_i32 = arith.constant 0 : i32
    %c0_i32_0 = arith.constant 0 : i32
    return %arg0, %arg1, %c0_i32 : i32, i32, i32
  }
  func.func @transform_4(%arg0: i32, %arg1: i32) -> (i32, i32, i32) {
    %c0_i32 = arith.constant 0 : i32
    %c0_i32_0 = arith.constant 0 : i32
    return %arg0, %arg1, %c0_i32 : i32, i32, i32
  }
}

</mosaic_0001>

<llo_original>
// kernel: tpu_custom_call.1
$region0: #{tpu_custom_call.1}
  #allocation0 [shape = 'u32[]', space=smem, size = 0x4, offset = 0x4, fixed_abs, tag = 'smem constant byte address 0x4 - core index']
  #allocation1 [shape = 'u32[144,128]{1,0:T(1,128)}', space=vmem, size = 0x12000, scoped, tag = 'internal scratch']
  #allocation2 [shape = 'f32[2,128]{1,0:T(2,128)}', space=vmem, size = 0x400, scoped, tag = 'scratch operand']
  #allocation8 [shape = 's32[]', space=sflag, size = 0x4, offset = 0, fixed_abs, tag = 'sflag constant byte address 0x0 - dummy sync flag']
  #allocation10 [shape = 's32[]', space=sflag, size = 0x4, offset = 0, fixed_abs, tag = 'sflag constant byte address 0x0 - dummy sync flag']
  %s0 = inlined_call_operand.vmem [shape: f32[4,32,4], index: 0, kind: input, shape index: {}]
  %s1 = inlined_call_operand.vmem [shape: bf16[4,128], index: 1, kind: input, shape index: {}]
  %s2 = inlined_call_operand.vmem [shape: bf16[128,128], index: 2, kind: input, shape index: {}]
  %s3 = inlined_call_operand.hbm [shape: f32[4,32,128], index: 3, kind: output, shape index: {0}]
  %s4 = inlined_call_operand.hbm [shape: bf16[4,32,128], index: 4, kind: output, shape index: {1}]
  %5 = xla_tuple %s3, %s4
  %s6 = sld [smem:[#allocation0]]
  $region95: #{tpu_custom_call.1} parent=0
    _
  %s8 = ssub.s32 1, %s6
  %s9 = scalar_select 0, %s8, %s6
  $region1: #{tpu_custom_call.1} parent=0
    #allocation3 [shape = 'u8[32768]{0}', space=vmem, size = 0x8000, scoped, tag = 'input window, operand 0']
    #allocation4 [shape = 'u8[32768]{0}', space=vmem, size = 0x8000, scoped, tag = 'output window, operand 0']
    #allocation5 [shape = 's32[2]{0}', space=sflag, size = 0x8, scoped, tag = 'scoped memory for tpu_custom_call.1']
    #allocation6 [shape = 'u8[16384]{0}', space=vmem, size = 0x4000, scoped, tag = 'output window, operand 1']
    #allocation7 [shape = 's32[2]{0}', space=sflag, size = 0x8, scoped, tag = 'scoped memory for tpu_custom_call.1']
    %10 = vsyncpa [#allocation5], 0
    %s11 = scalar_lea.sflag [#allocation5], 1
    %12 = vsyncpa %s11, 0
    %13 = vsyncpa [#allocation7], 0
    %s14 = scalar_lea.sflag [#allocation7], 1
    %15 = vsyncpa %s14, 0
    loop: start=0, step=1, limit=6
    $region2: #{tpu_custom_call.1} parent=1 // loop_pre_header
      _
    $region3: #{tpu_custom_call.1} parent=1 // loop_header
      %s17 = sphi 0, %s21
      %p18 = scmp.ge.s32.totalorder %s17, 6
      %s24 = sphi 0, %s36
      %s25 = sphi 0, %s32
      %s26 = sphi 0, %s24
      %s27 = sphi 0, %s25
      %s28 = sphi 0, %s26
      %s29 = sphi 0, %s27
      %s41 = sphi 0, %s43
      %s44 = sphi 0, %s41
      %s45 = sphi 0, %s44
      %s61 = sphi 0, %s45
      %s65 = sphi 0, %s65
      %s67 = sphi 0, %s65
      %s68 = sphi 0, %s67
      %s82 = sphi 0, %s68
      %s86 = sphi 0, %s86
      %s88 = sphi 0, %s86
      %s89 = sphi 0, %s88
      %s103 = sphi 0, %s89
      %s111 = sphi 0, %s113
      %s114 = sphi 0, %s111
      %s115 = sphi 0, %s114
      %s131 = sphi 0, %s115
      %s139 = sphi 0, %s141
      %s142 = sphi 0, %s139
      %s143 = sphi 0, %s142
      %s159 = sphi 0, %s143
    $region4: #{tpu_custom_call.1} parent=1 // loop_header_branch
      %20 = sbr.rel (%p18) target = $region8
    $region5: #{tpu_custom_call.1} parent=1 // loop_body
      %s22 = ssub.s32 %s17, 1
      %s23 = ssub.s32 %s17, 2
      %s30 = sadd.s32 1, %s25
      %p31 = scmp.ge.s32.totalorder %s30, 2
      %s32 = scalar_select %p31, 0, %s30
      %s33 = sadd.s32 1, %s24
      %s34 = scalar_select %p31, %s33, %s24
      %p35 = scmp.ge.s32.totalorder %s34, 2
      %s36 = scalar_select %p35, 0, %s34
      %s37 = ssub.s32 %s24, %s36
      %s38 = ssub.s32 %s25, %s32
      %s39 = sor.u32 %s37, %s38
      %p40 = scmp.eq.s32.totalorder %s39, 0
      %s42 = sadd.s32 %s41, 1
      %s43 = scalar_select %p40, %s41, %s42
      %p46 = pneg %p40
      %p47 = scmp.eq.s32.totalorder %s17, 3
      %p48 = por %p46, %p47
      %p49 = scmp.ne.s32.totalorder %s41, %s44
      %p50 = scmp.eq.s32.totalorder %s17, 0
      %p51 = por %p49, %p50
      %p52 = scmp.ne.s32.totalorder %s41, %s44
      %p53 = scmp.eq.s32.totalorder %s22, 3
      %p54 = por %p52, %p53
      %p55 = scmp.ne.s32.totalorder %s44, %s45
      %p56 = scmp.eq.s32.totalorder %s22, 0
      %p57 = por %p55, %p56
      %p58 = scmp.ne.s32.totalorder %s44, %s45
      %p59 = scmp.eq.s32.totalorder %s23, 3
      %p60 = por %p58, %p59
      %p62 = scmp.ne.s32.totalorder %s45, %s61
      %p63 = scmp.eq.s32.totalorder %s23, 0
      %p64 = por %p62, %p63
      %s66 = sadd.s32 %s65, 1
      %p69 = scmp.eq.s32.totalorder %s17, 3
      %p70 = scmp.ne.s32.totalorder %s65, %s67
      %p71 = scmp.eq.s32.totalorder %s17, 0
      %p72 = por %p70, %p71
      %p73 = scmp.ne.s32.totalorder %s65, %s67
      %p74 = scmp.eq.s32.totalorder %s22, 3
      %p75 = por %p73, %p74
      %p76 = scmp.ne.s32.totalorder %s67, %s68
      %p77 = scmp.eq.s32.totalorder %s22, 0
      %p78 = por %p76, %p77
      %p79 = scmp.ne.s32.totalorder %s67, %s68
      %p80 = scmp.eq.s32.totalorder %s23, 3
      %p81 = por %p79, %p80
      %p83 = scmp.ne.s32.totalorder %s68, %s82
      %p84 = scmp.eq.s32.totalorder %s23, 0
      %p85 = por %p83, %p84
      %s87 = sadd.s32 %s86, 1
      %p90 = scmp.eq.s32.totalorder %s17, 3
      %p91 = scmp.ne.s32.totalorder %s86, %s88
      %p92 = scmp.eq.s32.totalorder %s17, 0
      %p93 = por %p91, %p92
      %p94 = scmp.ne.s32.totalorder %s86, %s88
      %p95 = scmp.eq.s32.totalorder %s22, 3
      %p96 = por %p94, %p95
      %p97 = scmp.ne.s32.totalorder %s88, %s89
      %p98 = scmp.eq.s32.totalorder %s22, 0
      %p99 = por %p97, %p98
      %p100 = scmp.ne.s32.totalorder %s88, %s89
      %p101 = scmp.eq.s32.totalorder %s23, 3
      %p102 = por %p100, %p101
      %p104 = scmp.ne.s32.totalorder %s89, %s103
      %p105 = scmp.eq.s32.totalorder %s23, 0
      %p106 = por %p104, %p105
      %s107 = ssub.s32 %s24, %s36
      %s108 = ssub.s32 %s25, %s32
      %s109 = sor.u32 %s107, %s108
      %p110 = scmp.eq.s32.totalorder %s109, 0
      %s112 = sadd.s32 %s111, 1
      %s113 = scalar_select %p110, %s111, %s112
      %p116 = pneg %p110
      %p117 = scmp.eq.s32.totalorder %s17, 3
      %p118 = por %p116, %p117
      %p119 = scmp.ne.s32.totalorder %s111, %s114
      %p120 = scmp.eq.s32.totalorder %s17, 0
      %p121 = por %p119, %p120
      %p122 = scmp.ne.s32.totalorder %s111, %s114
      %p123 = scmp.eq.s32.totalorder %s22, 3
      %p124 = por %p122, %p123
      %p125 = scmp.ne.s32.totalorder %s114, %s115
      %p126 = scmp.eq.s32.totalorder %s22, 0
      %p127 = por %p125, %p126
      %p128 = scmp.ne.s32.totalorder %s114, %s115
      %p129 = scmp.eq.s32.totalorder %s23, 3
      %p130 = por %p128, %p129
      %p132 = scmp.ne.s32.totalorder %s115, %s131
      %p133 = scmp.eq.s32.totalorder %s23, 0
      %p134 = por %p132, %p133
      %s135 = ssub.s32 %s24, %s36
      %s136 = ssub.s32 %s25, %s32
      %s137 = sor.u32 %s135, %s136
      %p138 = scmp.eq.s32.totalorder %s137, 0
      %s140 = sadd.s32 %s139, 1
      %s141 = scalar_select %p138, %s139, %s140
      %p144 = pneg %p138
      %p145 = scmp.eq.s32.totalorder %s17, 3
      %p146 = por %p144, %p145
      %p147 = scmp.ne.s32.totalorder %s139, %s142
      %p148 = scmp.eq.s32.totalorder %s17, 0
      %p149 = por %p147, %p148
      %p150 = scmp.ne.s32.totalorder %s139, %s142
      %p151 = scmp.eq.s32.totalorder %s22, 3
      %p152 = por %p150, %p151
      %p153 = scmp.ne.s32.totalorder %s142, %s143
      %p154 = scmp.eq.s32.totalorder %s22, 0
      %p155 = por %p153, %p154
      %p156 = scmp.ne.s32.totalorder %s142, %s143
      %p157 = scmp.eq.s32.totalorder %s23, 3
      %p158 = por %p156, %p157
      %p160 = scmp.ne.s32.totalorder %s143, %s159
      %p161 = scmp.eq.s32.totalorder %s23, 0
      %p162 = por %p160, %p161
      %p163 = scmp.le.s32.totalorder 1, %s17
      %p164 = scmp.lt.s32.totalorder %s17, 5
      %p165 = pnand %p163, %p164
      %p166 = pneg %p165
      // Predicated region
      $region9: #{tpu_custom_call.1} parent=5 // pred_check
        _
      $region10: #{tpu_custom_call.1} parent=5 // pred_check_branch
        %168 = sbr.rel (%p165) target = $region12
      $region11: #{tpu_custom_call.1} parent=5 // pred_region
        %s169 = ssub.s32 %s17, 1
        // Predicated region
        $region13: #{tpu_custom_call.1} parent=11 // pred_check
          %p170 = pneg %p78
        $region14: #{tpu_custom_call.1} parent=11 // pred_check_branch
          %172 = sbr.rel (%p170) target = $region16
        $region15: #{tpu_custom_call.1} parent=11 // pred_region
          _
        $region16: #{tpu_custom_call.1} parent=11 // pred_fallthru
          _
        // Predicated region
        $region17: #{tpu_custom_call.1} parent=11 // pred_check
          %p173 = pneg %p99
        $region18: #{tpu_custom_call.1} parent=11 // pred_check_branch
          %175 = sbr.rel (%p173) target = $region20
        $region19: #{tpu_custom_call.1} parent=11 // pred_region
          _
        $region20: #{tpu_custom_call.1} parent=11 // pred_fallthru
          _
      $region12: #{tpu_custom_call.1} parent=5 // pred_fallthru
        _
      %p176 = scmp.lt.s32.totalorder %s17, 4
      // Predicated region
      $region21: #{tpu_custom_call.1} parent=5 // pred_check
        %p177 = pneg %p176
      $region22: #{tpu_custom_call.1} parent=5 // pred_check_branch
        %179 = sbr.rel (%p177) target = $region24
      $region23: #{tpu_custom_call.1} parent=5 // pred_region
        // Predicated region
        $region25: #{tpu_custom_call.1} parent=23 // pred_check
          %p180 = pneg %p51
        $region26: #{tpu_custom_call.1} parent=23 // pred_check_branch
          %182 = sbr.rel (%p180) target = $region28
        $region27: #{tpu_custom_call.1} parent=23 // pred_region
          %s183 = sand.u32 %s41, 1
          %s184 = sand.u32 %s41, 1
          %s185 = smul.addr %s184, 32
          %s186 = scalar_lea.vmem [#allocation3], %s185
          %s187 = smul.u32 2, %s24
          %s188 = smul.u32 2, %s25
          %s189 = smul.addr %s187, 4
          %s190 = sadd.s32 %s188, %s189
          %s191 = smul.addr %s190, 8
          %s192 = scalar_lea.vmem %s0, %s191
          // Predicated region
          $region29: #{tpu_custom_call.1} parent=27 // pred_check
            _
          $region30: #{tpu_custom_call.1} parent=27 // pred_check_branch
            %194 = sbr.rel (0) target = $region32
          $region31: #{tpu_custom_call.1} parent=27 // pred_region
            // Predicated region
            $region33: #{tpu_custom_call.1} parent=31 // pred_check
              _
            $region34: #{tpu_custom_call.1} parent=31 // pred_check_branch
              %196 = sbr.rel (0) target = $region36
            $region35: #{tpu_custom_call.1} parent=31 // pred_region
              // Predicated region
              $region48: #{tpu_custom_call.1} parent=35 // pred_check
                _
              $region49: #{tpu_custom_call.1} parent=35 // pred_check_branch
                %217 = sbr.rel (0) target = $region51
              $region50: #{tpu_custom_call.1} parent=35 // pred_region
                loop: start=0, step=1, limit=1
                $region52: #{tpu_custom_call.1} parent=50 // loop_pre_header
                  _
                $region53: #{tpu_custom_call.1} parent=50 // loop_header
                  %s219 = sphi 0, %s223
                  %p220 = scmp.ge.s32.totalorder %s219, 1
                  %s224 = sphi %s192, %s192
                  %s225 = sphi %s186, %s186
                $region54: #{tpu_custom_call.1} parent=50 // loop_header_branch
                  %222 = sbr.rel (%p220) target = $region58
                $region55: #{tpu_custom_call.1} parent=50 // loop_body
                  %v226 = vld [vmem:[%s224] sm:$0xff]
                  %227 = vst [vmem:[%s225] sm:$0xff] %v226
                  %v228 = vld [vmem:[%s224 + $0x8] sm:$0xff]
                  %229 = vst [vmem:[%s225 + $0x8] sm:$0xff] %v228
                  %v230 = vld [vmem:[%s224 + $0x20] sm:$0xff]
                  %231 = vst [vmem:[%s225 + $0x10] sm:$0xff] %v230
                  %v232 = vld [vmem:[%s224 + $0x28] sm:$0xff]
                  %233 = vst [vmem:[%s225 + $0x18] sm:$0xff] %v232
                $region56: #{tpu_custom_call.1} parent=50 // loop_footer
                  %s223 = sadd.s32 1, %s219
                $region57: #{tpu_custom_call.1} parent=50 // loop_footer_branch
                  %218 = sbr.rel target = $region53
                $region58: #{tpu_custom_call.1} parent=50 // loop_exit
                  _
              $region51: #{tpu_custom_call.1} parent=35 // pred_fallthru
                _
              // Predicated region
              $region59: #{tpu_custom_call.1} parent=35 // pred_check
                _
              $region60: #{tpu_custom_call.1} parent=35 // pred_check_branch
                %235 = sbr.rel target = $region62
              $region61: #{tpu_custom_call.1} parent=35 // pred_region
                _
              $region62: #{tpu_custom_call.1} parent=35 // pred_fallthru
                _
            $region36: #{tpu_custom_call.1} parent=31 // pred_fallthru
              _
            // Predicated region
            $region37: #{tpu_custom_call.1} parent=31 // pred_check
              _
            $region38: #{tpu_custom_call.1} parent=31 // pred_check_branch
              %198 = sbr.rel target = $region40
            $region39: #{tpu_custom_call.1} parent=31 // pred_region
              loop: start=0, step=1, limit=1
              $region41: #{tpu_custom_call.1} parent=39 // loop_pre_header
                _
              $region42: #{tpu_custom_call.1} parent=39 // loop_header
                %s201 = sphi 0, %s205
                %p202 = scmp.ge.s32.totalorder %s201, 1
                %s206 = sphi %s192, %s192
                %s207 = sphi %s186, %s186
              $region43: #{tpu_custom_call.1} parent=39 // loop_header_branch
                %204 = sbr.rel (%p202) target = $region47
              $region44: #{tpu_custom_call.1} parent=39 // loop_body
                %v208 = vld [vmem:[%s206] sm:$0xff]
                %209 = vst [vmem:[%s207] sm:$0xff] %v208
                %v210 = vld [vmem:[%s206 + $0x8] sm:$0xff]
                %211 = vst [vmem:[%s207 + $0x8] sm:$0xff] %v210
                %v212 = vld [vmem:[%s206 + $0x20] sm:$0xff]
                %213 = vst [vmem:[%s207 + $0x10] sm:$0xff] %v212
                %v214 = vld [vmem:[%s206 + $0x28] sm:$0xff]
                %215 = vst [vmem:[%s207 + $0x18] sm:$0xff] %v214
              $region45: #{tpu_custom_call.1} parent=39 // loop_footer
                %s205 = sadd.s32 1, %s201
              $region46: #{tpu_custom_call.1} parent=39 // loop_footer_branch
                %200 = sbr.rel target = $region42
              $region47: #{tpu_custom_call.1} parent=39 // loop_exit
                _
            $region40: #{tpu_custom_call.1} parent=31 // pred_fallthru
              _
          $region32: #{tpu_custom_call.1} parent=27 // pred_fallthru
            _
          %236 = vnop
        $region28: #{tpu_custom_call.1} parent=23 // pred_fallthru
          _
      $region24: #{tpu_custom_call.1} parent=5 // pred_fallthru
        _
      %p237 = scmp.le.s32.totalorder 1, %s17
      %p238 = scmp.lt.s32.totalorder %s17, 5
      %p239 = pnand %p237, %p238
      %p240 = pneg %p239
      // Predicated region
      $region63: #{tpu_custom_call.1} parent=5 // pred_check
        _
      $region64: #{tpu_custom_call.1} parent=5 // pred_check_branch
        %242 = sbr.rel (%p239) target = $region66
      $region65: #{tpu_custom_call.1} parent=5 // pred_region
        %s243 = ssub.s32 %s17, 1
        %s244 = sand.u32 %s44, 1
        %s245 = sand.u32 %s44, 1
        %s246 = smul.addr %s245, 32
        %s247 = scalar_lea.vmem [#allocation3], %s246
        // Predicated region
        $region67: #{tpu_custom_call.1} parent=65 // pred_check
          %p248 = pneg %p57
        $region68: #{tpu_custom_call.1} parent=65 // pred_check_branch
          %250 = sbr.rel (%p248) target = $region70
        $region69: #{tpu_custom_call.1} parent=65 // pred_region
          _
        $region70: #{tpu_custom_call.1} parent=65 // pred_fallthru
          _
        %s251 = sand.u32 %s44, 1
        %s252 = sand.u32 %s44, 1
        %s253 = smul.addr %s252, 32
        %s254 = scalar_lea.vmem [#allocation3], %s253
        %p255 = pneg %p57
        %p256 = pneg %p54
        %p257 = pneg %p78
        %p258 = pneg %p75
        %p259 = pneg %p99
        %p260 = pneg %p96
        %p261 = pneg %p127
        %p262 = pneg %p124
        %s263 = sand.u32 %s114, 1
        %s264 = scalar_lea.sflag [#allocation5], %s263
        %s265 = sand.u32 %s114, 1
        %s266 = smul.addr %s265, 32
        %s267 = scalar_lea.vmem [#allocation4], %s266
        %p268 = pneg %p155
        %p269 = pneg %p152
        %s270 = sand.u32 %s142, 1
        %s271 = scalar_lea.sflag [#allocation7], %s270
        %s272 = sand.u32 %s142, 1
        %s273 = smul.addr %s272, 16
        %s274 = scalar_lea.vmem [#allocation6], %s273
        %s275 = smul.u32 2, %s26
        %s276 = smul.u32 2, %s27
        %s277 = smul.u32 2, %s26
        %s278 = smul.u32 2, %s27
        %s279 = smul.u32 2, %s26
        %s280 = smul.u32 2, %s27
        %p282 = scmp.eq.s32.totalorder %s27, 0
        // Predicated region
        $region71: #{tpu_custom_call.1} parent=65 // pred_check
          %p283 = pneg %p282
        $region72: #{tpu_custom_call.1} parent=65 // pred_check_branch
          %285 = sbr.rel (%p283) target = $region74
        $region73: #{tpu_custom_call.1} parent=65 // pred_region
          %286 = vst [vmem:[#allocation2] sm:$0x3] 0.0
        $region74: #{tpu_custom_call.1} parent=65 // pred_fallthru
          _
        %v287 = vld [vmem:[%s1] sm:$0x3]
        %v288 = vld [vmem:[%s2] sm:$0xf]
        %v289 = vld [vmem:[%s2 + $0x4] sm:$0xf]
        %v290 = vld [vmem:[%s2 + $0x8] sm:$0xf]
        %v291 = vld [vmem:[%s2 + $0xc] sm:$0xf]
        %v292 = vld [vmem:[%s2 + $0x10] sm:$0xf]
        %v293 = vld [vmem:[%s2 + $0x14] sm:$0xf]
        %v294 = vld [vmem:[%s2 + $0x18] sm:$0xf]
        %v295 = vld [vmem:[%s2 + $0x1c] sm:$0xf]
        %v296 = vld [vmem:[%s2 + $0x20] sm:$0xf]
        %v297 = vld [vmem:[%s2 + $0x24] sm:$0xf]
        %v298 = vld [vmem:[%s2 + $0x28] sm:$0xf]
        %v299 = vld [vmem:[%s2 + $0x2c] sm:$0xf]
        %v300 = vld [vmem:[%s2 + $0x30] sm:$0xf]
        %v301 = vld [vmem:[%s2 + $0x34] sm:$0xf]
        %v302 = vld [vmem:[%s2 + $0x38] sm:$0xf]
        %v303 = vld [vmem:[%s2 + $0x3c] sm:$0xf]
        %v304 = vld [vmem:[#allocation2] sm:$0x3]
        %v305 = vld [vmem:[%s247] sm:$0x1]
        %v306 = vld [vmem:[%s247 + $0x10] sm:$0x1]
        %v307 = vpack.c.bf16 %v305, %v305
        %v308 = vpack.c.bf16 %v306, %v306
        %v309 = vpack.c.bf16 %v304, %v304
        %v326 = vunpack.c.l.b16 %v288
        %v327 = vunpack.c.l.b16 %v289
        %v328 = vunpack.c.l.b16 %v290
        %v329 = vunpack.c.l.b16 %v291
        %v330 = vunpack.c.l.b16 %v292
        %v331 = vunpack.c.l.b16 %v293
        %v332 = vunpack.c.l.b16 %v294
        %v333 = vunpack.c.l.b16 %v295
        %v334 = vunpack.c.l.b16 %v296
        %v335 = vunpack.c.l.b16 %v297
        %v336 = vunpack.c.l.b16 %v298
        %v337 = vunpack.c.l.b16 %v299
        %v338 = vunpack.c.l.b16 %v300
        %v339 = vunpack.c.l.b16 %v301
        %v340 = vunpack.c.l.b16 %v302
        %v341 = vunpack.c.l.b16 %v303
        %v342 = vpack.c.b16 %v327, %v326
        %v343 = vpack.c.b16 %v329, %v328
        %v344 = vpack.c.b16 %v331, %v330
        %v345 = vpack.c.b16 %v333, %v332
        %v346 = vpack.c.b16 %v335, %v334
        %v347 = vpack.c.b16 %v337, %v336
        %v348 = vpack.c.b16 %v339, %v338
        %v349 = vpack.c.b16 %v341, %v340
        %358 = vmatprep.subr.bf16.mxu0 0
        %359 = vmatpush1.bf16.msra.mxu0 %v342
        %360 = vmatprep.subr.bf16.mxu0 0
        %361 = vmatpush1.bf16.msra.mxu0 %v343
        %362 = vmatprep.subr.bf16.mxu0 0
        %363 = vmatpush1.bf16.msra.mxu0 %v344
        %364 = vmatprep.subr.bf16.mxu0 0
        %365 = vmatpush1.bf16.msra.mxu0 %v345
        %366 = vmatprep.subr.bf16.mxu0 0
        %367 = vmatpush1.bf16.msra.mxu0 %v346
        %368 = vmatprep.subr.bf16.mxu0 0
        %369 = vmatpush1.bf16.msra.mxu0 %v347
        %370 = vmatprep.subr.bf16.mxu0 0
        %371 = vmatpush1.bf16.msra.mxu0 %v348
        %372 = vmatprep.subr.bf16.mxu0 0
        %373 = vmatpush1.bf16.msra.mxu0 %v349
        %374 = vmatprep.subr.bf16.mxu0 0
        %375 = vmatpush1.bf16.msra.mxu0 0
        %376 = vmatprep.subr.bf16.mxu0 0
        %377 = vmatpush1.bf16.msra.mxu0 0
        %378 = vmatprep.subr.bf16.mxu0 0
        %379 = vmatpush1.bf16.msra.mxu0 0
        %380 = vmatprep.subr.bf16.mxu0 0
        %381 = vmatpush1.bf16.msra.mxu0 0
        %382 = vmatprep.subr.bf16.mxu0 0
        %383 = vmatpush1.bf16.msra.mxu0 0
        %384 = vmatprep.subr.bf16.mxu0 0
        %385 = vmatpush1.bf16.msra.mxu0 0
        %386 = vmatprep.subr.bf16.mxu0 0
        %387 = vmatpush1.bf16.msra.mxu0 0
        %388 = vmatprep.subr.bf16.mxu0 0
        %389 = vmatpush1.bf16.msra.mxu0 0
        %390 = vmatprep.mubr.bf16.mxu0 0
        %391 = vmatmul.mubr.bf16.gmra.mrb[0].mxu0 %v309
        %v392 = vpop.f32.mrb[0].mxu0
        %v393 = vadd.f32 0.0, %v392
        %v394 = vpop.f32.mrb[0].mxu0
        %v395 = vpop.f32.mrb[0].mxu0
        %v396 = vpop.f32.mrb[0].mxu0
        %397 = vdwg.mxu0
        %v400 = vunpack.c.l.b16 %v307
        %v401 = vunpack.c.l.b16 %v308
        %v402 = vrot.slane %v401, 7
        %vm403 = vcmask 1041409
        %v404 = vsel %vm403, %v402, %v400
        %v405 = vpack.c.b16 %v404, %v404
        %vm406 = vcmask 31744
        %v408 = vsel %vm406, %v405, 0
        %vm410 = vcmask 1041408
        %v412 = vsel %vm410, %v287, 0
        %414 = vmatprep.subr.bf16.mxu0 0
        %415 = vmatpush1.bf16.msra.mxu0 %v412
        %416 = vmatprep.subr.bf16.mxu0 0
        %417 = vmatpush1.bf16.msra.mxu0 0
        %418 = vmatprep.subr.bf16.mxu0 0
        %419 = vmatpush1.bf16.msra.mxu0 0
        %420 = vmatprep.subr.bf16.mxu0 0
        %421 = vmatpush1.bf16.msra.mxu0 0
        %422 = vmatprep.subr.bf16.mxu0 0
        %423 = vmatpush1.bf16.msra.mxu0 0
        %424 = vmatprep.subr.bf16.mxu0 0
        %425 = vmatpush1.bf16.msra.mxu0 0
        %426 = vmatprep.subr.bf16.mxu0 0
        %427 = vmatpush1.bf16.msra.mxu0 0
        %428 = vmatprep.subr.bf16.mxu0 0
        %429 = vmatpush1.bf16.msra.mxu0 0
        %430 = vmatprep.subr.bf16.mxu0 0
        %431 = vmatpush1.bf16.msra.mxu0 0
        %432 = vmatprep.subr.bf16.mxu0 0
        %433 = vmatpush1.bf16.msra.mxu0 0
        %434 = vmatprep.subr.bf16.mxu0 0
        %435 = vmatpush1.bf16.msra.mxu0 0
        %436 = vmatprep.subr.bf16.mxu0 0
        %437 = vmatpush1.bf16.msra.mxu0 0
        %438 = vmatprep.subr.bf16.mxu0 0
        %439 = vmatpush1.bf16.msra.mxu0 0
        %440 = vmatprep.subr.bf16.mxu0 0
        %441 = vmatpush1.bf16.msra.mxu0 0
        %442 = vmatprep.subr.bf16.mxu0 0
        %443 = vmatpush1.bf16.msra.mxu0 0
        %444 = vmatprep.subr.bf16.mxu0 0
        %445 = vmatpush1.bf16.msra.mxu0 0
        %446 = vmatprep.mubr.bf16.mxu0 0
        %447 = vmatmul.mubr.bf16.gmra.mrb[0].mxu0 %v408
        %v448 = vpop.f32.mrb[0].mxu0
        %v449 = vadd.f32 %v393, %v448
        %v450 = vpop.f32.mrb[0].mxu0
        %v451 = vpop.f32.mrb[0].mxu0
        %v452 = vpop.f32.mrb[0].mxu0
        %453 = vdwg.mxu0
        %v454 = vadd.f32 %v449, 0.1
        %vm455 = vcmp.gt.f32.partialorder %v304, 1.0
        %v456 = vmul.f32 %v304, 0.9
        %v457 = vadd.f32 %v456, %v454
        %v458 = vsel %vm455, 0.0, %v457
        %v461 = vunpack.c.l.s4 1966171168
        %v462 = vunpack.c.0.s8 %v461
        %v463 = vlaneseq
        %v464 = vshrl.u32 %v463, 7
        %v465 = vsub.s32 %v462, %v464
        %v466 = vrot.slane %v458, %v465
        %v467 = vcombine.high %v466, %v466
        %v469 = vunpack.c.l.s4 1966171168
        %v470 = vunpack.c.0.s8 %v469
        %v471 = vlaneseq
        %v472 = vshrl.u32 %v471, 7
        %v473 = vsub.s32 %v470, %v472
        %v474 = vrot.slane %v466, %v473
        %v476 = vunpack.c.l.s4 1966171168
        %v477 = vunpack.c.0.s8 %v476
        %v478 = vlaneseq
        %v479 = vshrl.u32 %v478, 7
        %v480 = vsub.s32 %v477, %v479
        %v481 = vrot.slane %v467, %v480
        %484 = vst [vmem:[%s267] sm:$0x1] %v474
        %485 = vst [vmem:[%s267 + $0x10] sm:$0x1] %v481
        %v486 = vld [vmem:[%s247 + $0x1] sm:$0x1]
        %v487 = vld [vmem:[%s247 + $0x11] sm:$0x1]
        %v488 = vpack.c.bf16 %v486, %v486
        %v489 = vpack.c.bf16 %v487, %v487
        %v490 = vpack.c.bf16 %v458, %v458
        %491 = vmatprep.subr.bf16.mxu0 0
        %492 = vmatpush1.bf16.msra.mxu0 %v342
        %493 = vmatprep.subr.bf16.mxu0 0
        %494 = vmatpush1.bf16.msra.mxu0 %v343
        %495 = vmatprep.subr.bf16.mxu0 0
        %496 = vmatpush1.bf16.msra.mxu0 %v344
        %497 = vmatprep.subr.bf16.mxu0 0
        %498 = vmatpush1.bf16.msra.mxu0 %v345
        %499 = vmatprep.subr.bf16.mxu0 0
        %500 = vmatpush1.bf16.msra.mxu0 %v346
        %501 = vmatprep.subr.bf16.mxu0 0
        %502 = vmatpush1.bf16.msra.mxu0 %v347
        %503 = vmatprep.subr.bf16.mxu0 0
        %504 = vmatpush1.bf16.msra.mxu0 %v348
        %505 = vmatprep.subr.bf16.mxu0 0
        %506 = vmatpush1.bf16.msra.mxu0 %v349
        %507 = vmatprep.subr.bf16.mxu0 0
        %508 = vmatpush1.bf16.msra.mxu0 0
        %509 = vmatprep.subr.bf16.mxu0 0
        %510 = vmatpush1.bf16.msra.mxu0 0
        %511 = vmatprep.subr.bf16.mxu0 0
        %512 = vmatpush1.bf16.msra.mxu0 0
        %513 = vmatprep.subr.bf16.mxu0 0
        %514 = vmatpush1.bf16.msra.mxu0 0
        %515 = vmatprep.subr.bf16.mxu0 0
        %516 = vmatpush1.bf16.msra.mxu0 0
        %517 = vmatprep.subr.bf16.mxu0 0
        %518 = vmatpush1.bf16.msra.mxu0 0
        %519 = vmatprep.subr.bf16.mxu0 0
        %520 = vmatpush1.bf16.msra.mxu0 0
        %521 = vmatprep.subr.bf16.mxu0 0
        %522 = vmatpush1.bf16.msra.mxu0 0
        %523 = vmatprep.mubr.bf16.mxu0 0
        %524 = vmatmul.mubr.bf16.gmra.mrb[0].mxu0 %v490
        %v525 = vpop.f32.mrb[0].mxu0
        %v526 = vadd.f32 0.0, %v525
        %v527 = vpop.f32.mrb[0].mxu0
        %v528 = vpop.f32.mrb[0].mxu0
        %v529 = vpop.f32.mrb[0].mxu0
        %530 = vdwg.mxu0
        %v533 = vunpack.c.l.b16 %v488
        %v534 = vunpack.c.l.b16 %v489
        %v535 = vrot.slane %v534, 7
        %v536 = vsel %vm403, %v535, %v533
        %v537 = vpack.c.b16 %v536, %v536
        %v539 = vsel %vm406, %v537, 0
        %541 = vmatprep.subr.bf16.mxu0 0
        %542 = vmatpush1.bf16.msra.mxu0 %v412
        %543 = vmatprep.subr.bf16.mxu0 0
        %544 = vmatpush1.bf16.msra.mxu0 0
        %545 = vmatprep.subr.bf16.mxu0 0
        %546 = vmatpush1.bf16.msra.mxu0 0
        %547 = vmatprep.subr.bf16.mxu0 0
        %548 = vmatpush1.bf16.msra.mxu0 0
        %549 = vmatprep.subr.bf16.mxu0 0
        %550 = vmatpush1.bf16.msra.mxu0 0
        %551 = vmatprep.subr.bf16.mxu0 0
        %552 = vmatpush1.bf16.msra.mxu0 0
        %553 = vmatprep.subr.bf16.mxu0 0
        %554 = vmatpush1.bf16.msra.mxu0 0
        %555 = vmatprep.subr.bf16.mxu0 0
        %556 = vmatpush1.bf16.msra.mxu0 0
        %557 = vmatprep.subr.bf16.mxu0 0
        %558 = vmatpush1.bf16.msra.mxu0 0
        %559 = vmatprep.subr.bf16.mxu0 0
        %560 = vmatpush1.bf16.msra.mxu0 0
        %561 = vmatprep.subr.bf16.mxu0 0
        %562 = vmatpush1.bf16.msra.mxu0 0
        %563 = vmatprep.subr.bf16.mxu0 0
        %564 = vmatpush1.bf16.msra.mxu0 0
        %565 = vmatprep.subr.bf16.mxu0 0
        %566 = vmatpush1.bf16.msra.mxu0 0
        %567 = vmatprep.subr.bf16.mxu0 0
        %568 = vmatpush1.bf16.msra.mxu0 0
        %569 = vmatprep.subr.bf16.mxu0 0
        %570 = vmatpush1.bf16.msra.mxu0 0
        %571 = vmatprep.subr.bf16.mxu0 0
        %572 = vmatpush1.bf16.msra.mxu0 0
        %573 = vmatprep.mubr.bf16.mxu0 0
        %574 = vmatmul.mubr.bf16.gmra.mrb[0].mxu0 %v539
        %v575 = vpop.f32.mrb[0].mxu0
        %v576 = vadd.f32 %v526, %v575
        %v577 = vpop.f32.mrb[0].mxu0
        %v578 = vpop.f32.mrb[0].mxu0
        %v579 = vpop.f32.mrb[0].mxu0
        %580 = vdwg.mxu0
        %v581 = vadd.f32 %v576, 0.1
        %vm582 = vcmp.gt.f32.partialorder %v458, 1.0
        %v583 = vmul.f32 %v458, 0.9
        %v584 = vadd.f32 %v583, %v581
        %v585 = vsel %vm582, 0.0, %v584
        %v588 = vunpack.c.l.s4 1966171168
        %v589 = vunpack.c.0.s8 %v588
        %v590 = vlaneseq
        %v591 = vshrl.u32 %v590, 7
        %v592 = vsub.s32 %v589, %v591
        %v593 = vrot.slane %v585, %v592
        %v594 = vcombine.high %v593, %v593
        %v596 = vunpack.c.l.s4 1966171168
        %v597 = vunpack.c.0.s8 %v596
        %v598 = vlaneseq
        %v599 = vshrl.u32 %v598, 7
        %v600 = vsub.s32 %v597, %v599
        %v601 = vrot.slane %v593, %v600
        %v603 = vunpack.c.l.s4 1966171168
        %v604 = vunpack.c.0.s8 %v603
        %v605 = vlaneseq
        %v606 = vshrl.u32 %v605, 7
        %v607 = vsub.s32 %v604, %v606
        %v608 = vrot.slane %v594, %v607
        %611 = vst [vmem:[%s267 + $0x1] sm:$0x1] %v601
        %612 = vst [vmem:[%s267 + $0x11] sm:$0x1] %v608
        %v613 = vld [vmem:[%s247 + $0x2] sm:$0x1]
        %v614 = vld [vmem:[%s247 + $0x12] sm:$0x1]
        %v615 = vpack.c.bf16 %v613, %v613
        %v616 = vpack.c.bf16 %v614, %v614
        %v617 = vpack.c.bf16 %v585, %v585
        %618 = vmatprep.subr.bf16.mxu0 0
        %619 = vmatpush1.bf16.msra.mxu0 %v342
        %620 = vmatprep.subr.bf16.mxu0 0
        %621 = vmatpush1.bf16.msra.mxu0 %v343
        %622 = vmatprep.subr.bf16.mxu0 0
        %623 = vmatpush1.bf16.msra.mxu0 %v344
        %624 = vmatprep.subr.bf16.mxu0 0
        %625 = vmatpush1.bf16.msra.mxu0 %v345
        %626 = vmatprep.subr.bf16.mxu0 0
        %627 = vmatpush1.bf16.msra.mxu0 %v346
        %628 = vmatprep.subr.bf16.mxu0 0
        %629 = vmatpush1.bf16.msra.mxu0 %v347
        %630 = vmatprep.subr.bf16.mxu0 0
        %631 = vmatpush1.bf16.msra.mxu0 %v348
        %632 = vmatprep.subr.bf16.mxu0 0
        %633 = vmatpush1.bf16.msra.mxu0 %v349
        %634 = vmatprep.subr.bf16.mxu0 0
        %635 = vmatpush1.bf16.msra.mxu0 0
        %636 = vmatprep.subr.bf16.mxu0 0
        %637 = vmatpush1.bf16.msra.mxu0 0
        %638 = vmatprep.subr.bf16.mxu0 0
        %639 = vmatpush1.bf16.msra.mxu0 0
        %640 = vmatprep.subr.bf16.mxu0 0
        %641 = vmatpush1.bf16.msra.mxu0 0
        %642 = vmatprep.subr.bf16.mxu0 0
        %643 = vmatpush1.bf16.msra.mxu0 0
        %644 = vmatprep.subr.bf16.mxu0 0
        %645 = vmatpush1.bf16.msra.mxu0 0
        %646 = vmatprep.subr.bf16.mxu0 0
        %647 = vmatpush1.bf16.msra.mxu0 0
        %648 = vmatprep.subr.bf16.mxu0 0
        %649 = vmatpush1.bf16.msra.mxu0 0
        %650 = vmatprep.mubr.bf16.mxu0 0
        %651 = vmatmul.mubr.bf16.gmra.mrb[0].mxu0 %v617
        %v652 = vpop.f32.mrb[0].mxu0
        %v653 = vadd.f32 0.0, %v652
        %v654 = vpop.f32.mrb[0].mxu0
        %v655 = vpop.f32.mrb[0].mxu0
        %v656 = vpop.f32.mrb[0].mxu0
        %657 = vdwg.mxu0
        %v660 = vunpack.c.l.b16 %v615
        %v661 = vunpack.c.l.b16 %v616
        %v662 = vrot.slane %v661, 7
        %v663 = vsel %vm403, %v662, %v660
        %v664 = vpack.c.b16 %v663, %v663
        %v666 = vsel %vm406, %v664, 0
        %668 = vmatprep.subr.bf16.mxu0 0
        %669 = vmatpush1.bf16.msra.mxu0 %v412
        %670 = vmatprep.subr.bf16.mxu0 0
        %671 = vmatpush1.bf16.msra.mxu0 0
        %672 = vmatprep.subr.bf16.mxu0 0
        %673 = vmatpush1.bf16.msra.mxu0 0
        %674 = vmatprep.subr.bf16.mxu0 0
        %675 = vmatpush1.bf16.msra.mxu0 0
        %676 = vmatprep.subr.bf16.mxu0 0
        %677 = vmatpush1.bf16.msra.mxu0 0
        %678 = vmatprep.subr.bf16.mxu0 0
        %679 = vmatpush1.bf16.msra.mxu0 0
        %680 = vmatprep.subr.bf16.mxu0 0
        %681 = vmatpush1.bf16.msra.mxu0 0
        %682 = vmatprep.subr.bf16.mxu0 0
        %683 = vmatpush1.bf16.msra.mxu0 0
        %684 = vmatprep.subr.bf16.mxu0 0
        %685 = vmatpush1.bf16.msra.mxu0 0
        %686 = vmatprep.subr.bf16.mxu0 0
        %687 = vmatpush1.bf16.msra.mxu0 0
        %688 = vmatprep.subr.bf16.mxu0 0
        %689 = vmatpush1.bf16.msra.mxu0 0
        %690 = vmatprep.subr.bf16.mxu0 0
        %691 = vmatpush1.bf16.msra.mxu0 0
        %692 = vmatprep.subr.bf16.mxu0 0
        %693 = vmatpush1.bf16.msra.mxu0 0
        %694 = vmatprep.subr.bf16.mxu0 0
        %695 = vmatpush1.bf16.msra.mxu0 0
        %696 = vmatprep.subr.bf16.mxu0 0
        %697 = vmatpush1.bf16.msra.mxu0 0
        %698 = vmatprep.subr.bf16.mxu0 0
        %699 = vmatpush1.bf16.msra.mxu0 0
        %700 = vmatprep.mubr.bf16.mxu0 0
        %701 = vmatmul.mubr.bf16.gmra.mrb[0].mxu0 %v666
        %v702 = vpop.f32.mrb[0].mxu0
        %v703 = vadd.f32 %v653, %v702
        %v704 = vpop.f32.mrb[0].mxu0
        %v705 = vpop.f32.mrb[0].mxu0
        %v706 = vpop.f32.mrb[0].mxu0
        %707 = vdwg.mxu0
        %v708 = vadd.f32 %v703, 0.1
        %vm709 = vcmp.gt.f32.partialorder %v585, 1.0
        %v710 = vmul.f32 %v585, 0.9
        %v711 = vadd.f32 %v710, %v708
        %v712 = vsel %vm709, 0.0, %v711
        %v715 = vunpack.c.l.s4 1966171168
        %v716 = vunpack.c.0.s8 %v715
        %v717 = vlaneseq
        %v718 = vshrl.u32 %v717, 7
        %v719 = vsub.s32 %v716, %v718
        %v720 = vrot.slane %v712, %v719
        %v721 = vcombine.high %v720, %v720
        %v723 = vunpack.c.l.s4 1966171168
        %v724 = vunpack.c.0.s8 %v723
        %v725 = vlaneseq
        %v726 = vshrl.u32 %v725, 7
        %v727 = vsub.s32 %v724, %v726
        %v728 = vrot.slane %v720, %v727
        %v730 = vunpack.c.l.s4 1966171168
        %v731 = vunpack.c.0.s8 %v730
        %v732 = vlaneseq
        %v733 = vshrl.u32 %v732, 7
        %v734 = vsub.s32 %v731, %v733
        %v735 = vrot.slane %v721, %v734
        %738 = vst [vmem:[%s267 + $0x2] sm:$0x1] %v728
        %739 = vst [vmem:[%s267 + $0x12] sm:$0x1] %v735
        %v740 = vld [vmem:[%s247 + $0x3] sm:$0x1]
        %v741 = vld [vmem:[%s247 + $0x13] sm:$0x1]
        %v742 = vpack.c.bf16 %v740, %v740
        %v743 = vpack.c.bf16 %v741, %v741
        %v744 = vpack.c.bf16 %v712, %v712
        %745 = vmatprep.subr.bf16.mxu0 0
        %746 = vmatpush1.bf16.msra.mxu0 %v342
        %747 = vmatprep.subr.bf16.mxu0 0
        %748 = vmatpush1.bf16.msra.mxu0 %v343
        %749 = vmatprep.subr.bf16.mxu0 0
        %750 = vmatpush1.bf16.msra.mxu0 %v344
        %751 = vmatprep.subr.bf16.mxu0 0
        %752 = vmatpush1.bf16.msra.mxu0 %v345
        %753 = vmatprep.subr.bf16.mxu0 0
        %754 = vmatpush1.bf16.msra.mxu0 %v346
        %755 = vmatprep.subr.bf16.mxu0 0
        %756 = vmatpush1.bf16.msra.mxu0 %v347
        %757 = vmatprep.subr.bf16.mxu0 0
        %758 = vmatpush1.bf16.msra.mxu0 %v348
        %759 = vmatprep.subr.bf16.mxu0 0
        %760 = vmatpush1.bf16.msra.mxu0 %v349
        %761 = vmatprep.subr.bf16.mxu0 0
        %762 = vmatpush1.bf16.msra.mxu0 0
        %763 = vmatprep.subr.bf16.mxu0 0
        %764 = vmatpush1.bf16.msra.mxu0 0
        %765 = vmatprep.subr.bf16.mxu0 0
        %766 = vmatpush1.bf16.msra.mxu0 0
        %767 = vmatprep.subr.bf16.mxu0 0
        %768 = vmatpush1.bf16.msra.mxu0 0
        %769 = vmatprep.subr.bf16.mxu0 0
        %770 = vmatpush1.bf16.msra.mxu0 0
        %771 = vmatprep.subr.bf16.mxu0 0
        %772 = vmatpush1.bf16.msra.mxu0 0
        %773 = vmatprep.subr.bf16.mxu0 0
        %774 = vmatpush1.bf16.msra.mxu0 0
        %775 = vmatprep.subr.bf16.mxu0 0
        %776 = vmatpush1.bf16.msra.mxu0 0
        %777 = vmatprep.mubr.bf16.mxu0 0
        %778 = vmatmul.mubr.bf16.gmra.mrb[0].mxu0 %v744
        %v779 = vpop.f32.mrb[0].mxu0
        %v780 = vadd.f32 0.0, %v779
        %v781 = vpop.f32.mrb[0].mxu0
        %v782 = vpop.f32.mrb[0].mxu0
        %v783 = vpop.f32.mrb[0].mxu0
        %784 = vdwg.mxu0
        %v787 = vunpack.c.l.b16 %v742
        %v788 = vunpack.c.l.b16 %v743
        %v789 = vrot.slane %v788, 7
        %v790 = vsel %vm403, %v789, %v787
        %v791 = vpack.c.b16 %v790, %v790
        %v793 = vsel %vm406, %v791, 0
        %795 = vmatprep.subr.bf16.mxu0 0
        %796 = vmatpush1.bf16.msra.mxu0 %v412
        %797 = vmatprep.subr.bf16.mxu0 0
        %798 = vmatpush1.bf16.msra.mxu0 0
        %799 = vmatprep.subr.bf16.mxu0 0
        %800 = vmatpush1.bf16.msra.mxu0 0
        %801 = vmatprep.subr.bf16.mxu0 0
        %802 = vmatpush1.bf16.msra.mxu0 0
        %803 = vmatprep.subr.bf16.mxu0 0
        %804 = vmatpush1.bf16.msra.mxu0 0
        %805 = vmatprep.subr.bf16.mxu0 0
        %806 = vmatpush1.bf16.msra.mxu0 0
        %807 = vmatprep.subr.bf16.mxu0 0
        %808 = vmatpush1.bf16.msra.mxu0 0
        %809 = vmatprep.subr.bf16.mxu0 0
        %810 = vmatpush1.bf16.msra.mxu0 0
        %811 = vmatprep.subr.bf16.mxu0 0
        %812 = vmatpush1.bf16.msra.mxu0 0
        %813 = vmatprep.subr.bf16.mxu0 0
        %814 = vmatpush1.bf16.msra.mxu0 0
        %815 = vmatprep.subr.bf16.mxu0 0
        %816 = vmatpush1.bf16.msra.mxu0 0
        %817 = vmatprep.subr.bf16.mxu0 0
        %818 = vmatpush1.bf16.msra.mxu0 0
        %819 = vmatprep.subr.bf16.mxu0 0
        %820 = vmatpush1.bf16.msra.mxu0 0
        %821 = vmatprep.subr.bf16.mxu0 0
        %822 = vmatpush1.bf16.msra.mxu0 0
        %823 = vmatprep.subr.bf16.mxu0 0
        %824 = vmatpush1.bf16.msra.mxu0 0
        %825 = vmatprep.subr.bf16.mxu0 0
        %826 = vmatpush1.bf16.msra.mxu0 0
        %827 = vmatprep.mubr.bf16.mxu0 0
        %828 = vmatmul.mubr.bf16.gmra.mrb[0].mxu0 %v793
        %v829 = vpop.f32.mrb[0].mxu0
        %v830 = vadd.f32 %v780, %v829
        %v831 = vpop.f32.mrb[0].mxu0
        %v832 = vpop.f32.mrb[0].mxu0
        %v833 = vpop.f32.mrb[0].mxu0
        %834 = vdwg.mxu0
        %v835 = vadd.f32 %v830, 0.1
        %vm836 = vcmp.gt.f32.partialorder %v712, 1.0
        %v837 = vmul.f32 %v712, 0.9
        %v838 = vadd.f32 %v837, %v835
        %v839 = vsel %vm836, 0.0, %v838
        %v842 = vunpack.c.l.s4 1966171168
        %v843 = vunpack.c.0.s8 %v842
        %v844 = vlaneseq
        %v845 = vshrl.u32 %v844, 7
        %v846 = vsub.s32 %v843, %v845
        %v847 = vrot.slane %v839, %v846
        %v848 = vcombine.high %v847, %v847
        %v850 = vunpack.c.l.s4 1966171168
        %v851 = vunpack.c.0.s8 %v850
        %v852 = vlaneseq
        %v853 = vshrl.u32 %v852, 7
        %v854 = vsub.s32 %v851, %v853
        %v855 = vrot.slane %v847, %v854
        %v857 = vunpack.c.l.s4 1966171168
        %v858 = vunpack.c.0.s8 %v857
        %v859 = vlaneseq
        %v860 = vshrl.u32 %v859, 7
        %v861 = vsub.s32 %v858, %v860
        %v862 = vrot.slane %v848, %v861
        %865 = vst [vmem:[%s267 + $0x3] sm:$0x1] %v855
        %866 = vst [vmem:[%s267 + $0x13] sm:$0x1] %v862
        %v867 = vld [vmem:[%s247 + $0x4] sm:$0x1]
        %v868 = vld [vmem:[%s247 + $0x14] sm:$0x1]
        %v869 = vpack.c.bf16 %v867, %v867
        %v870 = vpack.c.bf16 %v868, %v868
        %v871 = vpack.c.bf16 %v839, %v839
        %872 = vmatprep.subr.bf16.mxu0 0
        %873 = vmatpush1.bf16.msra.mxu0 %v342
        %874 = vmatprep.subr.bf16.mxu0 0
        %875 = vmatpush1.bf16.msra.mxu0 %v343
        %876 = vmatprep.subr.bf16.mxu0 0
        %877 = vmatpush1.bf16.msra.mxu0 %v344
        %878 = vmatprep.subr.bf16.mxu0 0
        %879 = vmatpush1.bf16.msra.mxu0 %v345
        %880 = vmatprep.subr.bf16.mxu0 0
        %881 = vmatpush1.bf16.msra.mxu0 %v346
        %882 = vmatprep.subr.bf16.mxu0 0
        %883 = vmatpush1.bf16.msra.mxu0 %v347
        %884 = vmatprep.subr.bf16.mxu0 0
        %885 = vmatpush1.bf16.msra.mxu0 %v348
        %886 = vmatprep.subr.bf16.mxu0 0
        %887 = vmatpush1.bf16.msra.mxu0 %v349
        %888 = vmatprep.subr.bf16.mxu0 0
        %889 = vmatpush1.bf16.msra.mxu0 0
        %890 = vmatprep.subr.bf16.mxu0 0
        %891 = vmatpush1.bf16.msra.mxu0 0
        %892 = vmatprep.subr.bf16.mxu0 0
        %893 = vmatpush1.bf16.msra.mxu0 0
        %894 = vmatprep.subr.bf16.mxu0 0
        %895 = vmatpush1.bf16.msra.mxu0 0
        %896 = vmatprep.subr.bf16.mxu0 0
        %897 = vmatpush1.bf16.msra.mxu0 0
        %898 = vmatprep.subr.bf16.mxu0 0
        %899 = vmatpush1.bf16.msra.mxu0 0
        %900 = vmatprep.subr.bf16.mxu0 0
        %901 = vmatpush1.bf16.msra.mxu0 0
        %902 = vmatprep.subr.bf16.mxu0 0
        %903 = vmatpush1.bf16.msra.mxu0 0
        %904 = vmatprep.mubr.bf16.mxu0 0
        %905 = vmatmul.mubr.bf16.gmra.mrb[0].mxu0 %v871
        %v906 = vpop.f32.mrb[0].mxu0
        %v907 = vadd.f32 0.0, %v906
        %v908 = vpop.f32.mrb[0].mxu0
        %v909 = vpop.f32.mrb[0].mxu0
        %v910 = vpop.f32.mrb[0].mxu0
        %911 = vdwg.mxu0
        %v914 = vunpack.c.l.b16 %v869
        %v915 = vunpack.c.l.b16 %v870
        %v916 = vrot.slane %v915, 7
        %v917 = vsel %vm403, %v916, %v914
        %v918 = vpack.c.b16 %v917, %v917
        %v920 = vsel %vm406, %v918, 0
        %922 = vmatprep.subr.bf16.mxu0 0
        %923 = vmatpush1.bf16.msra.mxu0 %v412
        %924 = vmatprep.subr.bf16.mxu0 0
        %925 = vmatpush1.bf16.msra.mxu0 0
        %926 = vmatprep.subr.bf16.mxu0 0
        %927 = vmatpush1.bf16.msra.mxu0 0
        %928 = vmatprep.subr.bf16.mxu0 0
        %929 = vmatpush1.bf16.msra.mxu0 0
        %930 = vmatprep.subr.bf16.mxu0 0
        %931 = vmatpush1.bf16.msra.mxu0 0
        %932 = vmatprep.subr.bf16.mxu0 0
        %933 = vmatpush1.bf16.msra.mxu0 0
        %934 = vmatprep.subr.bf16.mxu0 0
        %935 = vmatpush1.bf16.msra.mxu0 0
        %936 = vmatprep.subr.bf16.mxu0 0
        %937 = vmatpush1.bf16.msra.mxu0 0
        %938 = vmatprep.subr.bf16.mxu0 0
        %939 = vmatpush1.bf16.msra.mxu0 0
        %940 = vmatprep.subr.bf16.mxu0 0
        %941 = vmatpush1.bf16.msra.mxu0 0
        %942 = vmatprep.subr.bf16.mxu0 0
        %943 = vmatpush1.bf16.msra.mxu0 0
        %944 = vmatprep.subr.bf16.mxu0 0
        %945 = vmatpush1.bf16.msra.mxu0 0
        %946 = vmatprep.subr.bf16.mxu0 0
        %947 = vmatpush1.bf16.msra.mxu0 0
        %948 = vmatprep.subr.bf16.mxu0 0
        %949 = vmatpush1.bf16.msra.mxu0 0
        %950 = vmatprep.subr.bf16.mxu0 0
        %951 = vmatpush1.bf16.msra.mxu0 0
        %952 = vmatprep.subr.bf16.mxu0 0
        %953 = vmatpush1.bf16.msra.mxu0 0
        %954 = vmatprep.mubr.bf16.mxu0 0
        %955 = vmatmul.mubr.bf16.gmra.mrb[0].mxu0 %v920
        %v956 = vpop.f32.mrb[0].mxu0
        %v957 = vadd.f32 %v907, %v956
        %v958 = vpop.f32.mrb[0].mxu0
        %v959 = vpop.f32.mrb[0].mxu0
        %v960 = vpop.f32.mrb[0].mxu0
        %961 = vdwg.mxu0
        %v962 = vadd.f32 %v957, 0.1
        %vm963 = vcmp.gt.f32.partialorder %v839, 1.0
        %v964 = vmul.f32 %v839, 0.9
        %v965 = vadd.f32 %v964, %v962
        %v966 = vsel %vm963, 0.0, %v965
        %v969 = vunpack.c.l.s4 1966171168
        %v970 = vunpack.c.0.s8 %v969
        %v971 = vlaneseq
        %v972 = vshrl.u32 %v971, 7
        %v973 = vsub.s32 %v970, %v972
        %v974 = vrot.slane %v966, %v973
        %v975 = vcombine.high %v974, %v974
        %v977 = vunpack.c.l.s4 1966171168
        %v978 = vunpack.c.0.s8 %v977
        %v979 = vlaneseq
        %v980 = vshrl.u32 %v979, 7
        %v981 = vsub.s32 %v978, %v980
        %v982 = vrot.slane %v974, %v981
        %v984 = vunpack.c.l.s4 1966171168
        %v985 = vunpack.c.0.s8 %v984
        %v986 = vlaneseq
        %v987 = vshrl.u32 %v986, 7
        %v988 = vsub.s32 %v985, %v987
        %v989 = vrot.slane %v975, %v988
        %992 = vst [vmem:[%s267 + $0x4] sm:$0x1] %v982
        %993 = vst [vmem:[%s267 + $0x14] sm:$0x1] %v989
        %v994 = vld [vmem:[%s247 + $0x5] sm:$0x1]
        %v995 = vld [vmem:[%s247 + $0x15] sm:$0x1]
        %v996 = vpack.c.bf16 %v994, %v994
        %v997 = vpack.c.bf16 %v995, %v995
        %v998 = vpack.c.bf16 %v966, %v966
        %999 = vmatprep.subr.bf16.mxu0 0
        %1000 = vmatpush1.bf16.msra.mxu0 %v342
        %1001 = vmatprep.subr.bf16.mxu0 0
        %1002 = vmatpush1.bf16.msra.mxu0 %v343
        %1003 = vmatprep.subr.bf16.mxu0 0
        %1004 = vmatpush1.bf16.msra.mxu0 %v344
        %1005 = vmatprep.subr.bf16.mxu0 0
        %1006 = vmatpush1.bf16.msra.mxu0 %v345
        %1007 = vmatprep.subr.bf16.mxu0 0
        %1008 = vmatpush1.bf16.msra.mxu0 %v346
        %1009 = vmatprep.subr.bf16.mxu0 0
        %1010 = vmatpush1.bf16.msra.mxu0 %v347
        %1011 = vmatprep.subr.bf16.mxu0 0
        %1012 = vmatpush1.bf16.msra.mxu0 %v348
        %1013 = vmatprep.subr.bf16.mxu0 0
        %1014 = vmatpush1.bf16.msra.mxu0 %v349
        %1015 = vmatprep.subr.bf16.mxu0 0
        %1016 = vmatpush1.bf16.msra.mxu0 0
        %1017 = vmatprep.subr.bf16.mxu0 0
        %1018 = vmatpush1.bf16.msra.mxu0 0
        %1019 = vmatprep.subr.bf16.mxu0 0
        %1020 = vmatpush1.bf16.msra.mxu0 0
        %1021 = vmatprep.subr.bf16.mxu0 0
        %1022 = vmatpush1.bf16.msra.mxu0 0
        %1023 = vmatprep.subr.bf16.mxu0 0
        %1024 = vmatpush1.bf16.msra.mxu0 0
        %1025 = vmatprep.subr.bf16.mxu0 0
        %1026 = vmatpush1.bf16.msra.mxu0 0
        %1027 = vmatprep.subr.bf16.mxu0 0
        %1028 = vmatpush1.bf16.msra.mxu0 0
        %1029 = vmatprep.subr.bf16.mxu0 0
        %1030 = vmatpush1.bf16.msra.mxu0 0
        %1031 = vmatprep.mubr.bf16.mxu0 0
        %1032 = vmatmul.mubr.bf16.gmra.mrb[0].mxu0 %v998
        %v1033 = vpop.f32.mrb[0].mxu0
        %v1034 = vadd.f32 0.0, %v1033
        %v1035 = vpop.f32.mrb[0].mxu0
        %v1036 = vpop.f32.mrb[0].mxu0
        %v1037 = vpop.f32.mrb[0].mxu0
        %1038 = vdwg.mxu0
        %v1041 = vunpack.c.l.b16 %v996
        %v1042 = vunpack.c.l.b16 %v997
        %v1043 = vrot.slane %v1042, 7
        %v1044 = vsel %vm403, %v1043, %v1041
        %v1045 = vpack.c.b16 %v1044, %v1044
        %v1047 = vsel %vm406, %v1045, 0
        %1049 = vmatprep.subr.bf16.mxu0 0
        %1050 = vmatpush1.bf16.msra.mxu0 %v412
        %1051 = vmatprep.subr.bf16.mxu0 0
        %1052 = vmatpush1.bf16.msra.mxu0 0
        %1053 = vmatprep.subr.bf16.mxu0 0
        %1054 = vmatpush1.bf16.msra.mxu0 0
        %1055 = vmatprep.subr.bf16.mxu0 0
        %1056 = vmatpush1.bf16.msra.mxu0 0
        %1057 = vmatprep.subr.bf16.mxu0 0
        %1058 = vmatpush1.bf16.msra.mxu0 0
        %1059 = vmatprep.subr.bf16.mxu0 0
        %1060 = vmatpush1.bf16.msra.mxu0 0
        %1061 = vmatprep.subr.bf16.mxu0 0
        %1062 = vmatpush1.bf16.msra.mxu0 0
        %1063 = vmatprep.subr.bf16.mxu0 0
        %1064 = vmatpush1.bf16.msra.mxu0 0
        %1065 = vmatprep.subr.bf16.mxu0 0
        %1066 = vmatpush1.bf16.msra.mxu0 0
        %1067 = vmatprep.subr.bf16.mxu0 0
        %1068 = vmatpush1.bf16.msra.mxu0 0
        %1069 = vmatprep.subr.bf16.mxu0 0
        %1070 = vmatpush1.bf16.msra.mxu0 0
        %1071 = vmatprep.subr.bf16.mxu0 0
        %1072 = vmatpush1.bf16.msra.mxu0 0
        %1073 = vmatprep.subr.bf16.mxu0 0
        %1074 = vmatpush1.bf16.msra.mxu0 0
        %1075 = vmatprep.subr.bf16.mxu0 0
        %1076 = vmatpush1.bf16.msra.mxu0 0
        %1077 = vmatprep.subr.bf16.mxu0 0
        %1078 = vmatpush1.bf16.msra.mxu0 0
        %1079 = vmatprep.subr.bf16.mxu0 0
        %1080 = vmatpush1.bf16.msra.mxu0 0
        %1081 = vmatprep.mubr.bf16.mxu0 0
        %1082 = vmatmul.mubr.bf16.gmra.mrb[0].mxu0 %v1047
        %v1083 = vpop.f32.mrb[0].mxu0
        %v1084 = vadd.f32 %v1034, %v1083
        %v1085 = vpop.f32.mrb[0].mxu0
        %v1086 = vpop.f32.mrb[0].mxu0
        %v1087 = vpop.f32.mrb[0].mxu0
        %1088 = vdwg.mxu0
        %v1089 = vadd.f32 %v1084, 0.1
        %vm1090 = vcmp.gt.f32.partialorder %v966, 1.0
        %v1091 = vmul.f32 %v966, 0.9
        %v1092 = vadd.f32 %v1091, %v1089
        %v1093 = vsel %vm1090, 0.0, %v1092
        %v1096 = vunpack.c.l.s4 1966171168
        %v1097 = vunpack.c.0.s8 %v1096
        %v1098 = vlaneseq
        %v1099 = vshrl.u32 %v1098, 7
        %v1100 = vsub.s32 %v1097, %v1099
        %v1101 = vrot.slane %v1093, %v1100
        %v1102 = vcombine.high %v1101, %v1101
        %v1104 = vunpack.c.l.s4 1966171168
        %v1105 = vunpack.c.0.s8 %v1104
        %v1106 = vlaneseq
        %v1107 = vshrl.u32 %v1106, 7
        %v1108 = vsub.s32 %v1105, %v1107
        %v1109 = vrot.slane %v1101, %v1108
        %v1111 = vunpack.c.l.s4 1966171168
        %v1112 = vunpack.c.0.s8 %v1111
        %v1113 = vlaneseq
        %v1114 = vshrl.u32 %v1113, 7
        %v1115 = vsub.s32 %v1112, %v1114
        %v1116 = vrot.slane %v1102, %v1115
        %1119 = vst [vmem:[%s267 + $0x5] sm:$0x1] %v1109
        %1120 = vst [vmem:[%s267 + $0x15] sm:$0x1] %v1116
        %v1121 = vld [vmem:[%s247 + $0x6] sm:$0x1]
        %v1122 = vld [vmem:[%s247 + $0x16] sm:$0x1]
        %v1123 = vpack.c.bf16 %v1121, %v1121
        %v1124 = vpack.c.bf16 %v1122, %v1122
        %v1125 = vpack.c.bf16 %v1093, %v1093
        %1126 = vmatprep.subr.bf16.mxu0 0
        %1127 = vmatpush1.bf16.msra.mxu0 %v342
        %1128 = vmatprep.subr.bf16.mxu0 0
        %1129 = vmatpush1.bf16.msra.mxu0 %v343
        %1130 = vmatprep.subr.bf16.mxu0 0
        %1131 = vmatpush1.bf16.msra.mxu0 %v344
        %1132 = vmatprep.subr.bf16.mxu0 0
        %1133 = vmatpush1.bf16.msra.mxu0 %v345
        %1134 = vmatprep.subr.bf16.mxu0 0
        %1135 = vmatpush1.bf16.msra.mxu0 %v346
        %1136 = vmatprep.subr.bf16.mxu0 0
        %1137 = vmatpush1.bf16.msra.mxu0 %v347
        %1138 = vmatprep.subr.bf16.mxu0 0
        %1139 = vmatpush1.bf16.msra.mxu0 %v348
        %1140 = vmatprep.subr.bf16.mxu0 0
        %1141 = vmatpush1.bf16.msra.mxu0 %v349
        %1142 = vmatprep.subr.bf16.mxu0 0
        %1143 = vmatpush1.bf16.msra.mxu0 0
        %1144 = vmatprep.subr.bf16.mxu0 0
        %1145 = vmatpush1.bf16.msra.mxu0 0
        %1146 = vmatprep.subr.bf16.mxu0 0
        %1147 = vmatpush1.bf16.msra.mxu0 0
        %1148 = vmatprep.subr.bf16.mxu0 0
        %1149 = vmatpush1.bf16.msra.mxu0 0
        %1150 = vmatprep.subr.bf16.mxu0 0
        %1151 = vmatpush1.bf16.msra.mxu0 0
        %1152 = vmatprep.subr.bf16.mxu0 0
        %1153 = vmatpush1.bf16.msra.mxu0 0
        %1154 = vmatprep.subr.bf16.mxu0 0
        %1155 = vmatpush1.bf16.msra.mxu0 0
        %1156 = vmatprep.subr.bf16.mxu0 0
        %1157 = vmatpush1.bf16.msra.mxu0 0
        %1158 = vmatprep.mubr.bf16.mxu0 0
        %1159 = vmatmul.mubr.bf16.gmra.mrb[0].mxu0 %v1125
        %v1160 = vpop.f32.mrb[0].mxu0
        %v1161 = vadd.f32 0.0, %v1160
        %v1162 = vpop.f32.mrb[0].mxu0
        %v1163 = vpop.f32.mrb[0].mxu0
        %v1164 = vpop.f32.mrb[0].mxu0
        %1165 = vdwg.mxu0
        %v1168 = vunpack.c.l.b16 %v1123
        %v1169 = vunpack.c.l.b16 %v1124
        %v1170 = vrot.slane %v1169, 7
        %v1171 = vsel %vm403, %v1170, %v1168
        %v1172 = vpack.c.b16 %v1171, %v1171
        %v1174 = vsel %vm406, %v1172, 0
        %1176 = vmatprep.subr.bf16.mxu0 0
        %1177 = vmatpush1.bf16.msra.mxu0 %v412
        %1178 = vmatprep.subr.bf16.mxu0 0
        %1179 = vmatpush1.bf16.msra.mxu0 0
        %1180 = vmatprep.subr.bf16.mxu0 0
        %1181 = vmatpush1.bf16.msra.mxu0 0
        %1182 = vmatprep.subr.bf16.mxu0 0
        %1183 = vmatpush1.bf16.msra.mxu0 0
        %1184 = vmatprep.subr.bf16.mxu0 0
        %1185 = vmatpush1.bf16.msra.mxu0 0
        %1186 = vmatprep.subr.bf16.mxu0 0
        %1187 = vmatpush1.bf16.msra.mxu0 0
        %1188 = vmatprep.subr.bf16.mxu0 0
        %1189 = vmatpush1.bf16.msra.mxu0 0
        %1190 = vmatprep.subr.bf16.mxu0 0
        %1191 = vmatpush1.bf16.msra.mxu0 0
        %1192 = vmatprep.subr.bf16.mxu0 0
        %1193 = vmatpush1.bf16.msra.mxu0 0
        %1194 = vmatprep.subr.bf16.mxu0 0
        %1195 = vmatpush1.bf16.msra.mxu0 0
        %1196 = vmatprep.subr.bf16.mxu0 0
        %1197 = vmatpush1.bf16.msra.mxu0 0
        %1198 = vmatprep.subr.bf16.mxu0 0
        %1199 = vmatpush1.bf16.msra.mxu0 0
        %1200 = vmatprep.subr.bf16.mxu0 0
        %1201 = vmatpush1.bf16.msra.mxu0 0
        %1202 = vmatprep.subr.bf16.mxu0 0
        %1203 = vmatpush1.bf16.msra.mxu0 0
        %1204 = vmatprep.subr.bf16.mxu0 0
        %1205 = vmatpush1.bf16.msra.mxu0 0
        %1206 = vmatprep.subr.bf16.mxu0 0
        %1207 = vmatpush1.bf16.msra.mxu0 0
        %1208 = vmatprep.mubr.bf16.mxu0 0
        %1209 = vmatmul.mubr.bf16.gmra.mrb[0].mxu0 %v1174
        %v1210 = vpop.f32.mrb[0].mxu0
        %v1211 = vadd.f32 %v1161, %v1210
        %v1212 = vpop.f32.mrb[0].mxu0
        %v1213 = vpop.f32.mrb[0].mxu0
        %v1214 = vpop.f32.mrb[0].mxu0
        %1215 = vdwg.mxu0
        %v1216 = vadd.f32 %v1211, 0.1
        %vm1217 = vcmp.gt.f32.partialorder %v1093, 1.0
        %v1218 = vmul.f32 %v1093, 0.9
        %v1219 = vadd.f32 %v1218, %v1216
        %v1220 = vsel %vm1217, 0.0, %v1219
        %v1223 = vunpack.c.l.s4 1966171168
        %v1224 = vunpack.c.0.s8 %v1223
        %v1225 = vlaneseq
        %v1226 = vshrl.u32 %v1225, 7
        %v1227 = vsub.s32 %v1224, %v1226
        %v1228 = vrot.slane %v1220, %v1227
        %v1229 = vcombine.high %v1228, %v1228
        %v1231 = vunpack.c.l.s4 1966171168
        %v1232 = vunpack.c.0.s8 %v1231
        %v1233 = vlaneseq
        %v1234 = vshrl.u32 %v1233, 7
        %v1235 = vsub.s32 %v1232, %v1234
        %v1236 = vrot.slane %v1228, %v1235
        %v1238 = vunpack.c.l.s4 1966171168
        %v1239 = vunpack.c.0.s8 %v1238
        %v1240 = vlaneseq
        %v1241 = vshrl.u32 %v1240, 7
        %v1242 = vsub.s32 %v1239, %v1241
        %v1243 = vrot.slane %v1229, %v1242
        %1246 = vst [vmem:[%s267 + $0x6] sm:$0x1] %v1236
        %1247 = vst [vmem:[%s267 + $0x16] sm:$0x1] %v1243
        %v1248 = vld [vmem:[%s247 + $0x7] sm:$0x1]
        %v1249 = vld [vmem:[%s247 + $0x17] sm:$0x1]
        %v1250 = vpack.c.bf16 %v1248, %v1248
        %v1251 = vpack.c.bf16 %v1249, %v1249
        %v1252 = vpack.c.bf16 %v1220, %v1220
        %1253 = vmatprep.subr.bf16.mxu0 0
        %1254 = vmatpush1.bf16.msra.mxu0 %v342
        %1255 = vmatprep.subr.bf16.mxu0 0
        %1256 = vmatpush1.bf16.msra.mxu0 %v343
        %1257 = vmatprep.subr.bf16.mxu0 0
        %1258 = vmatpush1.bf16.msra.mxu0 %v344
        %1259 = vmatprep.subr.bf16.mxu0 0
        %1260 = vmatpush1.bf16.msra.mxu0 %v345
        %1261 = vmatprep.subr.bf16.mxu0 0
        %1262 = vmatpush1.bf16.msra.mxu0 %v346
        %1263 = vmatprep.subr.bf16.mxu0 0
        %1264 = vmatpush1.bf16.msra.mxu0 %v347
        %1265 = vmatprep.subr.bf16.mxu0 0
        %1266 = vmatpush1.bf16.msra.mxu0 %v348
        %1267 = vmatprep.subr.bf16.mxu0 0
        %1268 = vmatpush1.bf16.msra.mxu0 %v349
        %1269 = vmatprep.subr.bf16.mxu0 0
        %1270 = vmatpush1.bf16.msra.mxu0 0
        %1271 = vmatprep.subr.bf16.mxu0 0
        %1272 = vmatpush1.bf16.msra.mxu0 0
        %1273 = vmatprep.subr.bf16.mxu0 0
        %1274 = vmatpush1.bf16.msra.mxu0 0
        %1275 = vmatprep.subr.bf16.mxu0 0
        %1276 = vmatpush1.bf16.msra.mxu0 0
        %1277 = vmatprep.subr.bf16.mxu0 0
        %1278 = vmatpush1.bf16.msra.mxu0 0
        %1279 = vmatprep.subr.bf16.mxu0 0
        %1280 = vmatpush1.bf16.msra.mxu0 0
        %1281 = vmatprep.subr.bf16.mxu0 0
        %1282 = vmatpush1.bf16.msra.mxu0 0
        %1283 = vmatprep.subr.bf16.mxu0 0
        %1284 = vmatpush1.bf16.msra.mxu0 0
        %1285 = vmatprep.mubr.bf16.mxu0 0
        %1286 = vmatmul.mubr.bf16.gmra.mrb[0].mxu0 %v1252
        %v1287 = vpop.f32.mrb[0].mxu0
        %v1288 = vadd.f32 0.0, %v1287
        %v1289 = vpop.f32.mrb[0].mxu0
        %v1290 = vpop.f32.mrb[0].mxu0
        %v1291 = vpop.f32.mrb[0].mxu0
        %1292 = vdwg.mxu0
        %v1295 = vunpack.c.l.b16 %v1250
        %v1296 = vunpack.c.l.b16 %v1251
        %v1297 = vrot.slane %v1296, 7
        %v1298 = vsel %vm403, %v1297, %v1295
        %v1299 = vpack.c.b16 %v1298, %v1298
        %v1301 = vsel %vm406, %v1299, 0
        %1303 = vmatprep.subr.bf16.mxu0 0
        %1304 = vmatpush1.bf16.msra.mxu0 %v412
        %1305 = vmatprep.subr.bf16.mxu0 0
        %1306 = vmatpush1.bf16.msra.mxu0 0
        %1307 = vmatprep.subr.bf16.mxu0 0
        %1308 = vmatpush1.bf16.msra.mxu0 0
        %1309 = vmatprep.subr.bf16.mxu0 0
        %1310 = vmatpush1.bf16.msra.mxu0 0
        %1311 = vmatprep.subr.bf16.mxu0 0
        %1312 = vmatpush1.bf16.msra.mxu0 0
        %1313 = vmatprep.subr.bf16.mxu0 0
        %1314 = vmatpush1.bf16.msra.mxu0 0
        %1315 = vmatprep.subr.bf16.mxu0 0
        %1316 = vmatpush1.bf16.msra.mxu0 0
        %1317 = vmatprep.subr.bf16.mxu0 0
        %1318 = vmatpush1.bf16.msra.mxu0 0
        %1319 = vmatprep.subr.bf16.mxu0 0
        %1320 = vmatpush1.bf16.msra.mxu0 0
        %1321 = vmatprep.subr.bf16.mxu0 0
        %1322 = vmatpush1.bf16.msra.mxu0 0
        %1323 = vmatprep.subr.bf16.mxu0 0
        %1324 = vmatpush1.bf16.msra.mxu0 0
        %1325 = vmatprep.subr.bf16.mxu0 0
        %1326 = vmatpush1.bf16.msra.mxu0 0
        %1327 = vmatprep.subr.bf16.mxu0 0
        %1328 = vmatpush1.bf16.msra.mxu0 0
        %1329 = vmatprep.subr.bf16.mxu0 0
        %1330 = vmatpush1.bf16.msra.mxu0 0
        %1331 = vmatprep.subr.bf16.mxu0 0
        %1332 = vmatpush1.bf16.msra.mxu0 0
        %1333 = vmatprep.subr.bf16.mxu0 0
        %1334 = vmatpush1.bf16.msra.mxu0 0
        %1335 = vmatprep.mubr.bf16.mxu0 0
        %1336 = vmatmul.mubr.bf16.gmra.mrb[0].mxu0 %v1301
        %v1337 = vpop.f32.mrb[0].mxu0
        %v1338 = vadd.f32 %v1288, %v1337
        %v1339 = vpop.f32.mrb[0].mxu0
        %v1340 = vpop.f32.mrb[0].mxu0
        %v1341 = vpop.f32.mrb[0].mxu0
        %1342 = vdwg.mxu0
        %v1343 = vadd.f32 %v1338, 0.1
        %vm1344 = vcmp.gt.f32.partialorder %v1220, 1.0
        %v1345 = vmul.f32 %v1220, 0.9
        %v1346 = vadd.f32 %v1345, %v1343
        %v1347 = vsel %vm1344, 0.0, %v1346
        %v1350 = vunpack.c.l.s4 1966171168
        %v1351 = vunpack.c.0.s8 %v1350
        %v1352 = vlaneseq
        %v1353 = vshrl.u32 %v1352, 7
        %v1354 = vsub.s32 %v1351, %v1353
        %v1355 = vrot.slane %v1347, %v1354
        %v1356 = vcombine.high %v1355, %v1355
        %v1358 = vunpack.c.l.s4 1966171168
        %v1359 = vunpack.c.0.s8 %v1358
        %v1360 = vlaneseq
        %v1361 = vshrl.u32 %v1360, 7
        %v1362 = vsub.s32 %v1359, %v1361
        %v1363 = vrot.slane %v1355, %v1362
        %v1365 = vunpack.c.l.s4 1966171168
        %v1366 = vunpack.c.0.s8 %v1365
        %v1367 = vlaneseq
        %v1368 = vshrl.u32 %v1367, 7
        %v1369 = vsub.s32 %v1366, %v1368
        %v1370 = vrot.slane %v1356, %v1369
        %1373 = vst [vmem:[%s267 + $0x7] sm:$0x1] %v1363
        %1374 = vst [vmem:[%s267 + $0x17] sm:$0x1] %v1370
        %v1375 = vld [vmem:[%s247 + $0x8] sm:$0x1]
        %v1376 = vld [vmem:[%s247 + $0x18] sm:$0x1]
        %v1377 = vpack.c.bf16 %v1375, %v1375
        %v1378 = vpack.c.bf16 %v1376, %v1376
        %v1379 = vpack.c.bf16 %v1347, %v1347
        %1380 = vmatprep.subr.bf16.mxu0 0
        %1381 = vmatpush1.bf16.msra.mxu0 %v342
        %1382 = vmatprep.subr.bf16.mxu0 0
        %1383 = vmatpush1.bf16.msra.mxu0 %v343
        %1384 = vmatprep.subr.bf16.mxu0 0
        %1385 = vmatpush1.bf16.msra.mxu0 %v344
        %1386 = vmatprep.subr.bf16.mxu0 0
        %1387 = vmatpush1.bf16.msra.mxu0 %v345
        %1388 = vmatprep.subr.bf16.mxu0 0
        %1389 = vmatpush1.bf16.msra.mxu0 %v346
        %1390 = vmatprep.subr.bf16.mxu0 0
        %1391 = vmatpush1.bf16.msra.mxu0 %v347
        %1392 = vmatprep.subr.bf16.mxu0 0
        %1393 = vmatpush1.bf16.msra.mxu0 %v348
        %1394 = vmatprep.subr.bf16.mxu0 0
        %1395 = vmatpush1.bf16.msra.mxu0 %v349
        %1396 = vmatprep.subr.bf16.mxu0 0
        %1397 = vmatpush1.bf16.msra.mxu0 0
        %1398 = vmatprep.subr.bf16.mxu0 0
        %1399 = vmatpush1.bf16.msra.mxu0 0
        %1400 = vmatprep.subr.bf16.mxu0 0
        %1401 = vmatpush1.bf16.msra.mxu0 0
        %1402 = vmatprep.subr.bf16.mxu0 0
        %1403 = vmatpush1.bf16.msra.mxu0 0
        %1404 = vmatprep.subr.bf16.mxu0 0
        %1405 = vmatpush1.bf16.msra.mxu0 0
        %1406 = vmatprep.subr.bf16.mxu0 0
        %1407 = vmatpush1.bf16.msra.mxu0 0
        %1408 = vmatprep.subr.bf16.mxu0 0
        %1409 = vmatpush1.bf16.msra.mxu0 0
        %1410 = vmatprep.subr.bf16.mxu0 0
        %1411 = vmatpush1.bf16.msra.mxu0 0
        %1412 = vmatprep.mubr.bf16.mxu0 0
        %1413 = vmatmul.mubr.bf16.gmra.mrb[0].mxu0 %v1379
        %v1414 = vpop.f32.mrb[0].mxu0
        %v1415 = vadd.f32 0.0, %v1414
        %v1416 = vpop.f32.mrb[0].mxu0
        %v1417 = vpop.f32.mrb[0].mxu0
        %v1418 = vpop.f32.mrb[0].mxu0
        %1419 = vdwg.mxu0
        %v1422 = vunpack.c.l.b16 %v1377
        %v1423 = vunpack.c.l.b16 %v1378
        %v1424 = vrot.slane %v1423, 7
        %v1425 = vsel %vm403, %v1424, %v1422
        %v1426 = vpack.c.b16 %v1425, %v1425
        %v1428 = vsel %vm406, %v1426, 0
        %1430 = vmatprep.subr.bf16.mxu0 0
        %1431 = vmatpush1.bf16.msra.mxu0 %v412
        %1432 = vmatprep.subr.bf16.mxu0 0
        %1433 = vmatpush1.bf16.msra.mxu0 0
        %1434 = vmatprep.subr.bf16.mxu0 0
        %1435 = vmatpush1.bf16.msra.mxu0 0
        %1436 = vmatprep.subr.bf16.mxu0 0
        %1437 = vmatpush1.bf16.msra.mxu0 0
        %1438 = vmatprep.subr.bf16.mxu0 0
        %1439 = vmatpush1.bf16.msra.mxu0 0
        %1440 = vmatprep.subr.bf16.mxu0 0
        %1441 = vmatpush1.bf16.msra.mxu0 0
        %1442 = vmatprep.subr.bf16.mxu0 0
        %1443 = vmatpush1.bf16.msra.mxu0 0
        %1444 = vmatprep.subr.bf16.mxu0 0
        %1445 = vmatpush1.bf16.msra.mxu0 0
        %1446 = vmatprep.subr.bf16.mxu0 0
        %1447 = vmatpush1.bf16.msra.mxu0 0
        %1448 = vmatprep.subr.bf16.mxu0 0
        %1449 = vmatpush1.bf16.msra.mxu0 0
        %1450 = vmatprep.subr.bf16.mxu0 0
        %1451 = vmatpush1.bf16.msra.mxu0 0
        %1452 = vmatprep.subr.bf16.mxu0 0
        %1453 = vmatpush1.bf16.msra.mxu0 0
        %1454 = vmatprep.subr.bf16.mxu0 0
        %1455 = vmatpush1.bf16.msra.mxu0 0
        %1456 = vmatprep.subr.bf16.mxu0 0
        %1457 = vmatpush1.bf16.msra.mxu0 0
        %1458 = vmatprep.subr.bf16.mxu0 0
        %1459 = vmatpush1.bf16.msra.mxu0 0
        %1460 = vmatprep.subr.bf16.mxu0 0
        %1461 = vmatpush1.bf16.msra.mxu0 0
        %1462 = vmatprep.mubr.bf16.mxu0 0
        %1463 = vmatmul.mubr.bf16.gmra.mrb[0].mxu0 %v1428
        %v1464 = vpop.f32.mrb[0].mxu0
        %v1465 = vadd.f32 %v1415, %v1464
        %v1466 = vpop.f32.mrb[0].mxu0
        %v1467 = vpop.f32.mrb[0].mxu0
        %v1468 = vpop.f32.mrb[0].mxu0
        %1469 = vdwg.mxu0
        %v1470 = vadd.f32 %v1465, 0.1
        %vm1471 = vcmp.gt.f32.partialorder %v1347, 1.0
        %v1472 = vmul.f32 %v1347, 0.9
        %v1473 = vadd.f32 %v1472, %v1470
        %v1474 = vsel %vm1471, 0.0, %v1473
        %v1477 = vunpack.c.l.s4 1966171168
        %v1478 = vunpack.c.0.s8 %v1477
        %v1479 = vlaneseq
        %v1480 = vshrl.u32 %v1479, 7
        %v1481 = vsub.s32 %v1478, %v1480
        %v1482 = vrot.slane %v1474, %v1481
        %v1483 = vcombine.high %v1482, %v1482
        %v1485 = vunpack.c.l.s4 1966171168
        %v1486 = vunpack.c.0.s8 %v1485
        %v1487 = vlaneseq
        %v1488 = vshrl.u32 %v1487, 7
        %v1489 = vsub.s32 %v1486, %v1488
        %v1490 = vrot.slane %v1482, %v1489
        %v1492 = vunpack.c.l.s4 1966171168
        %v1493 = vunpack.c.0.s8 %v1492
        %v1494 = vlaneseq
        %v1495 = vshrl.u32 %v1494, 7
        %v1496 = vsub.s32 %v1493, %v1495
        %v1497 = vrot.slane %v1483, %v1496
        %1500 = vst [vmem:[%s267 + $0x8] sm:$0x1] %v1490
        %1501 = vst [vmem:[%s267 + $0x18] sm:$0x1] %v1497
        %v1502 = vld [vmem:[%s247 + $0x9] sm:$0x1]
        %v1503 = vld [vmem:[%s247 + $0x19] sm:$0x1]
        %v1504 = vpack.c.bf16 %v1502, %v1502
        %v1505 = vpack.c.bf16 %v1503, %v1503
        %v1506 = vpack.c.bf16 %v1474, %v1474
        %1507 = vmatprep.subr.bf16.mxu0 0
        %1508 = vmatpush1.bf16.msra.mxu0 %v342
        %1509 = vmatprep.subr.bf16.mxu0 0
        %1510 = vmatpush1.bf16.msra.mxu0 %v343
        %1511 = vmatprep.subr.bf16.mxu0 0
        %1512 = vmatpush1.bf16.msra.mxu0 %v344
        %1513 = vmatprep.subr.bf16.mxu0 0
        %1514 = vmatpush1.bf16.msra.mxu0 %v345
        %1515 = vmatprep.subr.bf16.mxu0 0
        %1516 = vmatpush1.bf16.msra.mxu0 %v346
        %1517 = vmatprep.subr.bf16.mxu0 0
        %1518 = vmatpush1.bf16.msra.mxu0 %v347
        %1519 = vmatprep.subr.bf16.mxu0 0
        %1520 = vmatpush1.bf16.msra.mxu0 %v348
        %1521 = vmatprep.subr.bf16.mxu0 0
        %1522 = vmatpush1.bf16.msra.mxu0 %v349
        %1523 = vmatprep.subr.bf16.mxu0 0
        %1524 = vmatpush1.bf16.msra.mxu0 0
        %1525 = vmatprep.subr.bf16.mxu0 0
        %1526 = vmatpush1.bf16.msra.mxu0 0
        %1527 = vmatprep.subr.bf16.mxu0 0
        %1528 = vmatpush1.bf16.msra.mxu0 0
        %1529 = vmatprep.subr.bf16.mxu0 0
        %1530 = vmatpush1.bf16.msra.mxu0 0
        %1531 = vmatprep.subr.bf16.mxu0 0
        %1532 = vmatpush1.bf16.msra.mxu0 0
        %1533 = vmatprep.subr.bf16.mxu0 0
        %1534 = vmatpush1.bf16.msra.mxu0 0
        %1535 = vmatprep.subr.bf16.mxu0 0
        %1536 = vmatpush1.bf16.msra.mxu0 0
        %1537 = vmatprep.subr.bf16.mxu0 0
        %1538 = vmatpush1.bf16.msra.mxu0 0
        %1539 = vmatprep.mubr.bf16.mxu0 0
        %1540 = vmatmul.mubr.bf16.gmra.mrb[0].mxu0 %v1506
        %v1541 = vpop.f32.mrb[0].mxu0
        %v1542 = vadd.f32 0.0, %v1541
        %v1543 = vpop.f32.mrb[0].mxu0
        %v1544 = vpop.f32.mrb[0].mxu0
        %v1545 = vpop.f32.mrb[0].mxu0
        %1546 = vdwg.mxu0
        %v1549 = vunpack.c.l.b16 %v1504
        %v1550 = vunpack.c.l.b16 %v1505
        %v1551 = vrot.slane %v1550, 7
        %v1552 = vsel %vm403, %v1551, %v1549
        %v1553 = vpack.c.b16 %v1552, %v1552
        %v1555 = vsel %vm406, %v1553, 0
        %1557 = vmatprep.subr.bf16.mxu0 0
        %1558 = vmatpush1.bf16.msra.mxu0 %v412
        %1559 = vmatprep.subr.bf16.mxu0 0
        %1560 = vmatpush1.bf16.msra.mxu0 0
        %1561 = vmatprep.subr.bf16.mxu0 0
        %1562 = vmatpush1.bf16.msra.mxu0 0
        %1563 = vmatprep.subr.bf16.mxu0 0
        %1564 = vmatpush1.bf16.msra.mxu0 0
        %1565 = vmatprep.subr.bf16.mxu0 0
        %1566 = vmatpush1.bf16.msra.mxu0 0
        %1567 = vmatprep.subr.bf16.mxu0 0
        %1568 = vmatpush1.bf16.msra.mxu0 0
        %1569 = vmatprep.subr.bf16.mxu0 0
        %1570 = vmatpush1.bf16.msra.mxu0 0
        %1571 = vmatprep.subr.bf16.mxu0 0
        %1572 = vmatpush1.bf16.msra.mxu0 0
        %1573 = vmatprep.subr.bf16.mxu0 0
        %1574 = vmatpush1.bf16.msra.mxu0 0
        %1575 = vmatprep.subr.bf16.mxu0 0
        %1576 = vmatpush1.bf16.msra.mxu0 0
        %1577 = vmatprep.subr.bf16.mxu0 0
        %1578 = vmatpush1.bf16.msra.mxu0 0
        %1579 = vmatprep.subr.bf16.mxu0 0
        %1580 = vmatpush1.bf16.msra.mxu0 0
        %1581 = vmatprep.subr.bf16.mxu0 0
        %1582 = vmatpush1.bf16.msra.mxu0 0
        %1583 = vmatprep.subr.bf16.mxu0 0
        %1584 = vmatpush1.bf16.msra.mxu0 0
        %1585 = vmatprep.subr.bf16.mxu0 0
        %1586 = vmatpush1.bf16.msra.mxu0 0
        %1587 = vmatprep.subr.bf16.mxu0 0
        %1588 = vmatpush1.bf16.msra.mxu0 0
        %1589 = vmatprep.mubr.bf16.mxu0 0
        %1590 = vmatmul.mubr.bf16.gmra.mrb[0].mxu0 %v1555
        %v1591 = vpop.f32.mrb[0].mxu0
        %v1592 = vadd.f32 %v1542, %v1591
        %v1593 = vpop.f32.mrb[0].mxu0
        %v1594 = vpop.f32.mrb[0].mxu0
        %v1595 = vpop.f32.mrb[0].mxu0
        %1596 = vdwg.mxu0
        %v1597 = vadd.f32 %v1592, 0.1
        %vm1598 = vcmp.gt.f32.partialorder %v1474, 1.0
        %v1599 = vmul.f32 %v1474, 0.9
        %v1600 = vadd.f32 %v1599, %v1597
        %v1601 = vsel %vm1598, 0.0, %v1600
        %v1604 = vunpack.c.l.s4 1966171168
        %v1605 = vunpack.c.0.s8 %v1604
        %v1606 = vlaneseq
        %v1607 = vshrl.u32 %v1606, 7
        %v1608 = vsub.s32 %v1605, %v1607
        %v1609 = vrot.slane %v1601, %v1608
        %v1610 = vcombine.high %v1609, %v1609
        %v1612 = vunpack.c.l.s4 1966171168
        %v1613 = vunpack.c.0.s8 %v1612
        %v1614 = vlaneseq
        %v1615 = vshrl.u32 %v1614, 7
        %v1616 = vsub.s32 %v1613, %v1615
        %v1617 = vrot.slane %v1609, %v1616
        %v1619 = vunpack.c.l.s4 1966171168
        %v1620 = vunpack.c.0.s8 %v1619
        %v1621 = vlaneseq
        %v1622 = vshrl.u32 %v1621, 7
        %v1623 = vsub.s32 %v1620, %v1622
        %v1624 = vrot.slane %v1610, %v1623
        %1627 = vst [vmem:[%s267 + $0x9] sm:$0x1] %v1617
        %1628 = vst [vmem:[%s267 + $0x19] sm:$0x1] %v1624
        %v1629 = vld [vmem:[%s247 + $0xa] sm:$0x1]
        %v1630 = vld [vmem:[%s247 + $0x1a] sm:$0x1]
        %v1631 = vpack.c.bf16 %v1629, %v1629
        %v1632 = vpack.c.bf16 %v1630, %v1630
        %v1633 = vpack.c.bf16 %v1601, %v1601
        %1634 = vmatprep.subr.bf16.mxu0 0
        %1635 = vmatpush1.bf16.msra.mxu0 %v342
        %1636 = vmatprep.subr.bf16.mxu0 0
        %1637 = vmatpush1.bf16.msra.mxu0 %v343
        %1638 = vmatprep.subr.bf16.mxu0 0
        %1639 = vmatpush1.bf16.msra.mxu0 %v344
        %1640 = vmatprep.subr.bf16.mxu0 0
        %1641 = vmatpush1.bf16.msra.mxu0 %v345
        %1642 = vmatprep.subr.bf16.mxu0 0
        %1643 = vmatpush1.bf16.msra.mxu0 %v346
        %1644 = vmatprep.subr.bf16.mxu0 0
        %1645 = vmatpush1.bf16.msra.mxu0 %v347
        %1646 = vmatprep.subr.bf16.mxu0 0
        %1647 = vmatpush1.bf16.msra.mxu0 %v348
        %1648 = vmatprep.subr.bf16.mxu0 0
        %1649 = vmatpush1.bf16.msra.mxu0 %v349
        %1650 = vmatprep.subr.bf16.mxu0 0
        %1651 = vmatpush1.bf16.msra.mxu0 0
        %1652 = vmatprep.subr.bf16.mxu0 0
        %1653 = vmatpush1.bf16.msra.mxu0 0
        %1654 = vmatprep.subr.bf16.mxu0 0
        %1655 = vmatpush1.bf16.msra.mxu0 0
        %1656 = vmatprep.subr.bf16.mxu0 0
        %1657 = vmatpush1.bf16.msra.mxu0 0
        %1658 = vmatprep.subr.bf16.mxu0 0
        %1659 = vmatpush1.bf16.msra.mxu0 0
        %1660 = vmatprep.subr.bf16.mxu0 0
        %1661 = vmatpush1.bf16.msra.mxu0 0
        %1662 = vmatprep.subr.bf16.mxu0 0
        %1663 = vmatpush1.bf16.msra.mxu0 0
        %1664 = vmatprep.subr.bf16.mxu0 0
        %1665 = vmatpush1.bf16.msra.mxu0 0
        %1666 = vmatprep.mubr.bf16.mxu0 0
        %1667 = vmatmul.mubr.bf16.gmra.mrb[0].mxu0 %v1633
        %v1668 = vpop.f32.mrb[0].mxu0
        %v1669 = vadd.f32 0.0, %v1668
        %v1670 = vpop.f32.mrb[0].mxu0
        %v1671 = vpop.f32.mrb[0].mxu0
        %v1672 = vpop.f32.mrb[0].mxu0
        %1673 = vdwg.mxu0
        %v1676 = vunpack.c.l.b16 %v1631
        %v1677 = vunpack.c.l.b16 %v1632
        %v1678 = vrot.slane %v1677, 7
        %v1679 = vsel %vm403, %v1678, %v1676
        %v1680 = vpack.c.b16 %v1679, %v1679
        %v1682 = vsel %vm406, %v1680, 0
        %1684 = vmatprep.subr.bf16.mxu0 0
        %1685 = vmatpush1.bf16.msra.mxu0 %v412
        %1686 = vmatprep.subr.bf16.mxu0 0
        %1687 = vmatpush1.bf16.msra.mxu0 0
        %1688 = vmatprep.subr.bf16.mxu0 0
        %1689 = vmatpush1.bf16.msra.mxu0 0
        %1690 = vmatprep.subr.bf16.mxu0 0
        %1691 = vmatpush1.bf16.msra.mxu0 0
        %1692 = vmatprep.subr.bf16.mxu0 0
        %1693 = vmatpush1.bf16.msra.mxu0 0
        %1694 = vmatprep.subr.bf16.mxu0 0
        %1695 = vmatpush1.bf16.msra.mxu0 0
        %1696 = vmatprep.subr.bf16.mxu0 0
        %1697 = vmatpush1.bf16.msra.mxu0 0
        %1698 = vmatprep.subr.bf16.mxu0 0
        %1699 = vmatpush1.bf16.msra.mxu0 0
        %1700 = vmatprep.subr.bf16.mxu0 0
        %1701 = vmatpush1.bf16.msra.mxu0 0
        %1702 = vmatprep.subr.bf16.mxu0 0
        %1703 = vmatpush1.bf16.msra.mxu0 0
        %1704 = vmatprep.subr.bf16.mxu0 0
        %1705 = vmatpush1.bf16.msra.mxu0 0
        %1706 = vmatprep.subr.bf16.mxu0 0
        %1707 = vmatpush1.bf16.msra.mxu0 0
        %1708 = vmatprep.subr.bf16.mxu0 0
        %1709 = vmatpush1.bf16.msra.mxu0 0
        %1710 = vmatprep.subr.bf16.mxu0 0
        %1711 = vmatpush1.bf16.msra.mxu0 0
        %1712 = vmatprep.subr.bf16.mxu0 0
        %1713 = vmatpush1.bf16.msra.mxu0 0
        %1714 = vmatprep.subr.bf16.mxu0 0
        %1715 = vmatpush1.bf16.msra.mxu0 0
        %1716 = vmatprep.mubr.bf16.mxu0 0
        %1717 = vmatmul.mubr.bf16.gmra.mrb[0].mxu0 %v1682
        %v1718 = vpop.f32.mrb[0].mxu0
        %v1719 = vadd.f32 %v1669, %v1718
        %v1720 = vpop.f32.mrb[0].mxu0
        %v1721 = vpop.f32.mrb[0].mxu0
        %v1722 = vpop.f32.mrb[0].mxu0
        %1723 = vdwg.mxu0
        %v1724 = vadd.f32 %v1719, 0.1
        %vm1725 = vcmp.gt.f32.partialorder %v1601, 1.0
        %v1726 = vmul.f32 %v1601, 0.9
        %v1727 = vadd.f32 %v1726, %v1724
        %v1728 = vsel %vm1725, 0.0, %v1727
        %v1731 = vunpack.c.l.s4 1966171168
        %v1732 = vunpack.c.0.s8 %v1731
        %v1733 = vlaneseq
        %v1734 = vshrl.u32 %v1733, 7
        %v1735 = vsub.s32 %v1732, %v1734
        %v1736 = vrot.slane %v1728, %v1735
        %v1737 = vcombine.high %v1736, %v1736
        %v1739 = vunpack.c.l.s4 1966171168
        %v1740 = vunpack.c.0.s8 %v1739
        %v1741 = vlaneseq
        %v1742 = vshrl.u32 %v1741, 7
        %v1743 = vsub.s32 %v1740, %v1742
        %v1744 = vrot.slane %v1736, %v1743
        %v1746 = vunpack.c.l.s4 1966171168
        %v1747 = vunpack.c.0.s8 %v1746
        %v1748 = vlaneseq
        %v1749 = vshrl.u32 %v1748, 7
        %v1750 = vsub.s32 %v1747, %v1749
        %v1751 = vrot.slane %v1737, %v1750
        %1754 = vst [vmem:[%s267 + $0xa] sm:$0x1] %v1744
        %1755 = vst [vmem:[%s267 + $0x1a] sm:$0x1] %v1751
        %v1756 = vld [vmem:[%s247 + $0xb] sm:$0x1]
        %v1757 = vld [vmem:[%s247 + $0x1b] sm:$0x1]
        %v1758 = vpack.c.bf16 %v1756, %v1756
        %v1759 = vpack.c.bf16 %v1757, %v1757
        %v1760 = vpack.c.bf16 %v1728, %v1728
        %1761 = vmatprep.subr.bf16.mxu0 0
        %1762 = vmatpush1.bf16.msra.mxu0 %v342
        %1763 = vmatprep.subr.bf16.mxu0 0
        %1764 = vmatpush1.bf16.msra.mxu0 %v343
        %1765 = vmatprep.subr.bf16.mxu0 0
        %1766 = vmatpush1.bf16.msra.mxu0 %v344
        %1767 = vmatprep.subr.bf16.mxu0 0
        %1768 = vmatpush1.bf16.msra.mxu0 %v345
        %1769 = vmatprep.subr.bf16.mxu0 0
        %1770 = vmatpush1.bf16.msra.mxu0 %v346
        %1771 = vmatprep.subr.bf16.mxu0 0
        %1772 = vmatpush1.bf16.msra.mxu0 %v347
        %1773 = vmatprep.subr.bf16.mxu0 0
        %1774 = vmatpush1.bf16.msra.mxu0 %v348
        %1775 = vmatprep.subr.bf16.mxu0 0
        %1776 = vmatpush1.bf16.msra.mxu0 %v349
        %1777 = vmatprep.subr.bf16.mxu0 0
        %1778 = vmatpush1.bf16.msra.mxu0 0
        %1779 = vmatprep.subr.bf16.mxu0 0
        %1780 = vmatpush1.bf16.msra.mxu0 0
        %1781 = vmatprep.subr.bf16.mxu0 0
        %1782 = vmatpush1.bf16.msra.mxu0 0
        %1783 = vmatprep.subr.bf16.mxu0 0
        %1784 = vmatpush1.bf16.msra.mxu0 0
        %1785 = vmatprep.subr.bf16.mxu0 0
        %1786 = vmatpush1.bf16.msra.mxu0 0
        %1787 = vmatprep.subr.bf16.mxu0 0
        %1788 = vmatpush1.bf16.msra.mxu0 0
        %1789 = vmatprep.subr.bf16.mxu0 0
        %1790 = vmatpush1.bf16.msra.mxu0 0
        %1791 = vmatprep.subr.bf16.mxu0 0
        %1792 = vmatpush1.bf16.msra.mxu0 0
        %1793 = vmatprep.mubr.bf16.mxu0 0
        %1794 = vmatmul.mubr.bf16.gmra.mrb[0].mxu0 %v1760
        %v1795 = vpop.f32.mrb[0].mxu0
        %v1796 = vadd.f32 0.0, %v1795
        %v1797 = vpop.f32.mrb[0].mxu0
        %v1798 = vpop.f32.mrb[0].mxu0
        %v1799 = vpop.f32.mrb[0].mxu0
        %1800 = vdwg.mxu0
        %v1803 = vunpack.c.l.b16 %v1758
        %v1804 = vunpack.c.l.b16 %v1759
        %v1805 = vrot.slane %v1804, 7
        %v1806 = vsel %vm403, %v1805, %v1803
        %v1807 = vpack.c.b16 %v1806, %v1806
        %v1809 = vsel %vm406, %v1807, 0
        %1811 = vmatprep.subr.bf16.mxu0 0
        %1812 = vmatpush1.bf16.msra.mxu0 %v412
        %1813 = vmatprep.subr.bf16.mxu0 0
        %1814 = vmatpush1.bf16.msra.mxu0 0
        %1815 = vmatprep.subr.bf16.mxu0 0
        %1816 = vmatpush1.bf16.msra.mxu0 0
        %1817 = vmatprep.subr.bf16.mxu0 0
        %1818 = vmatpush1.bf16.msra.mxu0 0
        %1819 = vmatprep.subr.bf16.mxu0 0
        %1820 = vmatpush1.bf16.msra.mxu0 0
        %1821 = vmatprep.subr.bf16.mxu0 0
        %1822 = vmatpush1.bf16.msra.mxu0 0
        %1823 = vmatprep.subr.bf16.mxu0 0
        %1824 = vmatpush1.bf16.msra.mxu0 0
        %1825 = vmatprep.subr.bf16.mxu0 0
        %1826 = vmatpush1.bf16.msra.mxu0 0
        %1827 = vmatprep.subr.bf16.mxu0 0
        %1828 = vmatpush1.bf16.msra.mxu0 0
        %1829 = vmatprep.subr.bf16.mxu0 0
        %1830 = vmatpush1.bf16.msra.mxu0 0
        %1831 = vmatprep.subr.bf16.mxu0 0
        %1832 = vmatpush1.bf16.msra.mxu0 0
        %1833 = vmatprep.subr.bf16.mxu0 0
        %1834 = vmatpush1.bf16.msra.mxu0 0
        %1835 = vmatprep.subr.bf16.mxu0 0
        %1836 = vmatpush1.bf16.msra.mxu0 0
        %1837 = vmatprep.subr.bf16.mxu0 0
        %1838 = vmatpush1.bf16.msra.mxu0 0
        %1839 = vmatprep.subr.bf16.mxu0 0
        %1840 = vmatpush1.bf16.msra.mxu0 0
        %1841 = vmatprep.subr.bf16.mxu0 0
        %1842 = vmatpush1.bf16.msra.mxu0 0
        %1843 = vmatprep.mubr.bf16.mxu0 0
        %1844 = vmatmul.mubr.bf16.gmra.mrb[0].mxu0 %v1809
        %v1845 = vpop.f32.mrb[0].mxu0
        %v1846 = vadd.f32 %v1796, %v1845
        %v1847 = vpop.f32.mrb[0].mxu0
        %v1848 = vpop.f32.mrb[0].mxu0
        %v1849 = vpop.f32.mrb[0].mxu0
        %1850 = vdwg.mxu0
        %v1851 = vadd.f32 %v1846, 0.1
        %vm1852 = vcmp.gt.f32.partialorder %v1728, 1.0
        %v1853 = vmul.f32 %v1728, 0.9
        %v1854 = vadd.f32 %v1853, %v1851
        %v1855 = vsel %vm1852, 0.0, %v1854
        %v1858 = vunpack.c.l.s4 1966171168
        %v1859 = vunpack.c.0.s8 %v1858
        %v1860 = vlaneseq
        %v1861 = vshrl.u32 %v1860, 7
        %v1862 = vsub.s32 %v1859, %v1861
        %v1863 = vrot.slane %v1855, %v1862
        %v1864 = vcombine.high %v1863, %v1863
        %v1866 = vunpack.c.l.s4 1966171168
        %v1867 = vunpack.c.0.s8 %v1866
        %v1868 = vlaneseq
        %v1869 = vshrl.u32 %v1868, 7
        %v1870 = vsub.s32 %v1867, %v1869
        %v1871 = vrot.slane %v1863, %v1870
        %v1873 = vunpack.c.l.s4 1966171168
        %v1874 = vunpack.c.0.s8 %v1873
        %v1875 = vlaneseq
        %v1876 = vshrl.u32 %v1875, 7
        %v1877 = vsub.s32 %v1874, %v1876
        %v1878 = vrot.slane %v1864, %v1877
        %1881 = vst [vmem:[%s267 + $0xb] sm:$0x1] %v1871
        %1882 = vst [vmem:[%s267 + $0x1b] sm:$0x1] %v1878
        %v1883 = vld [vmem:[%s247 + $0xc] sm:$0x1]
        %v1884 = vld [vmem:[%s247 + $0x1c] sm:$0x1]
        %v1885 = vpack.c.bf16 %v1883, %v1883
        %v1886 = vpack.c.bf16 %v1884, %v1884
        %v1887 = vpack.c.bf16 %v1855, %v1855
        %1888 = vmatprep.subr.bf16.mxu0 0
        %1889 = vmatpush1.bf16.msra.mxu0 %v342
        %1890 = vmatprep.subr.bf16.mxu0 0
        %1891 = vmatpush1.bf16.msra.mxu0 %v343
        %1892 = vmatprep.subr.bf16.mxu0 0
        %1893 = vmatpush1.bf16.msra.mxu0 %v344
        %1894 = vmatprep.subr.bf16.mxu0 0
        %1895 = vmatpush1.bf16.msra.mxu0 %v345
        %1896 = vmatprep.subr.bf16.mxu0 0
        %1897 = vmatpush1.bf16.msra.mxu0 %v346
        %1898 = vmatprep.subr.bf16.mxu0 0
        %1899 = vmatpush1.bf16.msra.mxu0 %v347
        %1900 = vmatprep.subr.bf16.mxu0 0
        %1901 = vmatpush1.bf16.msra.mxu0 %v348
        %1902 = vmatprep.subr.bf16.mxu0 0
        %1903 = vmatpush1.bf16.msra.mxu0 %v349
        %1904 = vmatprep.subr.bf16.mxu0 0
        %1905 = vmatpush1.bf16.msra.mxu0 0
        %1906 = vmatprep.subr.bf16.mxu0 0
        %1907 = vmatpush1.bf16.msra.mxu0 0
        %1908 = vmatprep.subr.bf16.mxu0 0
        %1909 = vmatpush1.bf16.msra.mxu0 0
        %1910 = vmatprep.subr.bf16.mxu0 0
        %1911 = vmatpush1.bf16.msra.mxu0 0
        %1912 = vmatprep.subr.bf16.mxu0 0
        %1913 = vmatpush1.bf16.msra.mxu0 0
        %1914 = vmatprep.subr.bf16.mxu0 0
        %1915 = vmatpush1.bf16.msra.mxu0 0
        %1916 = vmatprep.subr.bf16.mxu0 0
        %1917 = vmatpush1.bf16.msra.mxu0 0
        %1918 = vmatprep.subr.bf16.mxu0 0
        %1919 = vmatpush1.bf16.msra.mxu0 0
        %1920 = vmatprep.mubr.bf16.mxu0 0
        %1921 = vmatmul.mubr.bf16.gmra.mrb[0].mxu0 %v1887
        %v1922 = vpop.f32.mrb[0].mxu0
        %v1923 = vadd.f32 0.0, %v1922
        %v1924 = vpop.f32.mrb[0].mxu0
        %v1925 = vpop.f32.mrb[0].mxu0
        %v1926 = vpop.f32.mrb[0].mxu0
        %1927 = vdwg.mxu0
        %v1930 = vunpack.c.l.b16 %v1885
        %v1931 = vunpack.c.l.b16 %v1886
        %v1932 = vrot.slane %v1931, 7
        %v1933 = vsel %vm403, %v1932, %v1930
        %v1934 = vpack.c.b16 %v1933, %v1933
        %v1936 = vsel %vm406, %v1934, 0
        %1938 = vmatprep.subr.bf16.mxu0 0
        %1939 = vmatpush1.bf16.msra.mxu0 %v412
        %1940 = vmatprep.subr.bf16.mxu0 0
        %1941 = vmatpush1.bf16.msra.mxu0 0
        %1942 = vmatprep.subr.bf16.mxu0 0
        %1943 = vmatpush1.bf16.msra.mxu0 0
        %1944 = vmatprep.subr.bf16.mxu0 0
        %1945 = vmatpush1.bf16.msra.mxu0 0
        %1946 = vmatprep.subr.bf16.mxu0 0
        %1947 = vmatpush1.bf16.msra.mxu0 0
        %1948 = vmatprep.subr.bf16.mxu0 0
        %1949 = vmatpush1.bf16.msra.mxu0 0
        %1950 = vmatprep.subr.bf16.mxu0 0
        %1951 = vmatpush1.bf16.msra.mxu0 0
        %1952 = vmatprep.subr.bf16.mxu0 0
        %1953 = vmatpush1.bf16.msra.mxu0 0
        %1954 = vmatprep.subr.bf16.mxu0 0
        %1955 = vmatpush1.bf16.msra.mxu0 0
        %1956 = vmatprep.subr.bf16.mxu0 0
        %1957 = vmatpush1.bf16.msra.mxu0 0
        %1958 = vmatprep.subr.bf16.mxu0 0
        %1959 = vmatpush1.bf16.msra.mxu0 0
        %1960 = vmatprep.subr.bf16.mxu0 0
        %1961 = vmatpush1.bf16.msra.mxu0 0
        %1962 = vmatprep.subr.bf16.mxu0 0
        %1963 = vmatpush1.bf16.msra.mxu0 0
        %1964 = vmatprep.subr.bf16.mxu0 0
        %1965 = vmatpush1.bf16.msra.mxu0 0
        %1966 = vmatprep.subr.bf16.mxu0 0
        %1967 = vmatpush1.bf16.msra.mxu0 0
        %1968 = vmatprep.subr.bf16.mxu0 0
        %1969 = vmatpush1.bf16.msra.mxu0 0
        %1970 = vmatprep.mubr.bf16.mxu0 0
        %1971 = vmatmul.mubr.bf16.gmra.mrb[0].mxu0 %v1936
        %v1972 = vpop.f32.mrb[0].mxu0
        %v1973 = vadd.f32 %v1923, %v1972
        %v1974 = vpop.f32.mrb[0].mxu0
        %v1975 = vpop.f32.mrb[0].mxu0
        %v1976 = vpop.f32.mrb[0].mxu0
        %1977 = vdwg.mxu0
        %v1978 = vadd.f32 %v1973, 0.1
        %vm1979 = vcmp.gt.f32.partialorder %v1855, 1.0
        %v1980 = vmul.f32 %v1855, 0.9
        %v1981 = vadd.f32 %v1980, %v1978
        %v1982 = vsel %vm1979, 0.0, %v1981
        %v1985 = vunpack.c.l.s4 1966171168
        %v1986 = vunpack.c.0.s8 %v1985
        %v1987 = vlaneseq
        %v1988 = vshrl.u32 %v1987, 7
        %v1989 = vsub.s32 %v1986, %v1988
        %v1990 = vrot.slane %v1982, %v1989
        %v1991 = vcombine.high %v1990, %v1990
        %v1993 = vunpack.c.l.s4 1966171168
        %v1994 = vunpack.c.0.s8 %v1993
        %v1995 = vlaneseq
        %v1996 = vshrl.u32 %v1995, 7
        %v1997 = vsub.s32 %v1994, %v1996
        %v1998 = vrot.slane %v1990, %v1997
        %v2000 = vunpack.c.l.s4 1966171168
        %v2001 = vunpack.c.0.s8 %v2000
        %v2002 = vlaneseq
        %v2003 = vshrl.u32 %v2002, 7
        %v2004 = vsub.s32 %v2001, %v2003
        %v2005 = vrot.slane %v1991, %v2004
        %2008 = vst [vmem:[%s267 + $0xc] sm:$0x1] %v1998
        %2009 = vst [vmem:[%s267 + $0x1c] sm:$0x1] %v2005
        %v2010 = vld [vmem:[%s247 + $0xd] sm:$0x1]
        %v2011 = vld [vmem:[%s247 + $0x1d] sm:$0x1]
        %v2012 = vpack.c.bf16 %v2010, %v2010
        %v2013 = vpack.c.bf16 %v2011, %v2011
        %v2014 = vpack.c.bf16 %v1982, %v1982
        %2015 = vmatprep.subr.bf16.mxu0 0
        %2016 = vmatpush1.bf16.msra.mxu0 %v342
        %2017 = vmatprep.subr.bf16.mxu0 0
        %2018 = vmatpush1.bf16.msra.mxu0 %v343
        %2019 = vmatprep.subr.bf16.mxu0 0
        %2020 = vmatpush1.bf16.msra.mxu0 %v344
        %2021 = vmatprep.subr.bf16.mxu0 0
        %2022 = vmatpush1.bf16.msra.mxu0 %v345
        %2023 = vmatprep.subr.bf16.mxu0 0
        %2024 = vmatpush1.bf16.msra.mxu0 %v346
        %2025 = vmatprep.subr.bf16.mxu0 0
        %2026 = vmatpush1.bf16.msra.mxu0 %v347
        %2027 = vmatprep.subr.bf16.mxu0 0
        %2028 = vmatpush1.bf16.msra.mxu0 %v348
        %2029 = vmatprep.subr.bf16.mxu0 0
        %2030 = vmatpush1.bf16.msra.mxu0 %v349
        %2031 = vmatprep.subr.bf16.mxu0 0
        %2032 = vmatpush1.bf16.msra.mxu0 0
        %2033 = vmatprep.subr.bf16.mxu0 0
        %2034 = vmatpush1.bf16.msra.mxu0 0
        %2035 = vmatprep.subr.bf16.mxu0 0
        %2036 = vmatpush1.bf16.msra.mxu0 0
        %2037 = vmatprep.subr.bf16.mxu0 0
        %2038 = vmatpush1.bf16.msra.mxu0 0
        %2039 = vmatprep.subr.bf16.mxu0 0
        %2040 = vmatpush1.bf16.msra.mxu0 0
        %2041 = vmatprep.subr.bf16.mxu0 0
        %2042 = vmatpush1.bf16.msra.mxu0 0
        %2043 = vmatprep.subr.bf16.mxu0 0
        %2044 = vmatpush1.bf16.msra.mxu0 0
        %2045 = vmatprep.subr.bf16.mxu0 0
        %2046 = vmatpush1.bf16.msra.mxu0 0
        %2047 = vmatprep.mubr.bf16.mxu0 0
        %2048 = vmatmul.mubr.bf16.gmra.mrb[0].mxu0 %v2014
        %v2049 = vpop.f32.mrb[0].mxu0
        %v2050 = vadd.f32 0.0, %v2049
        %v2051 = vpop.f32.mrb[0].mxu0
        %v2052 = vpop.f32.mrb[0].mxu0
        %v2053 = vpop.f32.mrb[0].mxu0
        %2054 = vdwg.mxu0
        %v2057 = vunpack.c.l.b16 %v2012
        %v2058 = vunpack.c.l.b16 %v2013
        %v2059 = vrot.slane %v2058, 7
        %v2060 = vsel %vm403, %v2059, %v2057
        %v2061 = vpack.c.b16 %v2060, %v2060
        %v2063 = vsel %vm406, %v2061, 0
        %2065 = vmatprep.subr.bf16.mxu0 0
        %2066 = vmatpush1.bf16.msra.mxu0 %v412
        %2067 = vmatprep.subr.bf16.mxu0 0
        %2068 = vmatpush1.bf16.msra.mxu0 0
        %2069 = vmatprep.subr.bf16.mxu0 0
        %2070 = vmatpush1.bf16.msra.mxu0 0
        %2071 = vmatprep.subr.bf16.mxu0 0
        %2072 = vmatpush1.bf16.msra.mxu0 0
        %2073 = vmatprep.subr.bf16.mxu0 0
        %2074 = vmatpush1.bf16.msra.mxu0 0
        %2075 = vmatprep.subr.bf16.mxu0 0
        %2076 = vmatpush1.bf16.msra.mxu0 0
        %2077 = vmatprep.subr.bf16.mxu0 0
        %2078 = vmatpush1.bf16.msra.mxu0 0
        %2079 = vmatprep.subr.bf16.mxu0 0
        %2080 = vmatpush1.bf16.msra.mxu0 0
        %2081 = vmatprep.subr.bf16.mxu0 0
        %2082 = vmatpush1.bf16.msra.mxu0 0
        %2083 = vmatprep.subr.bf16.mxu0 0
        %2084 = vmatpush1.bf16.msra.mxu0 0
        %2085 = vmatprep.subr.bf16.mxu0 0
        %2086 = vmatpush1.bf16.msra.mxu0 0
        %2087 = vmatprep.subr.bf16.mxu0 0
        %2088 = vmatpush1.bf16.msra.mxu0 0
        %2089 = vmatprep.subr.bf16.mxu0 0
        %2090 = vmatpush1.bf16.msra.mxu0 0
        %2091 = vmatprep.subr.bf16.mxu0 0
        %2092 = vmatpush1.bf16.msra.mxu0 0
        %2093 = vmatprep.subr.bf16.mxu0 0
        %2094 = vmatpush1.bf16.msra.mxu0 0
        %2095 = vmatprep.subr.bf16.mxu0 0
        %2096 = vmatpush1.bf16.msra.mxu0 0
        %2097 = vmatprep.mubr.bf16.mxu0 0
        %2098 = vmatmul.mubr.bf16.gmra.mrb[0].mxu0 %v2063
        %v2099 = vpop.f32.mrb[0].mxu0
        %v2100 = vadd.f32 %v2050, %v2099
        %v2101 = vpop.f32.mrb[0].mxu0
        %v2102 = vpop.f32.mrb[0].mxu0
        %v2103 = vpop.f32.mrb[0].mxu0
        %2104 = vdwg.mxu0
        %v2105 = vadd.f32 %v2100, 0.1
        %vm2106 = vcmp.gt.f32.partialorder %v1982, 1.0
        %v2107 = vmul.f32 %v1982, 0.9
        %v2108 = vadd.f32 %v2107, %v2105
        %v2109 = vsel %vm2106, 0.0, %v2108
        %v2112 = vunpack.c.l.s4 1966171168
        %v2113 = vunpack.c.0.s8 %v2112
        %v2114 = vlaneseq
        %v2115 = vshrl.u32 %v2114, 7
        %v2116 = vsub.s32 %v2113, %v2115
        %v2117 = vrot.slane %v2109, %v2116
        %v2118 = vcombine.high %v2117, %v2117
        %v2120 = vunpack.c.l.s4 1966171168
        %v2121 = vunpack.c.0.s8 %v2120
        %v2122 = vlaneseq
        %v2123 = vshrl.u32 %v2122, 7
        %v2124 = vsub.s32 %v2121, %v2123
        %v2125 = vrot.slane %v2117, %v2124
        %v2127 = vunpack.c.l.s4 1966171168
        %v2128 = vunpack.c.0.s8 %v2127
        %v2129 = vlaneseq
        %v2130 = vshrl.u32 %v2129, 7
        %v2131 = vsub.s32 %v2128, %v2130
        %v2132 = vrot.slane %v2118, %v2131
        %2135 = vst [vmem:[%s267 + $0xd] sm:$0x1] %v2125
        %2136 = vst [vmem:[%s267 + $0x1d] sm:$0x1] %v2132
        %v2137 = vld [vmem:[%s247 + $0xe] sm:$0x1]
        %v2138 = vld [vmem:[%s247 + $0x1e] sm:$0x1]
        %v2139 = vpack.c.bf16 %v2137, %v2137
        %v2140 = vpack.c.bf16 %v2138, %v2138
        %v2141 = vpack.c.bf16 %v2109, %v2109
        %2142 = vmatprep.subr.bf16.mxu0 0
        %2143 = vmatpush1.bf16.msra.mxu0 %v342
        %2144 = vmatprep.subr.bf16.mxu0 0
        %2145 = vmatpush1.bf16.msra.mxu0 %v343
        %2146 = vmatprep.subr.bf16.mxu0 0
        %2147 = vmatpush1.bf16.msra.mxu0 %v344
        %2148 = vmatprep.subr.bf16.mxu0 0
        %2149 = vmatpush1.bf16.msra.mxu0 %v345
        %2150 = vmatprep.subr.bf16.mxu0 0
        %2151 = vmatpush1.bf16.msra.mxu0 %v346
        %2152 = vmatprep.subr.bf16.mxu0 0
        %2153 = vmatpush1.bf16.msra.mxu0 %v347
        %2154 = vmatprep.subr.bf16.mxu0 0
        %2155 = vmatpush1.bf16.msra.mxu0 %v348
        %2156 = vmatprep.subr.bf16.mxu0 0
        %2157 = vmatpush1.bf16.msra.mxu0 %v349
        %2158 = vmatprep.subr.bf16.mxu0 0
        %2159 = vmatpush1.bf16.msra.mxu0 0
        %2160 = vmatprep.subr.bf16.mxu0 0
        %2161 = vmatpush1.bf16.msra.mxu0 0
        %2162 = vmatprep.subr.bf16.mxu0 0
        %2163 = vmatpush1.bf16.msra.mxu0 0
        %2164 = vmatprep.subr.bf16.mxu0 0
        %2165 = vmatpush1.bf16.msra.mxu0 0
        %2166 = vmatprep.subr.bf16.mxu0 0
        %2167 = vmatpush1.bf16.msra.mxu0 0
        %2168 = vmatprep.subr.bf16.mxu0 0
        %2169 = vmatpush1.bf16.msra.mxu0 0
        %2170 = vmatprep.subr.bf16.mxu0 0
        %2171 = vmatpush1.bf16.msra.mxu0 0
        %2172 = vmatprep.subr.bf16.mxu0 0
        %2173 = vmatpush1.bf16.msra.mxu0 0
        %2174 = vmatprep.mubr.bf16.mxu0 0
        %2175 = vmatmul.mubr.bf16.gmra.mrb[0].mxu0 %v2141
        %v2176 = vpop.f32.mrb[0].mxu0
        %v2177 = vadd.f32 0.0, %v2176
        %v2178 = vpop.f32.mrb[0].mxu0
        %v2179 = vpop.f32.mrb[0].mxu0
        %v2180 = vpop.f32.mrb[0].mxu0
        %2181 = vdwg.mxu0
        %v2184 = vunpack.c.l.b16 %v2139
        %v2185 = vunpack.c.l.b16 %v2140
        %v2186 = vrot.slane %v2185, 7
        %v2187 = vsel %vm403, %v2186, %v2184
        %v2188 = vpack.c.b16 %v2187, %v2187
        %v2190 = vsel %vm406, %v2188, 0
        %2192 = vmatprep.subr.bf16.mxu0 0
        %2193 = vmatpush1.bf16.msra.mxu0 %v412
        %2194 = vmatprep.subr.bf16.mxu0 0
        %2195 = vmatpush1.bf16.msra.mxu0 0
        %2196 = vmatprep.subr.bf16.mxu0 0
        %2197 = vmatpush1.bf16.msra.mxu0 0
        %2198 = vmatprep.subr.bf16.mxu0 0
        %2199 = vmatpush1.bf16.msra.mxu0 0
        %2200 = vmatprep.subr.bf16.mxu0 0
        %2201 = vmatpush1.bf16.msra.mxu0 0
        %2202 = vmatprep.subr.bf16.mxu0 0
        %2203 = vmatpush1.bf16.msra.mxu0 0
        %2204 = vmatprep.subr.bf16.mxu0 0
        %2205 = vmatpush1.bf16.msra.mxu0 0
        %2206 = vmatprep.subr.bf16.mxu0 0
        %2207 = vmatpush1.bf16.msra.mxu0 0
        %2208 = vmatprep.subr.bf16.mxu0 0
        %2209 = vmatpush1.bf16.msra.mxu0 0
        %2210 = vmatprep.subr.bf16.mxu0 0
        %2211 = vmatpush1.bf16.msra.mxu0 0
        %2212 = vmatprep.subr.bf16.mxu0 0
        %2213 = vmatpush1.bf16.msra.mxu0 0
        %2214 = vmatprep.subr.bf16.mxu0 0
        %2215 = vmatpush1.bf16.msra.mxu0 0
        %2216 = vmatprep.subr.bf16.mxu0 0
        %2217 = vmatpush1.bf16.msra.mxu0 0
        %2218 = vmatprep.subr.bf16.mxu0 0
        %2219 = vmatpush1.bf16.msra.mxu0 0
        %2220 = vmatprep.subr.bf16.mxu0 0
        %2221 = vmatpush1.bf16.msra.mxu0 0
        %2222 = vmatprep.subr.bf16.mxu0 0
        %2223 = vmatpush1.bf16.msra.mxu0 0
        %2224 = vmatprep.mubr.bf16.mxu0 0
        %2225 = vmatmul.mubr.bf16.gmra.mrb[0].mxu0 %v2190
        %v2226 = vpop.f32.mrb[0].mxu0
        %v2227 = vadd.f32 %v2177, %v2226
        %v2228 = vpop.f32.mrb[0].mxu0
        %v2229 = vpop.f32.mrb[0].mxu0
        %v2230 = vpop.f32.mrb[0].mxu0
        %2231 = vdwg.mxu0
        %v2232 = vadd.f32 %v2227, 0.1
        %vm2233 = vcmp.gt.f32.partialorder %v2109, 1.0
        %v2234 = vmul.f32 %v2109, 0.9
        %v2235 = vadd.f32 %v2234, %v2232
        %v2236 = vsel %vm2233, 0.0, %v2235
        %v2239 = vunpack.c.l.s4 1966171168
        %v2240 = vunpack.c.0.s8 %v2239
        %v2241 = vlaneseq
        %v2242 = vshrl.u32 %v2241, 7
        %v2243 = vsub.s32 %v2240, %v2242
        %v2244 = vrot.slane %v2236, %v2243
        %v2245 = vcombine.high %v2244, %v2244
        %v2247 = vunpack.c.l.s4 1966171168
        %v2248 = vunpack.c.0.s8 %v2247
        %v2249 = vlaneseq
        %v2250 = vshrl.u32 %v2249, 7
        %v2251 = vsub.s32 %v2248, %v2250
        %v2252 = vrot.slane %v2244, %v2251
        %v2254 = vunpack.c.l.s4 1966171168
        %v2255 = vunpack.c.0.s8 %v2254
        %v2256 = vlaneseq
        %v2257 = vshrl.u32 %v2256, 7
        %v2258 = vsub.s32 %v2255, %v2257
        %v2259 = vrot.slane %v2245, %v2258
        %2262 = vst [vmem:[%s267 + $0xe] sm:$0x1] %v2252
        %2263 = vst [vmem:[%s267 + $0x1e] sm:$0x1] %v2259
        %v2264 = vld [vmem:[%s247 + $0xf] sm:$0x1]
        %v2265 = vld [vmem:[%s247 + $0x1f] sm:$0x1]
        %v2266 = vpack.c.bf16 %v2264, %v2264
        %v2267 = vpack.c.bf16 %v2265, %v2265
        %v2268 = vpack.c.bf16 %v2236, %v2236
        %2269 = vmatprep.subr.bf16.mxu0 0
        %2270 = vmatpush1.bf16.msra.mxu0 %v342
        %2271 = vmatprep.subr.bf16.mxu0 0
        %2272 = vmatpush1.bf16.msra.mxu0 %v343
        %2273 = vmatprep.subr.bf16.mxu0 0
        %2274 = vmatpush1.bf16.msra.mxu0 %v344
        %2275 = vmatprep.subr.bf16.mxu0 0
        %2276 = vmatpush1.bf16.msra.mxu0 %v345
        %2277 = vmatprep.subr.bf16.mxu0 0
        %2278 = vmatpush1.bf16.msra.mxu0 %v346
        %2279 = vmatprep.subr.bf16.mxu0 0
        %2280 = vmatpush1.bf16.msra.mxu0 %v347
        %2281 = vmatprep.subr.bf16.mxu0 0
        %2282 = vmatpush1.bf16.msra.mxu0 %v348
        %2283 = vmatprep.subr.bf16.mxu0 0
        %2284 = vmatpush1.bf16.msra.mxu0 %v349
        %2285 = vmatprep.subr.bf16.mxu0 0
        %2286 = vmatpush1.bf16.msra.mxu0 0
        %2287 = vmatprep.subr.bf16.mxu0 0
        %2288 = vmatpush1.bf16.msra.mxu0 0
        %2289 = vmatprep.subr.bf16.mxu0 0
        %2290 = vmatpush1.bf16.msra.mxu0 0
        %2291 = vmatprep.subr.bf16.mxu0 0
        %2292 = vmatpush1.bf16.msra.mxu0 0
        %2293 = vmatprep.subr.bf16.mxu0 0
        %2294 = vmatpush1.bf16.msra.mxu0 0
        %2295 = vmatprep.subr.bf16.mxu0 0
        %2296 = vmatpush1.bf16.msra.mxu0 0
        %2297 = vmatprep.subr.bf16.mxu0 0
        %2298 = vmatpush1.bf16.msra.mxu0 0
        %2299 = vmatprep.subr.bf16.mxu0 0
        %2300 = vmatpush1.bf16.msra.mxu0 0
        %2301 = vmatprep.mubr.bf16.mxu0 0
        %2302 = vmatmul.mubr.bf16.gmra.mrb[0].mxu0 %v2268
        %v2303 = vpop.f32.mrb[0].mxu0
        %v2304 = vadd.f32 0.0, %v2303
        %v2305 = vpop.f32.mrb[0].mxu0
        %v2306 = vpop.f32.mrb[0].mxu0
        %v2307 = vpop.f32.mrb[0].mxu0
        %2308 = vdwg.mxu0
        %v2311 = vunpack.c.l.b16 %v2266
        %v2312 = vunpack.c.l.b16 %v2267
        %v2313 = vrot.slane %v2312, 7
        %v2314 = vsel %vm403, %v2313, %v2311
        %v2315 = vpack.c.b16 %v2314, %v2314
        %v2317 = vsel %vm406, %v2315, 0
        %2319 = vmatprep.subr.bf16.mxu0 0
        %2320 = vmatpush1.bf16.msra.mxu0 %v412
        %2321 = vmatprep.subr.bf16.mxu0 0
        %2322 = vmatpush1.bf16.msra.mxu0 0
        %2323 = vmatprep.subr.bf16.mxu0 0
        %2324 = vmatpush1.bf16.msra.mxu0 0
        %2325 = vmatprep.subr.bf16.mxu0 0
        %2326 = vmatpush1.bf16.msra.mxu0 0
        %2327 = vmatprep.subr.bf16.mxu0 0
        %2328 = vmatpush1.bf16.msra.mxu0 0
        %2329 = vmatprep.subr.bf16.mxu0 0
        %2330 = vmatpush1.bf16.msra.mxu0 0
        %2331 = vmatprep.subr.bf16.mxu0 0
        %2332 = vmatpush1.bf16.msra.mxu0 0
        %2333 = vmatprep.subr.bf16.mxu0 0
        %2334 = vmatpush1.bf16.msra.mxu0 0
        %2335 = vmatprep.subr.bf16.mxu0 0
        %2336 = vmatpush1.bf16.msra.mxu0 0
        %2337 = vmatprep.subr.bf16.mxu0 0
        %2338 = vmatpush1.bf16.msra.mxu0 0
        %2339 = vmatprep.subr.bf16.mxu0 0
        %2340 = vmatpush1.bf16.msra.mxu0 0
        %2341 = vmatprep.subr.bf16.mxu0 0
        %2342 = vmatpush1.bf16.msra.mxu0 0
        %2343 = vmatprep.subr.bf16.mxu0 0
        %2344 = vmatpush1.bf16.msra.mxu0 0
        %2345 = vmatprep.subr.bf16.mxu0 0
        %2346 = vmatpush1.bf16.msra.mxu0 0
        %2347 = vmatprep.subr.bf16.mxu0 0
        %2348 = vmatpush1.bf16.msra.mxu0 0
        %2349 = vmatprep.subr.bf16.mxu0 0
        %2350 = vmatpush1.bf16.msra.mxu0 0
        %2351 = vmatprep.mubr.bf16.mxu0 0
        %2352 = vmatmul.mubr.bf16.gmra.mrb[0].mxu0 %v2317
        %v2353 = vpop.f32.mrb[0].mxu0
        %v2354 = vadd.f32 %v2304, %v2353
        %v2355 = vpop.f32.mrb[0].mxu0
        %v2356 = vpop.f32.mrb[0].mxu0
        %v2357 = vpop.f32.mrb[0].mxu0
        %2358 = vdwg.mxu0
        %v2359 = vadd.f32 %v2354, 0.1
        %vm2360 = vcmp.gt.f32.partialorder %v2236, 1.0
        %v2361 = vmul.f32 %v2236, 0.9
        %v2362 = vadd.f32 %v2361, %v2359
        %v2363 = vsel %vm2360, 0.0, %v2362
        %v2366 = vunpack.c.l.s4 1966171168
        %v2367 = vunpack.c.0.s8 %v2366
        %v2368 = vlaneseq
        %v2369 = vshrl.u32 %v2368, 7
        %v2370 = vsub.s32 %v2367, %v2369
        %v2371 = vrot.slane %v2363, %v2370
        %v2372 = vcombine.high %v2371, %v2371
        %v2374 = vunpack.c.l.s4 1966171168
        %v2375 = vunpack.c.0.s8 %v2374
        %v2376 = vlaneseq
        %v2377 = vshrl.u32 %v2376, 7
        %v2378 = vsub.s32 %v2375, %v2377
        %v2379 = vrot.slane %v2371, %v2378
        %v2381 = vunpack.c.l.s4 1966171168
        %v2382 = vunpack.c.0.s8 %v2381
        %v2383 = vlaneseq
        %v2384 = vshrl.u32 %v2383, 7
        %v2385 = vsub.s32 %v2382, %v2384
        %v2386 = vrot.slane %v2372, %v2385
        %2389 = vst [vmem:[%s267 + $0xf] sm:$0x1] %v2379
        %2390 = vst [vmem:[%s267 + $0x1f] sm:$0x1] %v2386
        %2391 = vst [vmem:[#allocation2] sm:$0x3] %v2363
        %v2392 = vld [vmem:[%s267] sm:$0xff]
        %v2393 = vld [vmem:[%s267 + $0x8] sm:$0xff]
        %v2394 = vld [vmem:[%s267 + $0x10] sm:$0xff]
        %v2395 = vld [vmem:[%s267 + $0x18] sm:$0xff]
        %vm2396 = vcmp.gt.f32.partialorder %v2392, 1.0
        %vm2397 = vcmp.gt.f32.partialorder %v2393, 1.0
        %vm2398 = vcmp.gt.f32.partialorder %v2394, 1.0
        %vm2399 = vcmp.gt.f32.partialorder %v2395, 1.0
        %v2400 = vsel %vm2396, 1, 0
        %v2401 = vsel %vm2397, 1, 0
        %v2402 = vsel %vm2398, 1, 0
        %v2403 = vsel %vm2399, 1, 0
        %v2404 = vcvt.s32.f32 %v2400
        %v2405 = vcvt.s32.f32 %v2401
        %v2406 = vcvt.s32.f32 %v2402
        %v2407 = vcvt.s32.f32 %v2403
        %v2408 = vpack.c.bf16 %v2405, %v2404
        %v2409 = vpack.c.bf16 %v2407, %v2406
        %v2412 = vunpack.c.l.b16 %v2408
        %v2413 = vunpack.c.h.b16 %v2408
        %v2414 = vunpack.c.l.b16 %v2409
        %v2415 = vunpack.c.h.b16 %v2409
        %v2416 = vpack.c.b16 %v2412, %v2412
        %v2417 = vpack.c.b16 %v2413, %v2413
        %v2418 = vpack.c.b16 %v2414, %v2414
        %v2419 = vpack.c.b16 %v2415, %v2415
        %2424 = vst [vmem:[%s274] sm:$0xf] %v2416
        %2425 = vst [vmem:[%s274 + $0x4] sm:$0xf] %v2417
        %2426 = vst [vmem:[%s274 + $0x8] sm:$0xf] %v2418
        %2427 = vst [vmem:[%s274 + $0xc] sm:$0xf] %v2419
        %s2428 = sand.u32 %s114, 1
        %s2429 = scalar_lea.sflag [#allocation5], %s2428
        %s2430 = sand.u32 %s114, 1
        %s2431 = smul.addr %s2430, 32
        %s2432 = scalar_lea.vmem [#allocation4], %s2431
        %s2433 = sand.u32 %s142, 1
        %s2434 = scalar_lea.sflag [#allocation7], %s2433
        %s2435 = sand.u32 %s142, 1
        %s2436 = smul.addr %s2435, 16
        %s2437 = scalar_lea.vmem [#allocation6], %s2436
        // Predicated region
        $region75: #{tpu_custom_call.1} parent=65 // pred_check
          %p2438 = pneg %p124
        $region76: #{tpu_custom_call.1} parent=65 // pred_check_branch
          %2440 = sbr.rel (%p2438) target = $region78
        $region77: #{tpu_custom_call.1} parent=65 // pred_region
          #allocation9 [shape = 'u32[6]{0}', space=smem, size = 0x18, scoped, tag = 'DMA stride descriptor']
          %s2441 = smul.u32 2, %s26
          %s2442 = smul.u32 2, %s27
          %s2444 = ssub.s32 512, 512
          %2445 = vsyncadd %s2429, %s2444
          %s2446 = smul.addr %s2441, 4
          %s2447 = sadd.s32 %s2442, %s2446
          %s2448 = smul.addr %s2447, 128
          %s2449 = scalar_lea.hbm %s3, %s2448
          %s2451 = sshll.u32 1, 14
          %s2452 = sxor.u32 4294967295, %s2451
          %s2455 = sshll.u32 7, 18
          %s2456 = sxor.u32 4294967295, %s2455
          %s2457 = sand.u32 0, %s2456
          %s2459 = sor.u32 %s2457, 0
          %s2461 = sshll.u32 3, 24
          %s2462 = sxor.u32 4294967295, %s2461
          %s2463 = sand.u32 %s2459, %s2462
          %s2465 = sor.u32 %s2463, 0
          %s2466 = sshll.u32 %s2432, 4
          %s2467 = int_to_ptr.vmem [resolvable:$true] %s2466
          %2473 = sst [smem:[#allocation9]] 256
          %s2474 = scalar_lea.smem [#allocation9], 1
          %2475 = sst [smem:[%s2474]] 512
          %s2476 = scalar_lea.smem [#allocation9], 2
          %2477 = sst [smem:[%s2476]] 2
          %s2478 = scalar_lea.smem [#allocation9], 3
          %2479 = sst [smem:[%s2478]] 128
          %s2480 = scalar_lea.smem [#allocation9], 4
          %2481 = sst [smem:[%s2480]] 128
          %s2482 = scalar_lea.smem [#allocation9], 5
          %2483 = sst [smem:[%s2482]] 8
          %2485 = dma.general %s2467, 512, %s2449, %s2429, [#allocation8], [#allocation9], %s2465, 0
        $region78: #{tpu_custom_call.1} parent=65 // pred_fallthru
          _
        // Predicated region
        $region79: #{tpu_custom_call.1} parent=65 // pred_check
          %p2486 = pneg %p152
        $region80: #{tpu_custom_call.1} parent=65 // pred_check_branch
          %2488 = sbr.rel (%p2486) target = $region82
        $region81: #{tpu_custom_call.1} parent=65 // pred_region
          #allocation11 [shape = 'u32[6]{0}', space=smem, size = 0x18, scoped, tag = 'DMA stride descriptor']
          %s2489 = smul.u32 2, %s26
          %s2490 = smul.u32 2, %s27
          %s2492 = ssub.s32 256, 256
          %2493 = vsyncadd %s2434, %s2492
          %s2494 = smul.addr %s2489, 4
          %s2495 = sadd.s32 %s2490, %s2494
          %s2496 = smul.addr %s2495, 64
          %s2497 = scalar_lea.hbm %s4, %s2496
          %s2499 = sshll.u32 1, 14
          %s2500 = sxor.u32 4294967295, %s2499
          %s2503 = sshll.u32 7, 18
          %s2504 = sxor.u32 4294967295, %s2503
          %s2505 = sand.u32 0, %s2504
          %s2507 = sor.u32 %s2505, 0
          %s2509 = sshll.u32 3, 24
          %s2510 = sxor.u32 4294967295, %s2509
          %s2511 = sand.u32 %s2507, %s2510
          %s2513 = sor.u32 %s2511, 0
          %s2514 = sshll.u32 %s2437, 4
          %s2515 = int_to_ptr.vmem [resolvable:$true] %s2514
          %2521 = sst [smem:[#allocation11]] 128
          %s2522 = scalar_lea.smem [#allocation11], 1
          %2523 = sst [smem:[%s2522]] 256
          %s2524 = scalar_lea.smem [#allocation11], 2
          %2525 = sst [smem:[%s2524]] 2
          %s2526 = scalar_lea.smem [#allocation11], 3
          %2527 = sst [smem:[%s2526]] 64
          %s2528 = scalar_lea.smem [#allocation11], 4
          %2529 = sst [smem:[%s2528]] 64
          %s2530 = scalar_lea.smem [#allocation11], 5
          %2531 = sst [smem:[%s2530]] 4
          %2533 = dma.general %s2515, 256, %s2497, %s2434, [#allocation10], [#allocation11], %s2513, 0
        $region82: #{tpu_custom_call.1} parent=65 // pred_fallthru
          _
      $region66: #{tpu_custom_call.1} parent=5 // pred_fallthru
        _
      %p2534 = scmp.le.s32.totalorder 2, %s17
      // Predicated region
      $region83: #{tpu_custom_call.1} parent=5 // pred_check
        %p2535 = pneg %p2534
      $region84: #{tpu_custom_call.1} parent=5 // pred_check_branch
        %2537 = sbr.rel (%p2535) target = $region86
      $region85: #{tpu_custom_call.1} parent=5 // pred_region
        %s2538 = ssub.s32 %s17, 2
        // Predicated region
        $region87: #{tpu_custom_call.1} parent=85 // pred_check
          %p2539 = pneg %p130
        $region88: #{tpu_custom_call.1} parent=85 // pred_check_branch
          %2541 = sbr.rel (%p2539) target = $region90
        $region89: #{tpu_custom_call.1} parent=85 // pred_region
          %s2542 = sand.u32 %s115, 1
          %s2543 = scalar_lea.sflag [#allocation5], %s2542
          %s2544 = sand.u32 %s115, 1
          %s2545 = smul.addr %s2544, 32
          %s2546 = scalar_lea.vmem [#allocation4], %s2545
          %2547 = dma.done %s2543, 512
        $region90: #{tpu_custom_call.1} parent=85 // pred_fallthru
          _
        // Predicated region
        $region91: #{tpu_custom_call.1} parent=85 // pred_check
          %p2548 = pneg %p158
        $region92: #{tpu_custom_call.1} parent=85 // pred_check_branch
          %2550 = sbr.rel (%p2548) target = $region94
        $region93: #{tpu_custom_call.1} parent=85 // pred_region
          %s2551 = sand.u32 %s143, 1
          %s2552 = scalar_lea.sflag [#allocation7], %s2551
          %s2553 = sand.u32 %s143, 1
          %s2554 = smul.addr %s2553, 16
          %s2555 = scalar_lea.vmem [#allocation6], %s2554
          %2556 = dma.done %s2552, 256
        $region94: #{tpu_custom_call.1} parent=85 // pred_fallthru
          _
      $region86: #{tpu_custom_call.1} parent=5 // pred_fallthru
        _
    $region6: #{tpu_custom_call.1} parent=1 // loop_footer
      %s21 = sadd.s32 1, %s17
    $region7: #{tpu_custom_call.1} parent=1 // loop_footer_branch
      %16 = sbr.rel target = $region3
    $region8: #{tpu_custom_call.1} parent=1 // loop_exit
      _
    %2557 = vsyncpa [#allocation5], 1
    %s2558 = scalar_lea.sflag [#allocation5], 1
    %2559 = vsyncpa %s2558, 1
    %2560 = vsyncpa [#allocation7], 1
    %s2561 = scalar_lea.sflag [#allocation7], 1
    %2562 = vsyncpa %s2561, 1

</llo_original>
